<compile_context>
chip_gen: v5e
topology: v5e:2x2
jax: 0.10.0
libtpu: 0.0.40
codegen_flags: <defaults>
</compile_context>

<pallas_src>
import jax
import jax.numpy as jnp
from jax import lax
from jax.experimental import pallas as pl
from jax.experimental.pallas import tpu as pltpu

# master raster is 28 lanes wide (input width); working widths padded to multiples of 128
_XW = 896     # padded flat input width      (>= 767 + 116 + 1)
_A1W = 768    # conv1 output raster width    (>= 639 + 116 + 1)
_A2W = 640    # conv2 output raster width    (>= 19*28 + 19 + 1)


def _fused_forward_kernel(x_ref, w1_ref, b1_ref, w2_ref, b2_ref,
                          wl1_ref, bl1_ref, wl2_ref, bl2_ref, o_ref):
    f32 = jnp.float32
    xrow = x_ref[0]                                               # (1, 896) flat 28-wide raster

    # ---- conv1: im2col = 25 static lane-shifted slices, one lane-dense GEMM, channel-major ----
    cols1 = jnp.concatenate(
        [xrow[:, p * 28 + q: p * 28 + q + _A1W] for p in range(5) for q in range(5)],
        axis=0)                                                   # (25, 768)
    a1 = jnp.dot(w1_ref[...], cols1, preferred_element_type=f32) + b1_ref[...]    # (8, 768)

    # ---- conv2: same trick on the VMEM-resident conv1 activation ----
    cols2 = jnp.concatenate(
        [a1[:, p * 28 + q: p * 28 + q + _A2W] for p in range(5) for q in range(5)],
        axis=0)                                                   # (200, 640)
    a2 = jnp.dot(w2_ref[...], cols2, preferred_element_type=f32) + b2_ref[...]    # (16, 640)

    # ---- flatten (channel-major rows of the padded raster) into one lane-dense row ----
    a2_flat = jnp.concatenate([a2[c:c + 1, :] for c in range(16)], axis=1)        # (1, 10240)

    # ---- linear1 (transposed, zero-scattered weight) + ReLU + linear2, all fused ----
    h = lax.dot_general(a2_flat, wl1_ref[...],
                        dimension_numbers=(((1,), (1,)), ((), ())),
                        preferred_element_type=f32)                               # (1, 10)
    h = jnp.maximum(h + bl1_ref[...], 0.0)
    out = jnp.dot(h, wl2_ref[...], preferred_element_type=f32) + bl2_ref[...]     # (1, 2)
    o_ref[0] = out.astype(o_ref.dtype)


def tweaked_squafra_forward(x, params):
    """x: (N, 1, 28, 28) float32 -> (N, 2).  Matches the PyTorch module's forward."""
    N = x.shape[0]
    assert x.shape[1:] == (1, 28, 28), x.shape

    # -------- one-time weight re-layouts (tiny, fused into the surrounding jit) --------
    w1 = params["conv1_w"].reshape(8, 25)                        # [cout, kh*5+kw]
    b1 = params["conv1_b"].reshape(8, 1)
    # cols2 rows are ordered (kh*5+kw)*8 + cin  ->  build (16, 200) to match
    w2 = params["conv2_w"].transpose(2, 3, 1, 0).reshape(200, 16).T
    b2 = params["conv2_b"].reshape(16, 1)
    # linear1: fold PyTorch C,H,W flatten order into the weight, scatter onto the padded 28-wide
    # raster (zeros on junk columns), keep the long axis on lanes: (10, 16*640)
    wl1 = params["lin1_w"].reshape(16, 20, 20, 10)               # [c, y, x, h]
    wl1 = jnp.pad(wl1, ((0, 0), (0, 0), (0, 8), (0, 0)))         # x: 20 -> 28
    wl1 = wl1.reshape(16, 560, 10)
    wl1 = jnp.pad(wl1, ((0, 0), (0, _A2W - 560), (0, 0)))        # raster: 560 -> 640
    wl1 = jnp.transpose(wl1, (2, 0, 1)).reshape(10, 16 * _A2W)   # (10, 10240), lane-dense
    bl1 = params["lin1_b"].reshape(1, 10)
    wl2 = params["lin2_w"]                                       # (10, 2)
    bl2 = params["lin2_b"].reshape(1, 2)

    # -------- input as a zero-padded flat 28-wide raster (pure reshape + pad) --------
    x_flat = jnp.pad(x.reshape(N, 1, 28 * 28), ((0, 0), (0, 0), (0, _XW - 784)))

    out = pl.pallas_call(
        _fused_forward_kernel,
        out_shape=jax.ShapeDtypeStruct((N, 1, 2), x.dtype),
        grid=(N,),
        in_specs=[
            pl.BlockSpec((1, 1, _XW), lambda n: (n, 0, 0)),      # input raster (per image)
            pl.BlockSpec((8, 25), lambda n: (0, 0)),             # conv1 weight
            pl.BlockSpec((8, 1), lambda n: (0, 0)),              # conv1 bias
            pl.BlockSpec((16, 200), lambda n: (0, 0)),           # conv2 weight
            pl.BlockSpec((16, 1), lambda n: (0, 0)),             # conv2 bias
            pl.BlockSpec((10, 16 * _A2W), lambda n: (0, 0)),     # linear1 weight (transposed/scattered)
            pl.BlockSpec((1, 10), lambda n: (0, 0)),             # linear1 bias
            pl.BlockSpec((10, 2), lambda n: (0, 0)),             # linear2 weight
            pl.BlockSpec((1, 2), lambda n: (0, 0)),              # linear2 bias
        ],
        out_specs=pl.BlockSpec((1, 1, 2), lambda n: (n, 0, 0)),
        compiler_params=pltpu.CompilerParams(dimension_semantics=("parallel",)),
    )(x_flat, w1, b1, w2, b2, wl1, bl1, wl2, bl2)
    return out[:, 0, :]


def init_params(key):
    ks = jax.random.split(key, 8)
    return {
        "conv1_w": jax.random.normal(ks[0], (8, 1, 5, 5), jnp.float32) * 0.10,
        "conv1_b": jax.random.normal(ks[1], (8,), jnp.float32) * 0.10,
        "conv2_w": jax.random.normal(ks[2], (16, 8, 5, 5), jnp.float32) * 0.05,
        "conv2_b": jax.random.normal(ks[3], (16,), jnp.float32) * 0.05,
        "lin1_w": jax.random.normal(ks[4], (20 * 20 * 16, 10), jnp.float32) * 0.01,
        "lin1_b": jax.random.normal(ks[5], (10,), jnp.float32) * 0.01,
        "lin2_w": jax.random.normal(ks[6], (10, 2), jnp.float32) * 0.10,
        "lin2_b": jax.random.normal(ks[7], (2,), jnp.float32) * 0.10,
    }


def reference_forward(x, params):
    """Plain-JAX reference (f32, HIGHEST precision) mirroring the PyTorch module."""
    hi = lax.Precision.HIGHEST
    dn = ("NCHW", "OIHW", "NCHW")
    a1 = lax.conv_general_dilated(x, params["conv1_w"], (1, 1), "VALID",
                                  dimension_numbers=dn, precision=hi)
    a1 = a1 + params["conv1_b"][None, :, None, None]
    a2 = lax.conv_general_dilated(a1, params["conv2_w"], (1, 1), "VALID",
                                  dimension_numbers=dn, precision=hi)
    a2 = a2 + params["conv2_b"][None, :, None, None]
    f = a2.reshape(a2.shape[0], -1)                              # torch.flatten(out, 1): C,H,W order
    h = jnp.maximum(jnp.dot(f, params["lin1_w"], precision=hi) + params["lin1_b"], 0.0)
    return jnp.dot(h, params["lin2_w"], precision=hi) + params["lin2_b"]


if __name__ == "__main__":
    key = jax.random.PRNGKey(0)
    pkey, xkey = jax.random.split(key)
    params = init_params(pkey)
    # NCHW input; linear1's 20*20*16 in-features imply 28x28 single-channel images
    x = jax.random.normal(xkey, (2, 1, 28, 28), jnp.float32)

    fwd = jax.jit(tweaked_squafra_forward)
    out = jax.block_until_ready(fwd(x, params))
    assert out.shape == (2, 2), out.shape

    ref = jax.block_until_ready(reference_forward(x, params))
    assert jnp.allclose(out, ref, rtol=5e-3, atol=5e-3), (out, ref)

    print("KERNEL_OK")
</pallas_src>

<mosaic_0001>
module attributes {stable_mosaic.version = 11 : i64} {
  func.func @_fused_forward_kernel(%arg0: i32, %arg1: memref<1x1x896xf32, #tpu.memory_space<vmem>>, %arg2: memref<8x25xf32, #tpu.memory_space<vmem>>, %arg3: memref<8x1xf32, #tpu.memory_space<vmem>>, %arg4: memref<16x200xf32, #tpu.memory_space<vmem>>, %arg5: memref<16x1xf32, #tpu.memory_space<vmem>>, %arg6: memref<10x10240xf32, #tpu.memory_space<vmem>>, %arg7: memref<1x10xf32, #tpu.memory_space<vmem>>, %arg8: memref<10x2xf32, #tpu.memory_space<vmem>>, %arg9: memref<1x2xf32, #tpu.memory_space<vmem>>, %arg10: memref<1x1x2xf32, #tpu.memory_space<vmem>>) attributes {dimension_semantics = [#tpu.dimension_semantics<parallel>], iteration_bounds = array<i64: 2>, scalar_prefetch = 0 : i64, scratch_operands = 0 : i64, tpu.core_type = #tpu.core_type<tc>, window_params = [{transform_indices = @transform_0, window_bounds = array<i64: 1, 1, 896>}, {pipeline_mode = #tpu.pipeline_mode<synchronous>, transform_indices = @transform_1, window_bounds = array<i64: 8, 25>}, {pipeline_mode = #tpu.pipeline_mode<synchronous>, transform_indices = @transform_2, window_bounds = array<i64: 8, 1>}, {pipeline_mode = #tpu.pipeline_mode<synchronous>, transform_indices = @transform_3, window_bounds = array<i64: 16, 200>}, {pipeline_mode = #tpu.pipeline_mode<synchronous>, transform_indices = @transform_4, window_bounds = array<i64: 16, 1>}, {pipeline_mode = #tpu.pipeline_mode<synchronous>, transform_indices = @transform_5, window_bounds = array<i64: 10, 10240>}, {pipeline_mode = #tpu.pipeline_mode<synchronous>, transform_indices = @transform_6, window_bounds = array<i64: 1, 10>}, {pipeline_mode = #tpu.pipeline_mode<synchronous>, transform_indices = @transform_7, window_bounds = array<i64: 10, 2>}, {pipeline_mode = #tpu.pipeline_mode<synchronous>, transform_indices = @transform_8, window_bounds = array<i64: 1, 2>}, {transform_indices = @transform_9, window_bounds = array<i64: 1, 1, 2>}]} {
    %c0 = arith.constant 0 : index
    %c0_0 = arith.constant 0 : index
    %c0_1 = arith.constant 0 : index
    %0 = vector.load %arg1[%c0, %c0_0, %c0_1] : memref<1x1x896xf32, #tpu.memory_space<vmem>>, vector<1x1x896xf32>
    %1 = vector.shape_cast %0 : vector<1x1x896xf32> to vector<1x896xf32>
    %2 = vector.extract_strided_slice %1 {offsets = [0, 0], sizes = [1, 768], strides = [1, 1]} : vector<1x896xf32> to vector<1x768xf32>
    %3 = vector.extract_strided_slice %1 {offsets = [0, 1], sizes = [1, 768], strides = [1, 1]} : vector<1x896xf32> to vector<1x768xf32>
    %4 = vector.extract_strided_slice %1 {offsets = [0, 2], sizes = [1, 768], strides = [1, 1]} : vector<1x896xf32> to vector<1x768xf32>
    %5 = vector.extract_strided_slice %1 {offsets = [0, 3], sizes = [1, 768], strides = [1, 1]} : vector<1x896xf32> to vector<1x768xf32>
    %6 = vector.extract_strided_slice %1 {offsets = [0, 4], sizes = [1, 768], strides = [1, 1]} : vector<1x896xf32> to vector<1x768xf32>
    %7 = vector.extract_strided_slice %1 {offsets = [0, 28], sizes = [1, 768], strides = [1, 1]} : vector<1x896xf32> to vector<1x768xf32>
    %8 = vector.extract_strided_slice %1 {offsets = [0, 29], sizes = [1, 768], strides = [1, 1]} : vector<1x896xf32> to vector<1x768xf32>
    %9 = vector.extract_strided_slice %1 {offsets = [0, 30], sizes = [1, 768], strides = [1, 1]} : vector<1x896xf32> to vector<1x768xf32>
    %10 = vector.extract_strided_slice %1 {offsets = [0, 31], sizes = [1, 768], strides = [1, 1]} : vector<1x896xf32> to vector<1x768xf32>
    %11 = vector.extract_strided_slice %1 {offsets = [0, 32], sizes = [1, 768], strides = [1, 1]} : vector<1x896xf32> to vector<1x768xf32>
    %12 = vector.extract_strided_slice %1 {offsets = [0, 56], sizes = [1, 768], strides = [1, 1]} : vector<1x896xf32> to vector<1x768xf32>
    %13 = vector.extract_strided_slice %1 {offsets = [0, 57], sizes = [1, 768], strides = [1, 1]} : vector<1x896xf32> to vector<1x768xf32>
    %14 = vector.extract_strided_slice %1 {offsets = [0, 58], sizes = [1, 768], strides = [1, 1]} : vector<1x896xf32> to vector<1x768xf32>
    %15 = vector.extract_strided_slice %1 {offsets = [0, 59], sizes = [1, 768], strides = [1, 1]} : vector<1x896xf32> to vector<1x768xf32>
    %16 = vector.extract_strided_slice %1 {offsets = [0, 60], sizes = [1, 768], strides = [1, 1]} : vector<1x896xf32> to vector<1x768xf32>
    %17 = vector.extract_strided_slice %1 {offsets = [0, 84], sizes = [1, 768], strides = [1, 1]} : vector<1x896xf32> to vector<1x768xf32>
    %18 = vector.extract_strided_slice %1 {offsets = [0, 85], sizes = [1, 768], strides = [1, 1]} : vector<1x896xf32> to vector<1x768xf32>
    %19 = vector.extract_strided_slice %1 {offsets = [0, 86], sizes = [1, 768], strides = [1, 1]} : vector<1x896xf32> to vector<1x768xf32>
    %20 = vector.extract_strided_slice %1 {offsets = [0, 87], sizes = [1, 768], strides = [1, 1]} : vector<1x896xf32> to vector<1x768xf32>
    %21 = vector.extract_strided_slice %1 {offsets = [0, 88], sizes = [1, 768], strides = [1, 1]} : vector<1x896xf32> to vector<1x768xf32>
    %22 = vector.extract_strided_slice %1 {offsets = [0, 112], sizes = [1, 768], strides = [1, 1]} : vector<1x896xf32> to vector<1x768xf32>
    %23 = vector.extract_strided_slice %1 {offsets = [0, 113], sizes = [1, 768], strides = [1, 1]} : vector<1x896xf32> to vector<1x768xf32>
    %24 = vector.extract_strided_slice %1 {offsets = [0, 114], sizes = [1, 768], strides = [1, 1]} : vector<1x896xf32> to vector<1x768xf32>
    %25 = vector.extract_strided_slice %1 {offsets = [0, 115], sizes = [1, 768], strides = [1, 1]} : vector<1x896xf32> to vector<1x768xf32>
    %26 = vector.extract_strided_slice %1 {offsets = [0, 116], sizes = [1, 768], strides = [1, 1]} : vector<1x896xf32> to vector<1x768xf32>
    %27 = tpu.concatenate %2, %3, %4, %5, %6, %7, %8, %9, %10, %11, %12, %13, %14, %15, %16, %17 in 0 : vector<1x768xf32>, vector<1x768xf32>, vector<1x768xf32>, vector<1x768xf32>, vector<1x768xf32>, vector<1x768xf32>, vector<1x768xf32>, vector<1x768xf32>, vector<1x768xf32>, vector<1x768xf32>, vector<1x768xf32>, vector<1x768xf32>, vector<1x768xf32>, vector<1x768xf32>, vector<1x768xf32>, vector<1x768xf32> -> vector<16x768xf32>
    %28 = tpu.concatenate %18, %19, %20, %21, %22, %23, %24, %25, %26 in 0 : vector<1x768xf32>, vector<1x768xf32>, vector<1x768xf32>, vector<1x768xf32>, vector<1x768xf32>, vector<1x768xf32>, vector<1x768xf32>, vector<1x768xf32>, vector<1x768xf32> -> vector<9x768xf32>
    %29 = tpu.concatenate %27, %28 in 0 : vector<16x768xf32>, vector<9x768xf32> -> vector<25x768xf32>
    %c0_2 = arith.constant 0 : index
    %c0_3 = arith.constant 0 : index
    %30 = vector.load %arg2[%c0_2, %c0_3] : memref<8x25xf32, #tpu.memory_space<vmem>>, vector<8x25xf32>
    %cst = arith.constant dense<0.000000e+00> : vector<8x768xf32>
    %31 = tpu.matmul %30, %29, %cst {dimension_numbers = #tpu.dot_dimension_numbers<[1], [0], [0], [1], [0, 0, 1, 1], [], []>} : vector<8x25xf32>, vector<25x768xf32>, vector<8x768xf32> -> vector<8x768xf32>
    %c0_4 = arith.constant 0 : index
    %c0_5 = arith.constant 0 : index
    %32 = vector.load %arg3[%c0_4, %c0_5] : memref<8x1xf32, #tpu.memory_space<vmem>>, vector<8x1xf32>
    %33 = vector.broadcast %32 : vector<8x1xf32> to vector<8x768xf32>
    %34 = arith.addf %31, %33 : vector<8x768xf32>
    %35 = vector.extract_strided_slice %34 {offsets = [0, 0], sizes = [8, 640], strides = [1, 1]} : vector<8x768xf32> to vector<8x640xf32>
    %36 = vector.extract_strided_slice %34 {offsets = [0, 1], sizes = [8, 640], strides = [1, 1]} : vector<8x768xf32> to vector<8x640xf32>
    %37 = vector.extract_strided_slice %34 {offsets = [0, 2], sizes = [8, 640], strides = [1, 1]} : vector<8x768xf32> to vector<8x640xf32>
    %38 = vector.extract_strided_slice %34 {offsets = [0, 3], sizes = [8, 640], strides = [1, 1]} : vector<8x768xf32> to vector<8x640xf32>
    %39 = vector.extract_strided_slice %34 {offsets = [0, 4], sizes = [8, 640], strides = [1, 1]} : vector<8x768xf32> to vector<8x640xf32>
    %40 = vector.extract_strided_slice %34 {offsets = [0, 28], sizes = [8, 640], strides = [1, 1]} : vector<8x768xf32> to vector<8x640xf32>
    %41 = vector.extract_strided_slice %34 {offsets = [0, 29], sizes = [8, 640], strides = [1, 1]} : vector<8x768xf32> to vector<8x640xf32>
    %42 = vector.extract_strided_slice %34 {offsets = [0, 30], sizes = [8, 640], strides = [1, 1]} : vector<8x768xf32> to vector<8x640xf32>
    %43 = vector.extract_strided_slice %34 {offsets = [0, 31], sizes = [8, 640], strides = [1, 1]} : vector<8x768xf32> to vector<8x640xf32>
    %44 = vector.extract_strided_slice %34 {offsets = [0, 32], sizes = [8, 640], strides = [1, 1]} : vector<8x768xf32> to vector<8x640xf32>
    %45 = vector.extract_strided_slice %34 {offsets = [0, 56], sizes = [8, 640], strides = [1, 1]} : vector<8x768xf32> to vector<8x640xf32>
    %46 = vector.extract_strided_slice %34 {offsets = [0, 57], sizes = [8, 640], strides = [1, 1]} : vector<8x768xf32> to vector<8x640xf32>
    %47 = vector.extract_strided_slice %34 {offsets = [0, 58], sizes = [8, 640], strides = [1, 1]} : vector<8x768xf32> to vector<8x640xf32>
    %48 = vector.extract_strided_slice %34 {offsets = [0, 59], sizes = [8, 640], strides = [1, 1]} : vector<8x768xf32> to vector<8x640xf32>
    %49 = vector.extract_strided_slice %34 {offsets = [0, 60], sizes = [8, 640], strides = [1, 1]} : vector<8x768xf32> to vector<8x640xf32>
    %50 = vector.extract_strided_slice %34 {offsets = [0, 84], sizes = [8, 640], strides = [1, 1]} : vector<8x768xf32> to vector<8x640xf32>
    %51 = vector.extract_strided_slice %34 {offsets = [0, 85], sizes = [8, 640], strides = [1, 1]} : vector<8x768xf32> to vector<8x640xf32>
    %52 = vector.extract_strided_slice %34 {offsets = [0, 86], sizes = [8, 640], strides = [1, 1]} : vector<8x768xf32> to vector<8x640xf32>
    %53 = vector.extract_strided_slice %34 {offsets = [0, 87], sizes = [8, 640], strides = [1, 1]} : vector<8x768xf32> to vector<8x640xf32>
    %54 = vector.extract_strided_slice %34 {offsets = [0, 88], sizes = [8, 640], strides = [1, 1]} : vector<8x768xf32> to vector<8x640xf32>
    %55 = vector.extract_strided_slice %34 {offsets = [0, 112], sizes = [8, 640], strides = [1, 1]} : vector<8x768xf32> to vector<8x640xf32>
    %56 = vector.extract_strided_slice %34 {offsets = [0, 113], sizes = [8, 640], strides = [1, 1]} : vector<8x768xf32> to vector<8x640xf32>
    %57 = vector.extract_strided_slice %34 {offsets = [0, 114], sizes = [8, 640], strides = [1, 1]} : vector<8x768xf32> to vector<8x640xf32>
    %58 = vector.extract_strided_slice %34 {offsets = [0, 115], sizes = [8, 640], strides = [1, 1]} : vector<8x768xf32> to vector<8x640xf32>
    %59 = vector.extract_strided_slice %34 {offsets = [0, 116], sizes = [8, 640], strides = [1, 1]} : vector<8x768xf32> to vector<8x640xf32>
    %60 = tpu.concatenate %35, %36, %37, %38, %39, %40, %41, %42, %43, %44, %45, %46, %47, %48, %49, %50 in 0 : vector<8x640xf32>, vector<8x640xf32>, vector<8x640xf32>, vector<8x640xf32>, vector<8x640xf32>, vector<8x640xf32>, vector<8x640xf32>, vector<8x640xf32>, vector<8x640xf32>, vector<8x640xf32>, vector<8x640xf32>, vector<8x640xf32>, vector<8x640xf32>, vector<8x640xf32>, vector<8x640xf32>, vector<8x640xf32> -> vector<128x640xf32>
    %61 = tpu.concatenate %51, %52, %53, %54, %55, %56, %57, %58, %59 in 0 : vector<8x640xf32>, vector<8x640xf32>, vector<8x640xf32>, vector<8x640xf32>, vector<8x640xf32>, vector<8x640xf32>, vector<8x640xf32>, vector<8x640xf32>, vector<8x640xf32> -> vector<72x640xf32>
    %62 = tpu.concatenate %60, %61 in 0 : vector<128x640xf32>, vector<72x640xf32> -> vector<200x640xf32>
    %c0_6 = arith.constant 0 : index
    %c0_7 = arith.constant 0 : index
    %63 = vector.load %arg4[%c0_6, %c0_7] : memref<16x200xf32, #tpu.memory_space<vmem>>, vector<16x200xf32>
    %cst_8 = arith.constant dense<0.000000e+00> : vector<16x640xf32>
    %64 = tpu.matmul %63, %62, %cst_8 {dimension_numbers = #tpu.dot_dimension_numbers<[1], [0], [0], [1], [0, 0, 1, 1], [], []>} : vector<16x200xf32>, vector<200x640xf32>, vector<16x640xf32> -> vector<16x640xf32>
    %c0_9 = arith.constant 0 : index
    %c0_10 = arith.constant 0 : index
    %65 = vector.load %arg5[%c0_9, %c0_10] : memref<16x1xf32, #tpu.memory_space<vmem>>, vector<16x1xf32>
    %66 = vector.broadcast %65 : vector<16x1xf32> to vector<16x640xf32>
    %67 = arith.addf %64, %66 : vector<16x640xf32>
    %68 = vector.extract_strided_slice %67 {offsets = [0, 0], sizes = [1, 640], strides = [1, 1]} : vector<16x640xf32> to vector<1x640xf32>
    %69 = vector.extract_strided_slice %67 {offsets = [1, 0], sizes = [1, 640], strides = [1, 1]} : vector<16x640xf32> to vector<1x640xf32>
    %70 = vector.extract_strided_slice %67 {offsets = [2, 0], sizes = [1, 640], strides = [1, 1]} : vector<16x640xf32> to vector<1x640xf32>
    %71 = vector.extract_strided_slice %67 {offsets = [3, 0], sizes = [1, 640], strides = [1, 1]} : vector<16x640xf32> to vector<1x640xf32>
    %72 = vector.extract_strided_slice %67 {offsets = [4, 0], sizes = [1, 640], strides = [1, 1]} : vector<16x640xf32> to vector<1x640xf32>
    %73 = vector.extract_strided_slice %67 {offsets = [5, 0], sizes = [1, 640], strides = [1, 1]} : vector<16x640xf32> to vector<1x640xf32>
    %74 = vector.extract_strided_slice %67 {offsets = [6, 0], sizes = [1, 640], strides = [1, 1]} : vector<16x640xf32> to vector<1x640xf32>
    %75 = vector.extract_strided_slice %67 {offsets = [7, 0], sizes = [1, 640], strides = [1, 1]} : vector<16x640xf32> to vector<1x640xf32>
    %76 = vector.extract_strided_slice %67 {offsets = [8, 0], sizes = [1, 640], strides = [1, 1]} : vector<16x640xf32> to vector<1x640xf32>
    %77 = vector.extract_strided_slice %67 {offsets = [9, 0], sizes = [1, 640], strides = [1, 1]} : vector<16x640xf32> to vector<1x640xf32>
    %78 = vector.extract_strided_slice %67 {offsets = [10, 0], sizes = [1, 640], strides = [1, 1]} : vector<16x640xf32> to vector<1x640xf32>
    %79 = vector.extract_strided_slice %67 {offsets = [11, 0], sizes = [1, 640], strides = [1, 1]} : vector<16x640xf32> to vector<1x640xf32>
    %80 = vector.extract_strided_slice %67 {offsets = [12, 0], sizes = [1, 640], strides = [1, 1]} : vector<16x640xf32> to vector<1x640xf32>
    %81 = vector.extract_strided_slice %67 {offsets = [13, 0], sizes = [1, 640], strides = [1, 1]} : vector<16x640xf32> to vector<1x640xf32>
    %82 = vector.extract_strided_slice %67 {offsets = [14, 0], sizes = [1, 640], strides = [1, 1]} : vector<16x640xf32> to vector<1x640xf32>
    %83 = vector.extract_strided_slice %67 {offsets = [15, 0], sizes = [1, 640], strides = [1, 1]} : vector<16x640xf32> to vector<1x640xf32>
    %84 = tpu.concatenate %68, %69, %70, %71, %72, %73, %74, %75, %76, %77, %78, %79, %80, %81, %82, %83 in 1 : vector<1x640xf32>, vector<1x640xf32>, vector<1x640xf32>, vector<1x640xf32>, vector<1x640xf32>, vector<1x640xf32>, vector<1x640xf32>, vector<1x640xf32>, vector<1x640xf32>, vector<1x640xf32>, vector<1x640xf32>, vector<1x640xf32>, vector<1x640xf32>, vector<1x640xf32>, vector<1x640xf32>, vector<1x640xf32> -> vector<1x10240xf32>
    %c0_11 = arith.constant 0 : index
    %c0_12 = arith.constant 0 : index
    %85 = vector.load %arg6[%c0_11, %c0_12] : memref<10x10240xf32, #tpu.memory_space<vmem>>, vector<10x10240xf32>
    %cst_13 = arith.constant dense<0.000000e+00> : vector<1x10xf32>
    %86 = tpu.matmul %84, %85, %cst_13 {dimension_numbers = #tpu.dot_dimension_numbers<[1], [1], [0], [0], [0, 0, 1, 0], [], []>} : vector<1x10240xf32>, vector<10x10240xf32>, vector<1x10xf32> -> vector<1x10xf32>
    %c0_14 = arith.constant 0 : index
    %c0_15 = arith.constant 0 : index
    %87 = vector.load %arg7[%c0_14, %c0_15] : memref<1x10xf32, #tpu.memory_space<vmem>>, vector<1x10xf32>
    %88 = arith.addf %86, %87 : vector<1x10xf32>
    %cst_16 = arith.constant 0.000000e+00 : f32
    %89 = vector.broadcast %cst_16 : f32 to vector<1x10xf32>
    %90 = arith.maximumf %88, %89 : vector<1x10xf32>
    %c0_17 = arith.constant 0 : index
    %c0_18 = arith.constant 0 : index
    %91 = vector.load %arg8[%c0_17, %c0_18] : memref<10x2xf32, #tpu.memory_space<vmem>>, vector<10x2xf32>
    %cst_19 = arith.constant dense<0.000000e+00> : vector<1x2xf32>
    %92 = tpu.matmul %90, %91, %cst_19 {dimension_numbers = #tpu.dot_dimension_numbers<[1], [0], [0], [1], [0, 0, 1, 1], [], []>} : vector<1x10xf32>, vector<10x2xf32>, vector<1x2xf32> -> vector<1x2xf32>
    %c0_20 = arith.constant 0 : index
    %c0_21 = arith.constant 0 : index
    %93 = vector.load %arg9[%c0_20, %c0_21] : memref<1x2xf32, #tpu.memory_space<vmem>>, vector<1x2xf32>
    %94 = arith.addf %92, %93 : vector<1x2xf32>
    %c0_22 = arith.constant 0 : index
    %c0_23 = arith.constant 0 : index
    %c0_24 = arith.constant 0 : index
    %95 = vector.load %arg10[%c0_22, %c0_23, %c0_24] : memref<1x1x2xf32, #tpu.memory_space<vmem>>, vector<1x1x2xf32>
    %96 = vector.shape_cast %95 : vector<1x1x2xf32> to vector<1x2xf32>
    %97 = vector.shape_cast %94 : vector<1x2xf32> to vector<1x1x2xf32>
    tpu.vector_store %arg10[%c0_22, %c0_23, %c0_24], %97 {strides = array<i32>} : memref<1x1x2xf32, #tpu.memory_space<vmem>>, vector<1x1x2xf32>,
    return
  }
  func.func @transform_0(%arg0: i32) -> (i32, i32, i32) {
    %c0_i32 = arith.constant 0 : i32
    %c0_i32_0 = arith.constant 0 : i32
    %c0_i32_1 = arith.constant 0 : i32
    return %arg0, %c0_i32, %c0_i32_0 : i32, i32, i32
  }
  func.func @transform_1(%arg0: i32) -> (i32, i32) {
    %c0_i32 = arith.constant 0 : i32
    %c0_i32_0 = arith.constant 0 : i32
    %c0_i32_1 = arith.constant 0 : i32
    return %c0_i32, %c0_i32_0 : i32, i32
  }
  func.func @transform_2(%arg0: i32) -> (i32, i32) {
    %c0_i32 = arith.constant 0 : i32
    %c0_i32_0 = arith.constant 0 : i32
    %c0_i32_1 = arith.constant 0 : i32
    return %c0_i32, %c0_i32_0 : i32, i32
  }
  func.func @transform_3(%arg0: i32) -> (i32, i32) {
    %c0_i32 = arith.constant 0 : i32
    %c0_i32_0 = arith.constant 0 : i32
    %c0_i32_1 = arith.constant 0 : i32
    return %c0_i32, %c0_i32_0 : i32, i32
  }
  func.func @transform_4(%arg0: i32) -> (i32, i32) {
    %c0_i32 = arith.constant 0 : i32
    %c0_i32_0 = arith.constant 0 : i32
    %c0_i32_1 = arith.constant 0 : i32
    return %c0_i32, %c0_i32_0 : i32, i32
  }
  func.func @transform_5(%arg0: i32) -> (i32, i32) {
    %c0_i32 = arith.constant 0 : i32
    %c0_i32_0 = arith.constant 0 : i32
    %c0_i32_1 = arith.constant 0 : i32
    return %c0_i32, %c0_i32_0 : i32, i32
  }
  func.func @transform_6(%arg0: i32) -> (i32, i32) {
    %c0_i32 = arith.constant 0 : i32
    %c0_i32_0 = arith.constant 0 : i32
    %c0_i32_1 = arith.constant 0 : i32
    return %c0_i32, %c0_i32_0 : i32, i32
  }
  func.func @transform_7(%arg0: i32) -> (i32, i32) {
    %c0_i32 = arith.constant 0 : i32
    %c0_i32_0 = arith.constant 0 : i32
    %c0_i32_1 = arith.constant 0 : i32
    return %c0_i32, %c0_i32_0 : i32, i32
  }
  func.func @transform_8(%arg0: i32) -> (i32, i32) {
    %c0_i32 = arith.constant 0 : i32
    %c0_i32_0 = arith.constant 0 : i32
    %c0_i32_1 = arith.constant 0 : i32
    return %c0_i32, %c0_i32_0 : i32, i32
  }
  func.func @transform_9(%arg0: i32) -> (i32, i32, i32) {
    %c0_i32 = arith.constant 0 : i32
    %c0_i32_0 = arith.constant 0 : i32
    %c0_i32_1 = arith.constant 0 : i32
    return %arg0, %c0_i32, %c0_i32_0 : i32, i32, i32
  }
}

</mosaic_0001>

<llo_original>
// kernel: tweaked_squafra_forward.1
$region0: #{tweaked_squafra_forward.1}
  #allocation0 [shape = 'u32[]', space=smem, size = 0x4, offset = 0x4, fixed_abs, tag = 'smem constant byte address 0x4 - core index']
  #allocation1 [shape = 'u32[72,128]{1,0:T(1,128)}', space=vmem, size = 0x9000, scoped, tag = 'internal scratch']
  %s0 = inlined_call_operand.vmem [shape: f32[2,1,896], index: 0, kind: input, shape index: {}]
  %s1 = inlined_call_operand.vmem [shape: f32[8,25], index: 1, kind: input, shape index: {}]
  %s2 = inlined_call_operand.vmem [shape: f32[8,1], index: 2, kind: input, shape index: {}]
  %s3 = inlined_call_operand.vmem [shape: f32[16,200], index: 3, kind: input, shape index: {}]
  %s4 = inlined_call_operand.vmem [shape: f32[16,1], index: 4, kind: input, shape index: {}]
  %s5 = inlined_call_operand.vmem [shape: f32[10,10240], index: 5, kind: input, shape index: {}]
  %s6 = inlined_call_operand.vmem [shape: f32[1,10], index: 6, kind: input, shape index: {}]
  %s7 = inlined_call_operand.vmem [shape: f32[10,2], index: 7, kind: input, shape index: {}]
  %s8 = inlined_call_operand.vmem [shape: f32[1,2], index: 8, kind: input, shape index: {}]
  %s9 = inlined_call_operand.hbm [shape: f32[2,1,2], index: 9, kind: output, shape index: {}]
  %s10 = sld [smem:[#allocation0]]
  $region69: #{tweaked_squafra_forward.1} parent=0
    _
  %s12 = ssub.s32 1, %s10
  %s13 = scalar_select 0, %s12, %s10
  $region1: #{tweaked_squafra_forward.1} parent=0
    #allocation2 [shape = 'u8[1024]{0}', space=vmem, size = 0x400, scoped, tag = 'output window, operand 0']
    #allocation3 [shape = 's32[2]{0}', space=sflag, size = 0x8, scoped, tag = 'scoped memory for tweaked_squafra_forward.1']
    %14 = vsyncpa [#allocation3], 0
    %s15 = scalar_lea.sflag [#allocation3], 1
    %16 = vsyncpa %s15, 0
    loop: start=0, step=1, limit=4
    $region2: #{tweaked_squafra_forward.1} parent=1 // loop_pre_header
      _
    $region3: #{tweaked_squafra_forward.1} parent=1 // loop_header
      %s18 = sphi 0, %s22
      %p19 = scmp.ge.s32.totalorder %s18, 4
      %s28 = sphi 0, %s30
      %s31 = sphi 0, %s28
      %s32 = sphi 0, %s31
      %s48 = sphi 0, %s32
      %s52 = sphi 0, %s52
      %s54 = sphi 0, %s52
      %s55 = sphi 0, %s54
      %s69 = sphi 0, %s55
      %s73 = sphi 0, %s73
      %s75 = sphi 0, %s73
      %s76 = sphi 0, %s75
      %s90 = sphi 0, %s76
      %s94 = sphi 0, %s94
      %s96 = sphi 0, %s94
      %s97 = sphi 0, %s96
      %s111 = sphi 0, %s97
      %s115 = sphi 0, %s115
      %s117 = sphi 0, %s115
      %s118 = sphi 0, %s117
      %s132 = sphi 0, %s118
      %s136 = sphi 0, %s136
      %s138 = sphi 0, %s136
      %s139 = sphi 0, %s138
      %s153 = sphi 0, %s139
      %s157 = sphi 0, %s157
      %s159 = sphi 0, %s157
      %s160 = sphi 0, %s159
      %s174 = sphi 0, %s160
      %s178 = sphi 0, %s178
      %s180 = sphi 0, %s178
      %s181 = sphi 0, %s180
      %s195 = sphi 0, %s181
      %s199 = sphi 0, %s199
      %s201 = sphi 0, %s199
      %s202 = sphi 0, %s201
      %s216 = sphi 0, %s202
      %s222 = sphi 0, %s224
      %s225 = sphi 0, %s222
      %s226 = sphi 0, %s225
      %s242 = sphi 0, %s226
    $region4: #{tweaked_squafra_forward.1} parent=1 // loop_header_branch
      %21 = sbr.rel (%p19) target = $region8
    $region5: #{tweaked_squafra_forward.1} parent=1 // loop_body
      %s23 = ssub.s32 %s18, 1
      %s24 = ssub.s32 %s18, 2
      %s25 = sadd.s32 %s18, 1
      %s26 = ssub.s32 %s18, %s25
      %p27 = scmp.eq.s32.totalorder %s26, 0
      %s29 = sadd.s32 %s28, 1
      %s30 = scalar_select %p27, %s28, %s29
      %p33 = pneg %p27
      %p34 = scmp.eq.s32.totalorder %s18, 1
      %p35 = por %p33, %p34
      %p36 = scmp.ne.s32.totalorder %s28, %s31
      %p37 = scmp.eq.s32.totalorder %s18, 0
      %p38 = por %p36, %p37
      %p39 = scmp.ne.s32.totalorder %s28, %s31
      %p40 = scmp.eq.s32.totalorder %s23, 1
      %p41 = por %p39, %p40
      %p42 = scmp.ne.s32.totalorder %s31, %s32
      %p43 = scmp.eq.s32.totalorder %s23, 0
      %p44 = por %p42, %p43
      %p45 = scmp.ne.s32.totalorder %s31, %s32
      %p46 = scmp.eq.s32.totalorder %s24, 1
      %p47 = por %p45, %p46
      %p49 = scmp.ne.s32.totalorder %s32, %s48
      %p50 = scmp.eq.s32.totalorder %s24, 0
      %p51 = por %p49, %p50
      %s53 = sadd.s32 %s52, 1
      %p56 = scmp.eq.s32.totalorder %s18, 1
      %p57 = scmp.ne.s32.totalorder %s52, %s54
      %p58 = scmp.eq.s32.totalorder %s18, 0
      %p59 = por %p57, %p58
      %p60 = scmp.ne.s32.totalorder %s52, %s54
      %p61 = scmp.eq.s32.totalorder %s23, 1
      %p62 = por %p60, %p61
      %p63 = scmp.ne.s32.totalorder %s54, %s55
      %p64 = scmp.eq.s32.totalorder %s23, 0
      %p65 = por %p63, %p64
      %p66 = scmp.ne.s32.totalorder %s54, %s55
      %p67 = scmp.eq.s32.totalorder %s24, 1
      %p68 = por %p66, %p67
      %p70 = scmp.ne.s32.totalorder %s55, %s69
      %p71 = scmp.eq.s32.totalorder %s24, 0
      %p72 = por %p70, %p71
      %s74 = sadd.s32 %s73, 1
      %p77 = scmp.eq.s32.totalorder %s18, 1
      %p78 = scmp.ne.s32.totalorder %s73, %s75
      %p79 = scmp.eq.s32.totalorder %s18, 0
      %p80 = por %p78, %p79
      %p81 = scmp.ne.s32.totalorder %s73, %s75
      %p82 = scmp.eq.s32.totalorder %s23, 1
      %p83 = por %p81, %p82
      %p84 = scmp.ne.s32.totalorder %s75, %s76
      %p85 = scmp.eq.s32.totalorder %s23, 0
      %p86 = por %p84, %p85
      %p87 = scmp.ne.s32.totalorder %s75, %s76
      %p88 = scmp.eq.s32.totalorder %s24, 1
      %p89 = por %p87, %p88
      %p91 = scmp.ne.s32.totalorder %s76, %s90
      %p92 = scmp.eq.s32.totalorder %s24, 0
      %p93 = por %p91, %p92
      %s95 = sadd.s32 %s94, 1
      %p98 = scmp.eq.s32.totalorder %s18, 1
      %p99 = scmp.ne.s32.totalorder %s94, %s96
      %p100 = scmp.eq.s32.totalorder %s18, 0
      %p101 = por %p99, %p100
      %p102 = scmp.ne.s32.totalorder %s94, %s96
      %p103 = scmp.eq.s32.totalorder %s23, 1
      %p104 = por %p102, %p103
      %p105 = scmp.ne.s32.totalorder %s96, %s97
      %p106 = scmp.eq.s32.totalorder %s23, 0
      %p107 = por %p105, %p106
      %p108 = scmp.ne.s32.totalorder %s96, %s97
      %p109 = scmp.eq.s32.totalorder %s24, 1
      %p110 = por %p108, %p109
      %p112 = scmp.ne.s32.totalorder %s97, %s111
      %p113 = scmp.eq.s32.totalorder %s24, 0
      %p114 = por %p112, %p113
      %s116 = sadd.s32 %s115, 1
      %p119 = scmp.eq.s32.totalorder %s18, 1
      %p120 = scmp.ne.s32.totalorder %s115, %s117
      %p121 = scmp.eq.s32.totalorder %s18, 0
      %p122 = por %p120, %p121
      %p123 = scmp.ne.s32.totalorder %s115, %s117
      %p124 = scmp.eq.s32.totalorder %s23, 1
      %p125 = por %p123, %p124
      %p126 = scmp.ne.s32.totalorder %s117, %s118
      %p127 = scmp.eq.s32.totalorder %s23, 0
      %p128 = por %p126, %p127
      %p129 = scmp.ne.s32.totalorder %s117, %s118
      %p130 = scmp.eq.s32.totalorder %s24, 1
      %p131 = por %p129, %p130
      %p133 = scmp.ne.s32.totalorder %s118, %s132
      %p134 = scmp.eq.s32.totalorder %s24, 0
      %p135 = por %p133, %p134
      %s137 = sadd.s32 %s136, 1
      %p140 = scmp.eq.s32.totalorder %s18, 1
      %p141 = scmp.ne.s32.totalorder %s136, %s138
      %p142 = scmp.eq.s32.totalorder %s18, 0
      %p143 = por %p141, %p142
      %p144 = scmp.ne.s32.totalorder %s136, %s138
      %p145 = scmp.eq.s32.totalorder %s23, 1
      %p146 = por %p144, %p145
      %p147 = scmp.ne.s32.totalorder %s138, %s139
      %p148 = scmp.eq.s32.totalorder %s23, 0
      %p149 = por %p147, %p148
      %p150 = scmp.ne.s32.totalorder %s138, %s139
      %p151 = scmp.eq.s32.totalorder %s24, 1
      %p152 = por %p150, %p151
      %p154 = scmp.ne.s32.totalorder %s139, %s153
      %p155 = scmp.eq.s32.totalorder %s24, 0
      %p156 = por %p154, %p155
      %s158 = sadd.s32 %s157, 1
      %p161 = scmp.eq.s32.totalorder %s18, 1
      %p162 = scmp.ne.s32.totalorder %s157, %s159
      %p163 = scmp.eq.s32.totalorder %s18, 0
      %p164 = por %p162, %p163
      %p165 = scmp.ne.s32.totalorder %s157, %s159
      %p166 = scmp.eq.s32.totalorder %s23, 1
      %p167 = por %p165, %p166
      %p168 = scmp.ne.s32.totalorder %s159, %s160
      %p169 = scmp.eq.s32.totalorder %s23, 0
      %p170 = por %p168, %p169
      %p171 = scmp.ne.s32.totalorder %s159, %s160
      %p172 = scmp.eq.s32.totalorder %s24, 1
      %p173 = por %p171, %p172
      %p175 = scmp.ne.s32.totalorder %s160, %s174
      %p176 = scmp.eq.s32.totalorder %s24, 0
      %p177 = por %p175, %p176
      %s179 = sadd.s32 %s178, 1
      %p182 = scmp.eq.s32.totalorder %s18, 1
      %p183 = scmp.ne.s32.totalorder %s178, %s180
      %p184 = scmp.eq.s32.totalorder %s18, 0
      %p185 = por %p183, %p184
      %p186 = scmp.ne.s32.totalorder %s178, %s180
      %p187 = scmp.eq.s32.totalorder %s23, 1
      %p188 = por %p186, %p187
      %p189 = scmp.ne.s32.totalorder %s180, %s181
      %p190 = scmp.eq.s32.totalorder %s23, 0
      %p191 = por %p189, %p190
      %p192 = scmp.ne.s32.totalorder %s180, %s181
      %p193 = scmp.eq.s32.totalorder %s24, 1
      %p194 = por %p192, %p193
      %p196 = scmp.ne.s32.totalorder %s181, %s195
      %p197 = scmp.eq.s32.totalorder %s24, 0
      %p198 = por %p196, %p197
      %s200 = sadd.s32 %s199, 1
      %p203 = scmp.eq.s32.totalorder %s18, 1
      %p204 = scmp.ne.s32.totalorder %s199, %s201
      %p205 = scmp.eq.s32.totalorder %s18, 0
      %p206 = por %p204, %p205
      %p207 = scmp.ne.s32.totalorder %s199, %s201
      %p208 = scmp.eq.s32.totalorder %s23, 1
      %p209 = por %p207, %p208
      %p210 = scmp.ne.s32.totalorder %s201, %s202
      %p211 = scmp.eq.s32.totalorder %s23, 0
      %p212 = por %p210, %p211
      %p213 = scmp.ne.s32.totalorder %s201, %s202
      %p214 = scmp.eq.s32.totalorder %s24, 1
      %p215 = por %p213, %p214
      %p217 = scmp.ne.s32.totalorder %s202, %s216
      %p218 = scmp.eq.s32.totalorder %s24, 0
      %p219 = por %p217, %p218
      %s220 = ssub.s32 %s18, %s25
      %p221 = scmp.eq.s32.totalorder %s220, 0
      %s223 = sadd.s32 %s222, 1
      %s224 = scalar_select %p221, %s222, %s223
      %p227 = pneg %p221
      %p228 = scmp.eq.s32.totalorder %s18, 1
      %p229 = por %p227, %p228
      %p230 = scmp.ne.s32.totalorder %s222, %s225
      %p231 = scmp.eq.s32.totalorder %s18, 0
      %p232 = por %p230, %p231
      %p233 = scmp.ne.s32.totalorder %s222, %s225
      %p234 = scmp.eq.s32.totalorder %s23, 1
      %p235 = por %p233, %p234
      %p236 = scmp.ne.s32.totalorder %s225, %s226
      %p237 = scmp.eq.s32.totalorder %s23, 0
      %p238 = por %p236, %p237
      %p239 = scmp.ne.s32.totalorder %s225, %s226
      %p240 = scmp.eq.s32.totalorder %s24, 1
      %p241 = por %p239, %p240
      %p243 = scmp.ne.s32.totalorder %s226, %s242
      %p244 = scmp.eq.s32.totalorder %s24, 0
      %p245 = por %p243, %p244
      %p246 = scmp.le.s32.totalorder 1, %s18
      %p247 = scmp.lt.s32.totalorder %s18, 3
      %p248 = pnand %p246, %p247
      %p249 = pneg %p248
      // Predicated region
      $region9: #{tweaked_squafra_forward.1} parent=5 // pred_check
        _
      $region10: #{tweaked_squafra_forward.1} parent=5 // pred_check_branch
        %251 = sbr.rel (%p248) target = $region12
      $region11: #{tweaked_squafra_forward.1} parent=5 // pred_region
        %s252 = ssub.s32 %s18, 1
        // Predicated region
        $region13: #{tweaked_squafra_forward.1} parent=11 // pred_check
          %p253 = pneg %p65
        $region14: #{tweaked_squafra_forward.1} parent=11 // pred_check_branch
          %255 = sbr.rel (%p253) target = $region16
        $region15: #{tweaked_squafra_forward.1} parent=11 // pred_region
          _
        $region16: #{tweaked_squafra_forward.1} parent=11 // pred_fallthru
          _
        // Predicated region
        $region17: #{tweaked_squafra_forward.1} parent=11 // pred_check
          %p256 = pneg %p86
        $region18: #{tweaked_squafra_forward.1} parent=11 // pred_check_branch
          %258 = sbr.rel (%p256) target = $region20
        $region19: #{tweaked_squafra_forward.1} parent=11 // pred_region
          _
        $region20: #{tweaked_squafra_forward.1} parent=11 // pred_fallthru
          _
        // Predicated region
        $region21: #{tweaked_squafra_forward.1} parent=11 // pred_check
          %p259 = pneg %p107
        $region22: #{tweaked_squafra_forward.1} parent=11 // pred_check_branch
          %261 = sbr.rel (%p259) target = $region24
        $region23: #{tweaked_squafra_forward.1} parent=11 // pred_region
          _
        $region24: #{tweaked_squafra_forward.1} parent=11 // pred_fallthru
          _
        // Predicated region
        $region25: #{tweaked_squafra_forward.1} parent=11 // pred_check
          %p262 = pneg %p128
        $region26: #{tweaked_squafra_forward.1} parent=11 // pred_check_branch
          %264 = sbr.rel (%p262) target = $region28
        $region27: #{tweaked_squafra_forward.1} parent=11 // pred_region
          _
        $region28: #{tweaked_squafra_forward.1} parent=11 // pred_fallthru
          _
        // Predicated region
        $region29: #{tweaked_squafra_forward.1} parent=11 // pred_check
          %p265 = pneg %p149
        $region30: #{tweaked_squafra_forward.1} parent=11 // pred_check_branch
          %267 = sbr.rel (%p265) target = $region32
        $region31: #{tweaked_squafra_forward.1} parent=11 // pred_region
          _
        $region32: #{tweaked_squafra_forward.1} parent=11 // pred_fallthru
          _
        // Predicated region
        $region33: #{tweaked_squafra_forward.1} parent=11 // pred_check
          %p268 = pneg %p170
        $region34: #{tweaked_squafra_forward.1} parent=11 // pred_check_branch
          %270 = sbr.rel (%p268) target = $region36
        $region35: #{tweaked_squafra_forward.1} parent=11 // pred_region
          _
        $region36: #{tweaked_squafra_forward.1} parent=11 // pred_fallthru
          _
        // Predicated region
        $region37: #{tweaked_squafra_forward.1} parent=11 // pred_check
          %p271 = pneg %p191
        $region38: #{tweaked_squafra_forward.1} parent=11 // pred_check_branch
          %273 = sbr.rel (%p271) target = $region40
        $region39: #{tweaked_squafra_forward.1} parent=11 // pred_region
          _
        $region40: #{tweaked_squafra_forward.1} parent=11 // pred_fallthru
          _
        // Predicated region
        $region41: #{tweaked_squafra_forward.1} parent=11 // pred_check
          %p274 = pneg %p212
        $region42: #{tweaked_squafra_forward.1} parent=11 // pred_check_branch
          %276 = sbr.rel (%p274) target = $region44
        $region43: #{tweaked_squafra_forward.1} parent=11 // pred_region
          _
        $region44: #{tweaked_squafra_forward.1} parent=11 // pred_fallthru
          _
      $region12: #{tweaked_squafra_forward.1} parent=5 // pred_fallthru
        _
      %p277 = scmp.lt.s32.totalorder %s18, 2
      // Predicated region
      $region45: #{tweaked_squafra_forward.1} parent=5 // pred_check
        %p278 = pneg %p277
      $region46: #{tweaked_squafra_forward.1} parent=5 // pred_check_branch
        %280 = sbr.rel (%p278) target = $region48
      $region47: #{tweaked_squafra_forward.1} parent=5 // pred_region
        // Predicated region
        $region49: #{tweaked_squafra_forward.1} parent=47 // pred_check
          %p281 = pneg %p38
        $region50: #{tweaked_squafra_forward.1} parent=47 // pred_check_branch
          %283 = sbr.rel (%p281) target = $region52
        $region51: #{tweaked_squafra_forward.1} parent=47 // pred_region
          %p284 = scmp.lt.s32.totalorder %s18, 1
          %s285 = scalar_select %p284, %s18, 1
          %s286 = smul.addr %s285, 7
          %s287 = scalar_lea.vmem %s0, %s286
        $region52: #{tweaked_squafra_forward.1} parent=47 // pred_fallthru
          _
      $region48: #{tweaked_squafra_forward.1} parent=5 // pred_fallthru
        _
      %p288 = scmp.le.s32.totalorder 1, %s18
      %p289 = scmp.lt.s32.totalorder %s18, 3
      %p290 = pnand %p288, %p289
      %p291 = pneg %p290
      // Predicated region
      $region53: #{tweaked_squafra_forward.1} parent=5 // pred_check
        _
      $region54: #{tweaked_squafra_forward.1} parent=5 // pred_check_branch
        %293 = sbr.rel (%p290) target = $region56
      $region55: #{tweaked_squafra_forward.1} parent=5 // pred_region
        %s294 = ssub.s32 %s18, 1
        %p295 = scmp.lt.s32.totalorder %s23, 1
        %s296 = scalar_select %p295, %s23, 1
        %s297 = smul.addr %s296, 7
        %s298 = scalar_lea.vmem %s0, %s297
        %p299 = pneg %p44
        %p300 = pneg %p41
        %p301 = pneg %p65
        %p302 = pneg %p62
        %p303 = pneg %p86
        %p304 = pneg %p83
        %p305 = pneg %p107
        %p306 = pneg %p104
        %p307 = pneg %p128
        %p308 = pneg %p125
        %p309 = pneg %p149
        %p310 = pneg %p146
        %p311 = pneg %p170
        %p312 = pneg %p167
        %p313 = pneg %p191
        %p314 = pneg %p188
        %p315 = pneg %p212
        %p316 = pneg %p209
        %p317 = pneg %p238
        %p318 = pneg %p235
        %s319 = sand.u32 %s225, 1
        %s320 = scalar_lea.sflag [#allocation3], %s319
        %s321 = sand.u32 %s225, 1
        %s322 = scalar_lea.vmem [#allocation2], %s321
        %p323 = scmp.lt.s32.totalorder %s23, 1
        %s324 = scalar_select %p323, %s23, 1
        %s325 = smul.addr %s324, 7
        %s326 = scalar_lea.vmem %s0, %s325
        %v327 = vld [vmem:[%s326] sm:$0xff]
        %v329 = vperm.slane %v327, 0
        %v330 = vperm.slane %v327, 1
        %v331 = vperm.slane %v327, 2
        %v332 = vperm.slane %v327, 3
        %v333 = vperm.slane %v327, 4
        %v334 = vperm.slane %v327, 5
        %v341 = vperm.slane %v327, 6
        %342 = vrot.lane.b32.xlu0 %v329, 127
        %v343 = vpop.permute.xlu0 %342
        %344 = vrot.lane.b32.xlu0 %v330, 127
        %v345 = vpop.permute.xlu0 %344
        %346 = vrot.lane.b32.xlu0 %v331, 127
        %v347 = vpop.permute.xlu0 %346
        %348 = vrot.lane.b32.xlu0 %v332, 127
        %v349 = vpop.permute.xlu0 %348
        %350 = vrot.lane.b32.xlu0 %v333, 127
        %v351 = vpop.permute.xlu0 %350
        %352 = vrot.lane.b32.xlu0 %v334, 127
        %v353 = vpop.permute.xlu0 %352
        %354 = vrot.lane.b32.xlu0 %v341, 127
        %v355 = vpop.permute.xlu0 %354
        %vm356 = vcmask 1039360
        %v357 = vsel %vm356, %v343, %v345
        %v358 = vsel %vm356, %v345, %v347
        %v359 = vsel %vm356, %v347, %v349
        %v360 = vsel %vm356, %v349, %v351
        %v361 = vsel %vm356, %v351, %v353
        %v362 = vsel %vm356, %v353, %v355
        %369 = vrot.lane.b32.xlu0 %v329, 126
        %v370 = vpop.permute.xlu0 %369
        %371 = vrot.lane.b32.xlu0 %v330, 126
        %v372 = vpop.permute.xlu0 %371
        %373 = vrot.lane.b32.xlu0 %v331, 126
        %v374 = vpop.permute.xlu0 %373
        %375 = vrot.lane.b32.xlu0 %v332, 126
        %v376 = vpop.permute.xlu0 %375
        %377 = vrot.lane.b32.xlu0 %v333, 126
        %v378 = vpop.permute.xlu0 %377
        %379 = vrot.lane.b32.xlu0 %v334, 126
        %v380 = vpop.permute.xlu0 %379
        %381 = vrot.lane.b32.xlu0 %v341, 126
        %v382 = vpop.permute.xlu0 %381
        %vm383 = vcmask 1031168
        %v384 = vsel %vm383, %v370, %v372
        %v385 = vsel %vm383, %v372, %v374
        %v386 = vsel %vm383, %v374, %v376
        %v387 = vsel %vm383, %v376, %v378
        %v388 = vsel %vm383, %v378, %v380
        %v389 = vsel %vm383, %v380, %v382
        %396 = vrot.lane.b32.xlu0 %v329, 125
        %v397 = vpop.permute.xlu0 %396
        %398 = vrot.lane.b32.xlu0 %v330, 125
        %v399 = vpop.permute.xlu0 %398
        %400 = vrot.lane.b32.xlu0 %v331, 125
        %v401 = vpop.permute.xlu0 %400
        %402 = vrot.lane.b32.xlu0 %v332, 125
        %v403 = vpop.permute.xlu0 %402
        %404 = vrot.lane.b32.xlu0 %v333, 125
        %v405 = vpop.permute.xlu0 %404
        %406 = vrot.lane.b32.xlu0 %v334, 125
        %v407 = vpop.permute.xlu0 %406
        %408 = vrot.lane.b32.xlu0 %v341, 125
        %v409 = vpop.permute.xlu0 %408
        %vm410 = vcmask 1022976
        %v411 = vsel %vm410, %v397, %v399
        %v412 = vsel %vm410, %v399, %v401
        %v413 = vsel %vm410, %v401, %v403
        %v414 = vsel %vm410, %v403, %v405
        %v415 = vsel %vm410, %v405, %v407
        %v416 = vsel %vm410, %v407, %v409
        %423 = vrot.lane.b32.xlu0 %v329, 124
        %v424 = vpop.permute.xlu0 %423
        %425 = vrot.lane.b32.xlu0 %v330, 124
        %v426 = vpop.permute.xlu0 %425
        %427 = vrot.lane.b32.xlu0 %v331, 124
        %v428 = vpop.permute.xlu0 %427
        %429 = vrot.lane.b32.xlu0 %v332, 124
        %v430 = vpop.permute.xlu0 %429
        %431 = vrot.lane.b32.xlu0 %v333, 124
        %v432 = vpop.permute.xlu0 %431
        %433 = vrot.lane.b32.xlu0 %v334, 124
        %v434 = vpop.permute.xlu0 %433
        %435 = vrot.lane.b32.xlu0 %v341, 124
        %v436 = vpop.permute.xlu0 %435
        %vm437 = vcmask 1014784
        %v438 = vsel %vm437, %v424, %v426
        %v439 = vsel %vm437, %v426, %v428
        %v440 = vsel %vm437, %v428, %v430
        %v441 = vsel %vm437, %v430, %v432
        %v442 = vsel %vm437, %v432, %v434
        %v443 = vsel %vm437, %v434, %v436
        %450 = vrot.lane.b32.xlu0 %v329, 100
        %v451 = vpop.permute.xlu0 %450
        %452 = vrot.lane.b32.xlu0 %v330, 100
        %v453 = vpop.permute.xlu0 %452
        %454 = vrot.lane.b32.xlu0 %v331, 100
        %v455 = vpop.permute.xlu0 %454
        %456 = vrot.lane.b32.xlu0 %v332, 100
        %v457 = vpop.permute.xlu0 %456
        %458 = vrot.lane.b32.xlu0 %v333, 100
        %v459 = vpop.permute.xlu0 %458
        %460 = vrot.lane.b32.xlu0 %v334, 100
        %v461 = vpop.permute.xlu0 %460
        %462 = vrot.lane.b32.xlu0 %v341, 100
        %v463 = vpop.permute.xlu0 %462
        %vm464 = vcmask 818176
        %v465 = vsel %vm464, %v451, %v453
        %v466 = vsel %vm464, %v453, %v455
        %v467 = vsel %vm464, %v455, %v457
        %v468 = vsel %vm464, %v457, %v459
        %v469 = vsel %vm464, %v459, %v461
        %v470 = vsel %vm464, %v461, %v463
        %477 = vrot.lane.b32.xlu0 %v329, 99
        %v478 = vpop.permute.xlu0 %477
        %479 = vrot.lane.b32.xlu0 %v330, 99
        %v480 = vpop.permute.xlu0 %479
        %481 = vrot.lane.b32.xlu0 %v331, 99
        %v482 = vpop.permute.xlu0 %481
        %483 = vrot.lane.b32.xlu0 %v332, 99
        %v484 = vpop.permute.xlu0 %483
        %485 = vrot.lane.b32.xlu0 %v333, 99
        %v486 = vpop.permute.xlu0 %485
        %487 = vrot.lane.b32.xlu0 %v334, 99
        %v488 = vpop.permute.xlu0 %487
        %489 = vrot.lane.b32.xlu0 %v341, 99
        %v490 = vpop.permute.xlu0 %489
        %vm491 = vcmask 809984
        %v492 = vsel %vm491, %v478, %v480
        %v493 = vsel %vm491, %v480, %v482
        %v494 = vsel %vm491, %v482, %v484
        %v495 = vsel %vm491, %v484, %v486
        %v496 = vsel %vm491, %v486, %v488
        %v497 = vsel %vm491, %v488, %v490
        %504 = vrot.lane.b32.xlu0 %v329, 98
        %v505 = vpop.permute.xlu0 %504
        %506 = vrot.lane.b32.xlu0 %v330, 98
        %v507 = vpop.permute.xlu0 %506
        %508 = vrot.lane.b32.xlu0 %v331, 98
        %v509 = vpop.permute.xlu0 %508
        %510 = vrot.lane.b32.xlu0 %v332, 98
        %v511 = vpop.permute.xlu0 %510
        %512 = vrot.lane.b32.xlu0 %v333, 98
        %v513 = vpop.permute.xlu0 %512
        %514 = vrot.lane.b32.xlu0 %v334, 98
        %v515 = vpop.permute.xlu0 %514
        %516 = vrot.lane.b32.xlu0 %v341, 98
        %v517 = vpop.permute.xlu0 %516
        %vm518 = vcmask 801792
        %v519 = vsel %vm518, %v505, %v507
        %v520 = vsel %vm518, %v507, %v509
        %v521 = vsel %vm518, %v509, %v511
        %v522 = vsel %vm518, %v511, %v513
        %v523 = vsel %vm518, %v513, %v515
        %v524 = vsel %vm518, %v515, %v517
        %531 = vrot.lane.b32.xlu0 %v329, 97
        %v532 = vpop.permute.xlu0 %531
        %533 = vrot.lane.b32.xlu0 %v330, 97
        %v534 = vpop.permute.xlu0 %533
        %535 = vrot.lane.b32.xlu0 %v331, 97
        %v536 = vpop.permute.xlu0 %535
        %537 = vrot.lane.b32.xlu0 %v332, 97
        %v538 = vpop.permute.xlu0 %537
        %539 = vrot.lane.b32.xlu0 %v333, 97
        %v540 = vpop.permute.xlu0 %539
        %541 = vrot.lane.b32.xlu0 %v334, 97
        %v542 = vpop.permute.xlu0 %541
        %543 = vrot.lane.b32.xlu0 %v341, 97
        %v544 = vpop.permute.xlu0 %543
        %vm545 = vcmask 793600
        %v546 = vsel %vm545, %v532, %v534
        %v547 = vsel %vm545, %v534, %v536
        %v548 = vsel %vm545, %v536, %v538
        %v549 = vsel %vm545, %v538, %v540
        %v550 = vsel %vm545, %v540, %v542
        %v551 = vsel %vm545, %v542, %v544
        %558 = vrot.lane.b32.xlu0 %v329, 96
        %v559 = vpop.permute.xlu0 %558
        %560 = vrot.lane.b32.xlu0 %v330, 96
        %v561 = vpop.permute.xlu0 %560
        %562 = vrot.lane.b32.xlu0 %v331, 96
        %v563 = vpop.permute.xlu0 %562
        %564 = vrot.lane.b32.xlu0 %v332, 96
        %v565 = vpop.permute.xlu0 %564
        %566 = vrot.lane.b32.xlu0 %v333, 96
        %v567 = vpop.permute.xlu0 %566
        %568 = vrot.lane.b32.xlu0 %v334, 96
        %v569 = vpop.permute.xlu0 %568
        %570 = vrot.lane.b32.xlu0 %v341, 96
        %v571 = vpop.permute.xlu0 %570
        %vm572 = vcmask 785408
        %v573 = vsel %vm572, %v559, %v561
        %v574 = vsel %vm572, %v561, %v563
        %v575 = vsel %vm572, %v563, %v565
        %v576 = vsel %vm572, %v565, %v567
        %v577 = vsel %vm572, %v567, %v569
        %v578 = vsel %vm572, %v569, %v571
        %585 = vrot.lane.b32.xlu0 %v329, 72
        %v586 = vpop.permute.xlu0 %585
        %587 = vrot.lane.b32.xlu0 %v330, 72
        %v588 = vpop.permute.xlu0 %587
        %589 = vrot.lane.b32.xlu0 %v331, 72
        %v590 = vpop.permute.xlu0 %589
        %591 = vrot.lane.b32.xlu0 %v332, 72
        %v592 = vpop.permute.xlu0 %591
        %593 = vrot.lane.b32.xlu0 %v333, 72
        %v594 = vpop.permute.xlu0 %593
        %595 = vrot.lane.b32.xlu0 %v334, 72
        %v596 = vpop.permute.xlu0 %595
        %597 = vrot.lane.b32.xlu0 %v341, 72
        %v598 = vpop.permute.xlu0 %597
        %vm599 = vcmask 588800
        %v600 = vsel %vm599, %v586, %v588
        %v601 = vsel %vm599, %v588, %v590
        %v602 = vsel %vm599, %v590, %v592
        %v603 = vsel %vm599, %v592, %v594
        %v604 = vsel %vm599, %v594, %v596
        %v605 = vsel %vm599, %v596, %v598
        %612 = vrot.lane.b32.xlu0 %v329, 71
        %v613 = vpop.permute.xlu0 %612
        %614 = vrot.lane.b32.xlu0 %v330, 71
        %v615 = vpop.permute.xlu0 %614
        %616 = vrot.lane.b32.xlu0 %v331, 71
        %v617 = vpop.permute.xlu0 %616
        %618 = vrot.lane.b32.xlu0 %v332, 71
        %v619 = vpop.permute.xlu0 %618
        %620 = vrot.lane.b32.xlu0 %v333, 71
        %v621 = vpop.permute.xlu0 %620
        %622 = vrot.lane.b32.xlu0 %v334, 71
        %v623 = vpop.permute.xlu0 %622
        %624 = vrot.lane.b32.xlu0 %v341, 71
        %v625 = vpop.permute.xlu0 %624
        %vm626 = vcmask 580608
        %v627 = vsel %vm626, %v613, %v615
        %v628 = vsel %vm626, %v615, %v617
        %v629 = vsel %vm626, %v617, %v619
        %v630 = vsel %vm626, %v619, %v621
        %v631 = vsel %vm626, %v621, %v623
        %v632 = vsel %vm626, %v623, %v625
        %639 = vrot.lane.b32.xlu0 %v329, 70
        %v640 = vpop.permute.xlu0 %639
        %641 = vrot.lane.b32.xlu0 %v330, 70
        %v642 = vpop.permute.xlu0 %641
        %643 = vrot.lane.b32.xlu0 %v331, 70
        %v644 = vpop.permute.xlu0 %643
        %645 = vrot.lane.b32.xlu0 %v332, 70
        %v646 = vpop.permute.xlu0 %645
        %647 = vrot.lane.b32.xlu0 %v333, 70
        %v648 = vpop.permute.xlu0 %647
        %649 = vrot.lane.b32.xlu0 %v334, 70
        %v650 = vpop.permute.xlu0 %649
        %651 = vrot.lane.b32.xlu0 %v341, 70
        %v652 = vpop.permute.xlu0 %651
        %vm653 = vcmask 572416
        %v654 = vsel %vm653, %v640, %v642
        %v655 = vsel %vm653, %v642, %v644
        %v656 = vsel %vm653, %v644, %v646
        %v657 = vsel %vm653, %v646, %v648
        %v658 = vsel %vm653, %v648, %v650
        %v659 = vsel %vm653, %v650, %v652
        %666 = vrot.lane.b32.xlu0 %v329, 69
        %v667 = vpop.permute.xlu0 %666
        %668 = vrot.lane.b32.xlu0 %v330, 69
        %v669 = vpop.permute.xlu0 %668
        %670 = vrot.lane.b32.xlu0 %v331, 69
        %v671 = vpop.permute.xlu0 %670
        %672 = vrot.lane.b32.xlu0 %v332, 69
        %v673 = vpop.permute.xlu0 %672
        %674 = vrot.lane.b32.xlu0 %v333, 69
        %v675 = vpop.permute.xlu0 %674
        %676 = vrot.lane.b32.xlu0 %v334, 69
        %v677 = vpop.permute.xlu0 %676
        %678 = vrot.lane.b32.xlu0 %v341, 69
        %v679 = vpop.permute.xlu0 %678
        %vm680 = vcmask 564224
        %v681 = vsel %vm680, %v667, %v669
        %v682 = vsel %vm680, %v669, %v671
        %v683 = vsel %vm680, %v671, %v673
        %v684 = vsel %vm680, %v673, %v675
        %v685 = vsel %vm680, %v675, %v677
        %v686 = vsel %vm680, %v677, %v679
        %693 = vrot.lane.b32.xlu0 %v329, 68
        %v694 = vpop.permute.xlu0 %693
        %695 = vrot.lane.b32.xlu0 %v330, 68
        %v696 = vpop.permute.xlu0 %695
        %697 = vrot.lane.b32.xlu0 %v331, 68
        %v698 = vpop.permute.xlu0 %697
        %699 = vrot.lane.b32.xlu0 %v332, 68
        %v700 = vpop.permute.xlu0 %699
        %701 = vrot.lane.b32.xlu0 %v333, 68
        %v702 = vpop.permute.xlu0 %701
        %703 = vrot.lane.b32.xlu0 %v334, 68
        %v704 = vpop.permute.xlu0 %703
        %705 = vrot.lane.b32.xlu0 %v341, 68
        %v706 = vpop.permute.xlu0 %705
        %vm707 = vcmask 556032
        %v708 = vsel %vm707, %v694, %v696
        %v709 = vsel %vm707, %v696, %v698
        %v710 = vsel %vm707, %v698, %v700
        %v711 = vsel %vm707, %v700, %v702
        %v712 = vsel %vm707, %v702, %v704
        %v713 = vsel %vm707, %v704, %v706
        %720 = vrot.lane.b32.xlu0 %v329, 44
        %v721 = vpop.permute.xlu0 %720
        %722 = vrot.lane.b32.xlu0 %v330, 44
        %v723 = vpop.permute.xlu0 %722
        %724 = vrot.lane.b32.xlu0 %v331, 44
        %v725 = vpop.permute.xlu0 %724
        %726 = vrot.lane.b32.xlu0 %v332, 44
        %v727 = vpop.permute.xlu0 %726
        %728 = vrot.lane.b32.xlu0 %v333, 44
        %v729 = vpop.permute.xlu0 %728
        %730 = vrot.lane.b32.xlu0 %v334, 44
        %v731 = vpop.permute.xlu0 %730
        %732 = vrot.lane.b32.xlu0 %v341, 44
        %v733 = vpop.permute.xlu0 %732
        %vm734 = vcmask 359424
        %v735 = vsel %vm734, %v721, %v723
        %v736 = vsel %vm734, %v723, %v725
        %v737 = vsel %vm734, %v725, %v727
        %v738 = vsel %vm734, %v727, %v729
        %v739 = vsel %vm734, %v729, %v731
        %v740 = vsel %vm734, %v731, %v733
        %vm747 = vcmask 1040384
        %v748 = vsel %vm747, %v329, %v357
        %v749 = vsel %vm747, %v330, %v358
        %v750 = vsel %vm747, %v331, %v359
        %v751 = vsel %vm747, %v332, %v360
        %v752 = vsel %vm747, %v333, %v361
        %v753 = vsel %vm747, %v334, %v362
        %vm754 = vcmask 1041408
        %v755 = vsel %vm754, %v748, %v384
        %v756 = vsel %vm754, %v749, %v385
        %v757 = vsel %vm754, %v750, %v386
        %v758 = vsel %vm754, %v751, %v387
        %v759 = vsel %vm754, %v752, %v388
        %v760 = vsel %vm754, %v753, %v389
        %vm761 = vcmask 1042432
        %v762 = vsel %vm761, %v755, %v411
        %v763 = vsel %vm761, %v756, %v412
        %v764 = vsel %vm761, %v757, %v413
        %v765 = vsel %vm761, %v758, %v414
        %v766 = vsel %vm761, %v759, %v415
        %v767 = vsel %vm761, %v760, %v416
        %vm768 = vcmask 1043456
        %v769 = vsel %vm768, %v762, %v438
        %v770 = vsel %vm768, %v763, %v439
        %v771 = vsel %vm768, %v764, %v440
        %v772 = vsel %vm768, %v765, %v441
        %v773 = vsel %vm768, %v766, %v442
        %v774 = vsel %vm768, %v767, %v443
        %vm775 = vcmask 1044480
        %v776 = vsel %vm775, %v769, %v465
        %v777 = vsel %vm775, %v770, %v466
        %v778 = vsel %vm775, %v771, %v467
        %v779 = vsel %vm775, %v772, %v468
        %v780 = vsel %vm775, %v773, %v469
        %v781 = vsel %vm775, %v774, %v470
        %vm782 = vcmask 1045504
        %v783 = vsel %vm782, %v776, %v492
        %v784 = vsel %vm782, %v777, %v493
        %v785 = vsel %vm782, %v778, %v494
        %v786 = vsel %vm782, %v779, %v495
        %v787 = vsel %vm782, %v780, %v496
        %v788 = vsel %vm782, %v781, %v497
        %vm789 = vcmask 1046528
        %v790 = vsel %vm789, %v783, %v519
        %v791 = vsel %vm789, %v784, %v520
        %v792 = vsel %vm789, %v785, %v521
        %v793 = vsel %vm789, %v786, %v522
        %v794 = vsel %vm789, %v787, %v523
        %v795 = vsel %vm789, %v788, %v524
        %v796 = vsel %vm747, %v546, %v573
        %v797 = vsel %vm747, %v547, %v574
        %v798 = vsel %vm747, %v548, %v575
        %v799 = vsel %vm747, %v549, %v576
        %v800 = vsel %vm747, %v550, %v577
        %v801 = vsel %vm747, %v551, %v578
        %v802 = vsel %vm754, %v796, %v600
        %v803 = vsel %vm754, %v797, %v601
        %v804 = vsel %vm754, %v798, %v602
        %v805 = vsel %vm754, %v799, %v603
        %v806 = vsel %vm754, %v800, %v604
        %v807 = vsel %vm754, %v801, %v605
        %v808 = vsel %vm761, %v802, %v627
        %v809 = vsel %vm761, %v803, %v628
        %v810 = vsel %vm761, %v804, %v629
        %v811 = vsel %vm761, %v805, %v630
        %v812 = vsel %vm761, %v806, %v631
        %v813 = vsel %vm761, %v807, %v632
        %v814 = vsel %vm768, %v808, %v654
        %v815 = vsel %vm768, %v809, %v655
        %v816 = vsel %vm768, %v810, %v656
        %v817 = vsel %vm768, %v811, %v657
        %v818 = vsel %vm768, %v812, %v658
        %v819 = vsel %vm768, %v813, %v659
        %v820 = vsel %vm775, %v814, %v681
        %v821 = vsel %vm775, %v815, %v682
        %v822 = vsel %vm775, %v816, %v683
        %v823 = vsel %vm775, %v817, %v684
        %v824 = vsel %vm775, %v818, %v685
        %v825 = vsel %vm775, %v819, %v686
        %v826 = vsel %vm782, %v820, %v708
        %v827 = vsel %vm782, %v821, %v709
        %v828 = vsel %vm782, %v822, %v710
        %v829 = vsel %vm782, %v823, %v711
        %v830 = vsel %vm782, %v824, %v712
        %v831 = vsel %vm782, %v825, %v713
        %v832 = vsel %vm789, %v826, %v735
        %v833 = vsel %vm789, %v827, %v736
        %v834 = vsel %vm789, %v828, %v737
        %v835 = vsel %vm789, %v829, %v738
        %v836 = vsel %vm789, %v830, %v739
        %v837 = vsel %vm789, %v831, %v740
        %842 = vrot.lane.b32.xlu0 %v329, 101
        %v843 = vpop.permute.xlu0 %842
        %844 = vrot.lane.b32.xlu0 %v330, 101
        %v845 = vpop.permute.xlu0 %844
        %846 = vrot.lane.b32.xlu0 %v331, 101
        %v847 = vpop.permute.xlu0 %846
        %848 = vrot.lane.b32.xlu0 %v332, 101
        %v849 = vpop.permute.xlu0 %848
        %850 = vrot.lane.b32.xlu0 %v333, 101
        %v851 = vpop.permute.xlu0 %850
        %852 = vrot.lane.b32.xlu0 %v334, 101
        %v853 = vpop.permute.xlu0 %852
        %854 = vrot.lane.b32.xlu0 %v341, 101
        %v855 = vpop.permute.xlu0 %854
        %vm856 = vcmask 826368
        %v857 = vsel %vm856, %v843, %v845
        %v858 = vsel %vm856, %v845, %v847
        %v859 = vsel %vm856, %v847, %v849
        %v860 = vsel %vm856, %v849, %v851
        %v861 = vsel %vm856, %v851, %v853
        %v862 = vsel %vm856, %v853, %v855
        %v873 = vsel %vm747, %v341, %v355
        %v874 = vsel %vm754, %v873, %v382
        %v875 = vsel %vm761, %v874, %v409
        %v876 = vsel %vm768, %v762, %v857
        %v877 = vsel %vm768, %v763, %v858
        %v878 = vsel %vm768, %v764, %v859
        %v879 = vsel %vm768, %v765, %v860
        %v880 = vsel %vm768, %v766, %v861
        %v881 = vsel %vm768, %v767, %v862
        %v882 = vsel %vm768, %v875, %v855
        %v883 = vsel %vm775, %v876, %v465
        %v884 = vsel %vm775, %v877, %v466
        %v885 = vsel %vm775, %v878, %v467
        %v886 = vsel %vm775, %v879, %v468
        %v887 = vsel %vm775, %v880, %v469
        %v888 = vsel %vm775, %v881, %v470
        %v889 = vsel %vm775, %v882, %v463
        %v890 = vsel %vm782, %v883, %v492
        %v891 = vsel %vm782, %v884, %v493
        %v892 = vsel %vm782, %v885, %v494
        %v893 = vsel %vm782, %v886, %v495
        %v894 = vsel %vm782, %v887, %v496
        %v895 = vsel %vm782, %v888, %v497
        %v896 = vsel %vm782, %v889, %v490
        %v897 = vsel %vm789, %v890, %v519
        %v898 = vsel %vm789, %v891, %v520
        %v899 = vsel %vm789, %v892, %v521
        %v900 = vsel %vm789, %v893, %v522
        %v901 = vsel %vm789, %v894, %v523
        %v902 = vsel %vm789, %v895, %v524
        %v903 = vsel %vm789, %v896, %v517
        %911 = vrot.lane.b32.xlu0 %v897, 43
        %v912 = vpop.permute.xlu0 %911
        %913 = vrot.lane.b32.xlu0 %v898, 43
        %v914 = vpop.permute.xlu0 %913
        %915 = vrot.lane.b32.xlu0 %v899, 43
        %v916 = vpop.permute.xlu0 %915
        %917 = vrot.lane.b32.xlu0 %v900, 43
        %v918 = vpop.permute.xlu0 %917
        %919 = vrot.lane.b32.xlu0 %v901, 43
        %v920 = vpop.permute.xlu0 %919
        %921 = vrot.lane.b32.xlu0 %v902, 43
        %v922 = vpop.permute.xlu0 %921
        %923 = vrot.lane.b32.xlu0 %v903, 43
        %v924 = vpop.permute.xlu0 %923
        %925 = vrot.lane.b32.xlu0 %v546, 43
        %v926 = vpop.permute.xlu0 %925
        %927 = vrot.lane.b32.xlu0 %v547, 43
        %v928 = vpop.permute.xlu0 %927
        %929 = vrot.lane.b32.xlu0 %v548, 43
        %v930 = vpop.permute.xlu0 %929
        %931 = vrot.lane.b32.xlu0 %v549, 43
        %v932 = vpop.permute.xlu0 %931
        %933 = vrot.lane.b32.xlu0 %v550, 43
        %v934 = vpop.permute.xlu0 %933
        %935 = vrot.lane.b32.xlu0 %v551, 43
        %v936 = vpop.permute.xlu0 %935
        %937 = vrot.lane.b32.xlu0 %v544, 43
        %v938 = vpop.permute.xlu0 %937
        %vm939 = vcmask 351232
        %v940 = vsel %vm939, %v912, %v914
        %v941 = vsel %vm939, %v914, %v916
        %v942 = vsel %vm939, %v916, %v918
        %v943 = vsel %vm939, %v918, %v920
        %v944 = vsel %vm939, %v920, %v922
        %v945 = vsel %vm939, %v922, %v924
        %v946 = vsel %vm939, %v926, %v928
        %v947 = vsel %vm939, %v928, %v930
        %v948 = vsel %vm939, %v930, %v932
        %v949 = vsel %vm939, %v932, %v934
        %v950 = vsel %vm939, %v934, %v936
        %v951 = vsel %vm939, %v936, %v938
        %v958 = vld [vmem:[%s1] sm:$0xff]
        %v959 = vld [vmem:[%s2] sm:$0xff]
        %961 = vset.pattern.permute.xlu0 0
        %962 = vperm.xlu0 %961, %v959
        %v963 = vpop.permute.xlu0 %962
        %vm965 = vcmask 203776
        %v967 = vsel %vm965, %v958, 0
        %v969 = vsel %vm747, %v946, 0
        %v971 = vsel %vm747, %v947, 0
        %v973 = vsel %vm747, %v948, 0
        %v975 = vsel %vm747, %v949, 0
        %v977 = vsel %vm747, %v950, 0
        %v979 = vsel %vm747, %v951, 0
        %981 = vmatpush.msra.mxu0 0.0
        %982 = vmatpush.msra.mxu0 0.0
        %983 = vmatpush.msra.mxu0 0.0
        %984 = vmatpush.msra.mxu0 0.0
        %985 = vmatpush.msra.mxu0 0.0
        %986 = vmatpush.msra.mxu0 0.0
        %987 = vmatpush.msra.mxu0 0.0
        %988 = vmatpush.msra.mxu0 0.0
        %989 = vmatpush.msra.mxu0 0.0
        %990 = vmatpush.msra.mxu0 0.0
        %991 = vmatpush.msra.mxu0 0.0
        %992 = vmatpush.msra.mxu0 0.0
        %993 = vmatpush.msra.mxu0 %v969
        %994 = vmatpush.msra.mxu0 %v940
        %995 = vmatpush.msra.mxu0 %v832
        %996 = vmatpush.msra.mxu0 %v790
        %997 = vmatmul.f32.gmra.mxu0 %v967
        %v998 = vpop.f32.mrf.mxu0
        %v999 = vadd.f32 %v963, %v998
        %1000 = vdwg.mxu0
        %1001 = vmatpush.msra.mxu0 0.0
        %1002 = vmatpush.msra.mxu0 0.0
        %1003 = vmatpush.msra.mxu0 0.0
        %1004 = vmatpush.msra.mxu0 0.0
        %1005 = vmatpush.msra.mxu0 0.0
        %1006 = vmatpush.msra.mxu0 0.0
        %1007 = vmatpush.msra.mxu0 0.0
        %1008 = vmatpush.msra.mxu0 0.0
        %1009 = vmatpush.msra.mxu0 0.0
        %1010 = vmatpush.msra.mxu0 0.0
        %1011 = vmatpush.msra.mxu0 0.0
        %1012 = vmatpush.msra.mxu0 0.0
        %1013 = vmatpush.msra.mxu0 %v971
        %1014 = vmatpush.msra.mxu0 %v941
        %1015 = vmatpush.msra.mxu0 %v833
        %1016 = vmatpush.msra.mxu0 %v791
        %1017 = vmatmul.f32.gmra.mxu0 %v967
        %v1018 = vpop.f32.mrf.mxu0
        %v1019 = vadd.f32 %v963, %v1018
        %1020 = vdwg.mxu0
        %1021 = vmatpush.msra.mxu0 0.0
        %1022 = vmatpush.msra.mxu0 0.0
        %1023 = vmatpush.msra.mxu0 0.0
        %1024 = vmatpush.msra.mxu0 0.0
        %1025 = vmatpush.msra.mxu0 0.0
        %1026 = vmatpush.msra.mxu0 0.0
        %1027 = vmatpush.msra.mxu0 0.0
        %1028 = vmatpush.msra.mxu0 0.0
        %1029 = vmatpush.msra.mxu0 0.0
        %1030 = vmatpush.msra.mxu0 0.0
        %1031 = vmatpush.msra.mxu0 0.0
        %1032 = vmatpush.msra.mxu0 0.0
        %1033 = vmatpush.msra.mxu0 %v973
        %1034 = vmatpush.msra.mxu0 %v942
        %1035 = vmatpush.msra.mxu0 %v834
        %1036 = vmatpush.msra.mxu0 %v792
        %1037 = vmatmul.f32.gmra.mxu0 %v967
        %v1038 = vpop.f32.mrf.mxu0
        %v1039 = vadd.f32 %v963, %v1038
        %1040 = vdwg.mxu0
        %1041 = vmatpush.msra.mxu0 0.0
        %1042 = vmatpush.msra.mxu0 0.0
        %1043 = vmatpush.msra.mxu0 0.0
        %1044 = vmatpush.msra.mxu0 0.0
        %1045 = vmatpush.msra.mxu0 0.0
        %1046 = vmatpush.msra.mxu0 0.0
        %1047 = vmatpush.msra.mxu0 0.0
        %1048 = vmatpush.msra.mxu0 0.0
        %1049 = vmatpush.msra.mxu0 0.0
        %1050 = vmatpush.msra.mxu0 0.0
        %1051 = vmatpush.msra.mxu0 0.0
        %1052 = vmatpush.msra.mxu0 0.0
        %1053 = vmatpush.msra.mxu0 %v975
        %1054 = vmatpush.msra.mxu0 %v943
        %1055 = vmatpush.msra.mxu0 %v835
        %1056 = vmatpush.msra.mxu0 %v793
        %1057 = vmatmul.f32.gmra.mxu0 %v967
        %v1058 = vpop.f32.mrf.mxu0
        %v1059 = vadd.f32 %v963, %v1058
        %1060 = vdwg.mxu0
        %1061 = vmatpush.msra.mxu0 0.0
        %1062 = vmatpush.msra.mxu0 0.0
        %1063 = vmatpush.msra.mxu0 0.0
        %1064 = vmatpush.msra.mxu0 0.0
        %1065 = vmatpush.msra.mxu0 0.0
        %1066 = vmatpush.msra.mxu0 0.0
        %1067 = vmatpush.msra.mxu0 0.0
        %1068 = vmatpush.msra.mxu0 0.0
        %1069 = vmatpush.msra.mxu0 0.0
        %1070 = vmatpush.msra.mxu0 0.0
        %1071 = vmatpush.msra.mxu0 0.0
        %1072 = vmatpush.msra.mxu0 0.0
        %1073 = vmatpush.msra.mxu0 %v977
        %1074 = vmatpush.msra.mxu0 %v944
        %1075 = vmatpush.msra.mxu0 %v836
        %1076 = vmatpush.msra.mxu0 %v794
        %1077 = vmatmul.f32.gmra.mxu0 %v967
        %v1078 = vpop.f32.mrf.mxu0
        %v1079 = vadd.f32 %v963, %v1078
        %1080 = vdwg.mxu0
        %1081 = vmatpush.msra.mxu0 0.0
        %1082 = vmatpush.msra.mxu0 0.0
        %1083 = vmatpush.msra.mxu0 0.0
        %1084 = vmatpush.msra.mxu0 0.0
        %1085 = vmatpush.msra.mxu0 0.0
        %1086 = vmatpush.msra.mxu0 0.0
        %1087 = vmatpush.msra.mxu0 0.0
        %1088 = vmatpush.msra.mxu0 0.0
        %1089 = vmatpush.msra.mxu0 0.0
        %1090 = vmatpush.msra.mxu0 0.0
        %1091 = vmatpush.msra.mxu0 0.0
        %1092 = vmatpush.msra.mxu0 0.0
        %1093 = vmatpush.msra.mxu0 %v979
        %1094 = vmatpush.msra.mxu0 %v945
        %1095 = vmatpush.msra.mxu0 %v837
        %1096 = vmatpush.msra.mxu0 %v795
        %1097 = vmatmul.f32.gmra.mxu0 %v967
        %v1098 = vpop.f32.mrf.mxu0
        %v1099 = vadd.f32 %v963, %v1098
        %1100 = vdwg.mxu0
        %1107 = vrot.lane.b32.xlu0 %v999, 127
        %v1108 = vpop.permute.xlu0 %1107
        %1109 = vrot.lane.b32.xlu0 %v1019, 127
        %v1110 = vpop.permute.xlu0 %1109
        %1111 = vrot.lane.b32.xlu0 %v1039, 127
        %v1112 = vpop.permute.xlu0 %1111
        %1113 = vrot.lane.b32.xlu0 %v1059, 127
        %v1114 = vpop.permute.xlu0 %1113
        %1115 = vrot.lane.b32.xlu0 %v1079, 127
        %v1116 = vpop.permute.xlu0 %1115
        %1117 = vrot.lane.b32.xlu0 %v1099, 127
        %v1118 = vpop.permute.xlu0 %1117
        %v1119 = vsel %vm356, %v1108, %v1110
        %v1120 = vsel %vm356, %v1110, %v1112
        %v1121 = vsel %vm356, %v1112, %v1114
        %v1122 = vsel %vm356, %v1114, %v1116
        %v1123 = vsel %vm356, %v1116, %v1118
        %1129 = vrot.lane.b32.xlu0 %v999, 126
        %v1130 = vpop.permute.xlu0 %1129
        %1131 = vrot.lane.b32.xlu0 %v1019, 126
        %v1132 = vpop.permute.xlu0 %1131
        %1133 = vrot.lane.b32.xlu0 %v1039, 126
        %v1134 = vpop.permute.xlu0 %1133
        %1135 = vrot.lane.b32.xlu0 %v1059, 126
        %v1136 = vpop.permute.xlu0 %1135
        %1137 = vrot.lane.b32.xlu0 %v1079, 126
        %v1138 = vpop.permute.xlu0 %1137
        %1139 = vrot.lane.b32.xlu0 %v1099, 126
        %v1140 = vpop.permute.xlu0 %1139
        %v1141 = vsel %vm383, %v1130, %v1132
        %v1142 = vsel %vm383, %v1132, %v1134
        %v1143 = vsel %vm383, %v1134, %v1136
        %v1144 = vsel %vm383, %v1136, %v1138
        %v1145 = vsel %vm383, %v1138, %v1140
        %1151 = vrot.lane.b32.xlu0 %v999, 125
        %v1152 = vpop.permute.xlu0 %1151
        %1153 = vrot.lane.b32.xlu0 %v1019, 125
        %v1154 = vpop.permute.xlu0 %1153
        %1155 = vrot.lane.b32.xlu0 %v1039, 125
        %v1156 = vpop.permute.xlu0 %1155
        %1157 = vrot.lane.b32.xlu0 %v1059, 125
        %v1158 = vpop.permute.xlu0 %1157
        %1159 = vrot.lane.b32.xlu0 %v1079, 125
        %v1160 = vpop.permute.xlu0 %1159
        %1161 = vrot.lane.b32.xlu0 %v1099, 125
        %v1162 = vpop.permute.xlu0 %1161
        %v1163 = vsel %vm410, %v1152, %v1154
        %v1164 = vsel %vm410, %v1154, %v1156
        %v1165 = vsel %vm410, %v1156, %v1158
        %v1166 = vsel %vm410, %v1158, %v1160
        %v1167 = vsel %vm410, %v1160, %v1162
        %1173 = vrot.lane.b32.xlu0 %v999, 124
        %v1174 = vpop.permute.xlu0 %1173
        %1175 = vrot.lane.b32.xlu0 %v1019, 124
        %v1176 = vpop.permute.xlu0 %1175
        %1177 = vrot.lane.b32.xlu0 %v1039, 124
        %v1178 = vpop.permute.xlu0 %1177
        %1179 = vrot.lane.b32.xlu0 %v1059, 124
        %v1180 = vpop.permute.xlu0 %1179
        %1181 = vrot.lane.b32.xlu0 %v1079, 124
        %v1182 = vpop.permute.xlu0 %1181
        %1183 = vrot.lane.b32.xlu0 %v1099, 124
        %v1184 = vpop.permute.xlu0 %1183
        %v1185 = vsel %vm437, %v1174, %v1176
        %v1186 = vsel %vm437, %v1176, %v1178
        %v1187 = vsel %vm437, %v1178, %v1180
        %v1188 = vsel %vm437, %v1180, %v1182
        %v1189 = vsel %vm437, %v1182, %v1184
        %1195 = vrot.lane.b32.xlu0 %v999, 100
        %v1196 = vpop.permute.xlu0 %1195
        %1197 = vrot.lane.b32.xlu0 %v1019, 100
        %v1198 = vpop.permute.xlu0 %1197
        %1199 = vrot.lane.b32.xlu0 %v1039, 100
        %v1200 = vpop.permute.xlu0 %1199
        %1201 = vrot.lane.b32.xlu0 %v1059, 100
        %v1202 = vpop.permute.xlu0 %1201
        %1203 = vrot.lane.b32.xlu0 %v1079, 100
        %v1204 = vpop.permute.xlu0 %1203
        %1205 = vrot.lane.b32.xlu0 %v1099, 100
        %v1206 = vpop.permute.xlu0 %1205
        %v1207 = vsel %vm464, %v1196, %v1198
        %v1208 = vsel %vm464, %v1198, %v1200
        %v1209 = vsel %vm464, %v1200, %v1202
        %v1210 = vsel %vm464, %v1202, %v1204
        %v1211 = vsel %vm464, %v1204, %v1206
        %1217 = vrot.lane.b32.xlu0 %v999, 99
        %v1218 = vpop.permute.xlu0 %1217
        %1219 = vrot.lane.b32.xlu0 %v1019, 99
        %v1220 = vpop.permute.xlu0 %1219
        %1221 = vrot.lane.b32.xlu0 %v1039, 99
        %v1222 = vpop.permute.xlu0 %1221
        %1223 = vrot.lane.b32.xlu0 %v1059, 99
        %v1224 = vpop.permute.xlu0 %1223
        %1225 = vrot.lane.b32.xlu0 %v1079, 99
        %v1226 = vpop.permute.xlu0 %1225
        %1227 = vrot.lane.b32.xlu0 %v1099, 99
        %v1228 = vpop.permute.xlu0 %1227
        %v1229 = vsel %vm491, %v1218, %v1220
        %v1230 = vsel %vm491, %v1220, %v1222
        %v1231 = vsel %vm491, %v1222, %v1224
        %v1232 = vsel %vm491, %v1224, %v1226
        %v1233 = vsel %vm491, %v1226, %v1228
        %1239 = vrot.lane.b32.xlu0 %v999, 98
        %v1240 = vpop.permute.xlu0 %1239
        %1241 = vrot.lane.b32.xlu0 %v1019, 98
        %v1242 = vpop.permute.xlu0 %1241
        %1243 = vrot.lane.b32.xlu0 %v1039, 98
        %v1244 = vpop.permute.xlu0 %1243
        %1245 = vrot.lane.b32.xlu0 %v1059, 98
        %v1246 = vpop.permute.xlu0 %1245
        %1247 = vrot.lane.b32.xlu0 %v1079, 98
        %v1248 = vpop.permute.xlu0 %1247
        %1249 = vrot.lane.b32.xlu0 %v1099, 98
        %v1250 = vpop.permute.xlu0 %1249
        %v1251 = vsel %vm518, %v1240, %v1242
        %v1252 = vsel %vm518, %v1242, %v1244
        %v1253 = vsel %vm518, %v1244, %v1246
        %v1254 = vsel %vm518, %v1246, %v1248
        %v1255 = vsel %vm518, %v1248, %v1250
        %1261 = vrot.lane.b32.xlu0 %v999, 97
        %v1262 = vpop.permute.xlu0 %1261
        %1263 = vrot.lane.b32.xlu0 %v1019, 97
        %v1264 = vpop.permute.xlu0 %1263
        %1265 = vrot.lane.b32.xlu0 %v1039, 97
        %v1266 = vpop.permute.xlu0 %1265
        %1267 = vrot.lane.b32.xlu0 %v1059, 97
        %v1268 = vpop.permute.xlu0 %1267
        %1269 = vrot.lane.b32.xlu0 %v1079, 97
        %v1270 = vpop.permute.xlu0 %1269
        %1271 = vrot.lane.b32.xlu0 %v1099, 97
        %v1272 = vpop.permute.xlu0 %1271
        %v1273 = vsel %vm545, %v1262, %v1264
        %v1274 = vsel %vm545, %v1264, %v1266
        %v1275 = vsel %vm545, %v1266, %v1268
        %v1276 = vsel %vm545, %v1268, %v1270
        %v1277 = vsel %vm545, %v1270, %v1272
        %1283 = vrot.lane.b32.xlu0 %v999, 96
        %v1284 = vpop.permute.xlu0 %1283
        %1285 = vrot.lane.b32.xlu0 %v1019, 96
        %v1286 = vpop.permute.xlu0 %1285
        %1287 = vrot.lane.b32.xlu0 %v1039, 96
        %v1288 = vpop.permute.xlu0 %1287
        %1289 = vrot.lane.b32.xlu0 %v1059, 96
        %v1290 = vpop.permute.xlu0 %1289
        %1291 = vrot.lane.b32.xlu0 %v1079, 96
        %v1292 = vpop.permute.xlu0 %1291
        %1293 = vrot.lane.b32.xlu0 %v1099, 96
        %v1294 = vpop.permute.xlu0 %1293
        %v1295 = vsel %vm572, %v1284, %v1286
        %v1296 = vsel %vm572, %v1286, %v1288
        %v1297 = vsel %vm572, %v1288, %v1290
        %v1298 = vsel %vm572, %v1290, %v1292
        %v1299 = vsel %vm572, %v1292, %v1294
        %1305 = vrot.lane.b32.xlu0 %v999, 72
        %v1306 = vpop.permute.xlu0 %1305
        %1307 = vrot.lane.b32.xlu0 %v1019, 72
        %v1308 = vpop.permute.xlu0 %1307
        %1309 = vrot.lane.b32.xlu0 %v1039, 72
        %v1310 = vpop.permute.xlu0 %1309
        %1311 = vrot.lane.b32.xlu0 %v1059, 72
        %v1312 = vpop.permute.xlu0 %1311
        %1313 = vrot.lane.b32.xlu0 %v1079, 72
        %v1314 = vpop.permute.xlu0 %1313
        %1315 = vrot.lane.b32.xlu0 %v1099, 72
        %v1316 = vpop.permute.xlu0 %1315
        %v1317 = vsel %vm599, %v1306, %v1308
        %v1318 = vsel %vm599, %v1308, %v1310
        %v1319 = vsel %vm599, %v1310, %v1312
        %v1320 = vsel %vm599, %v1312, %v1314
        %v1321 = vsel %vm599, %v1314, %v1316
        %1327 = vrot.lane.b32.xlu0 %v999, 71
        %v1328 = vpop.permute.xlu0 %1327
        %1329 = vrot.lane.b32.xlu0 %v1019, 71
        %v1330 = vpop.permute.xlu0 %1329
        %1331 = vrot.lane.b32.xlu0 %v1039, 71
        %v1332 = vpop.permute.xlu0 %1331
        %1333 = vrot.lane.b32.xlu0 %v1059, 71
        %v1334 = vpop.permute.xlu0 %1333
        %1335 = vrot.lane.b32.xlu0 %v1079, 71
        %v1336 = vpop.permute.xlu0 %1335
        %1337 = vrot.lane.b32.xlu0 %v1099, 71
        %v1338 = vpop.permute.xlu0 %1337
        %v1339 = vsel %vm626, %v1328, %v1330
        %v1340 = vsel %vm626, %v1330, %v1332
        %v1341 = vsel %vm626, %v1332, %v1334
        %v1342 = vsel %vm626, %v1334, %v1336
        %v1343 = vsel %vm626, %v1336, %v1338
        %1349 = vrot.lane.b32.xlu0 %v999, 70
        %v1350 = vpop.permute.xlu0 %1349
        %1351 = vrot.lane.b32.xlu0 %v1019, 70
        %v1352 = vpop.permute.xlu0 %1351
        %1353 = vrot.lane.b32.xlu0 %v1039, 70
        %v1354 = vpop.permute.xlu0 %1353
        %1355 = vrot.lane.b32.xlu0 %v1059, 70
        %v1356 = vpop.permute.xlu0 %1355
        %1357 = vrot.lane.b32.xlu0 %v1079, 70
        %v1358 = vpop.permute.xlu0 %1357
        %1359 = vrot.lane.b32.xlu0 %v1099, 70
        %v1360 = vpop.permute.xlu0 %1359
        %v1361 = vsel %vm653, %v1350, %v1352
        %v1362 = vsel %vm653, %v1352, %v1354
        %v1363 = vsel %vm653, %v1354, %v1356
        %v1364 = vsel %vm653, %v1356, %v1358
        %v1365 = vsel %vm653, %v1358, %v1360
        %1371 = vrot.lane.b32.xlu0 %v999, 69
        %v1372 = vpop.permute.xlu0 %1371
        %1373 = vrot.lane.b32.xlu0 %v1019, 69
        %v1374 = vpop.permute.xlu0 %1373
        %1375 = vrot.lane.b32.xlu0 %v1039, 69
        %v1376 = vpop.permute.xlu0 %1375
        %1377 = vrot.lane.b32.xlu0 %v1059, 69
        %v1378 = vpop.permute.xlu0 %1377
        %1379 = vrot.lane.b32.xlu0 %v1079, 69
        %v1380 = vpop.permute.xlu0 %1379
        %1381 = vrot.lane.b32.xlu0 %v1099, 69
        %v1382 = vpop.permute.xlu0 %1381
        %v1383 = vsel %vm680, %v1372, %v1374
        %v1384 = vsel %vm680, %v1374, %v1376
        %v1385 = vsel %vm680, %v1376, %v1378
        %v1386 = vsel %vm680, %v1378, %v1380
        %v1387 = vsel %vm680, %v1380, %v1382
        %1393 = vrot.lane.b32.xlu0 %v999, 68
        %v1394 = vpop.permute.xlu0 %1393
        %1395 = vrot.lane.b32.xlu0 %v1019, 68
        %v1396 = vpop.permute.xlu0 %1395
        %1397 = vrot.lane.b32.xlu0 %v1039, 68
        %v1398 = vpop.permute.xlu0 %1397
        %1399 = vrot.lane.b32.xlu0 %v1059, 68
        %v1400 = vpop.permute.xlu0 %1399
        %1401 = vrot.lane.b32.xlu0 %v1079, 68
        %v1402 = vpop.permute.xlu0 %1401
        %1403 = vrot.lane.b32.xlu0 %v1099, 68
        %v1404 = vpop.permute.xlu0 %1403
        %v1405 = vsel %vm707, %v1394, %v1396
        %v1406 = vsel %vm707, %v1396, %v1398
        %v1407 = vsel %vm707, %v1398, %v1400
        %v1408 = vsel %vm707, %v1400, %v1402
        %v1409 = vsel %vm707, %v1402, %v1404
        %1415 = vrot.lane.b32.xlu0 %v999, 44
        %v1416 = vpop.permute.xlu0 %1415
        %1417 = vrot.lane.b32.xlu0 %v1019, 44
        %v1418 = vpop.permute.xlu0 %1417
        %1419 = vrot.lane.b32.xlu0 %v1039, 44
        %v1420 = vpop.permute.xlu0 %1419
        %1421 = vrot.lane.b32.xlu0 %v1059, 44
        %v1422 = vpop.permute.xlu0 %1421
        %1423 = vrot.lane.b32.xlu0 %v1079, 44
        %v1424 = vpop.permute.xlu0 %1423
        %1425 = vrot.lane.b32.xlu0 %v1099, 44
        %v1426 = vpop.permute.xlu0 %1425
        %v1427 = vsel %vm734, %v1416, %v1418
        %v1428 = vsel %vm734, %v1418, %v1420
        %v1429 = vsel %vm734, %v1420, %v1422
        %v1430 = vsel %vm734, %v1422, %v1424
        %v1431 = vsel %vm734, %v1424, %v1426
        %1437 = vrot.lane.b32.xlu0 %v999, 101
        %v1438 = vpop.permute.xlu0 %1437
        %1439 = vrot.lane.b32.xlu0 %v1019, 101
        %v1440 = vpop.permute.xlu0 %1439
        %1441 = vrot.lane.b32.xlu0 %v1039, 101
        %v1442 = vpop.permute.xlu0 %1441
        %1443 = vrot.lane.b32.xlu0 %v1059, 101
        %v1444 = vpop.permute.xlu0 %1443
        %1445 = vrot.lane.b32.xlu0 %v1079, 101
        %v1446 = vpop.permute.xlu0 %1445
        %1447 = vrot.lane.b32.xlu0 %v1099, 101
        %v1448 = vpop.permute.xlu0 %1447
        %v1449 = vsel %vm856, %v1438, %v1440
        %v1450 = vsel %vm856, %v1440, %v1442
        %v1451 = vsel %vm856, %v1442, %v1444
        %v1452 = vsel %vm856, %v1444, %v1446
        %v1453 = vsel %vm856, %v1446, %v1448
        %1454 = vrot.lane.b32.xlu0 %v999, 43
        %v1455 = vpop.permute.xlu0 %1454
        %1456 = vrot.lane.b32.xlu0 %v1019, 43
        %v1457 = vpop.permute.xlu0 %1456
        %1458 = vrot.lane.b32.xlu0 %v1039, 43
        %v1459 = vpop.permute.xlu0 %1458
        %1460 = vrot.lane.b32.xlu0 %v1059, 43
        %v1461 = vpop.permute.xlu0 %1460
        %1462 = vrot.lane.b32.xlu0 %v1079, 43
        %v1463 = vpop.permute.xlu0 %1462
        %1464 = vrot.lane.b32.xlu0 %v1099, 43
        %v1465 = vpop.permute.xlu0 %1464
        %1466 = vrot.lane.b32.xlu0 %v1119, 43
        %v1467 = vpop.permute.xlu0 %1466
        %1468 = vrot.lane.b32.xlu0 %v1120, 43
        %v1469 = vpop.permute.xlu0 %1468
        %1470 = vrot.lane.b32.xlu0 %v1121, 43
        %v1471 = vpop.permute.xlu0 %1470
        %1472 = vrot.lane.b32.xlu0 %v1122, 43
        %v1473 = vpop.permute.xlu0 %1472
        %1474 = vrot.lane.b32.xlu0 %v1123, 43
        %v1475 = vpop.permute.xlu0 %1474
        %1476 = vrot.lane.b32.xlu0 %v1118, 43
        %v1477 = vpop.permute.xlu0 %1476
        %1478 = vrot.lane.b32.xlu0 %v1141, 43
        %v1479 = vpop.permute.xlu0 %1478
        %1480 = vrot.lane.b32.xlu0 %v1142, 43
        %v1481 = vpop.permute.xlu0 %1480
        %1482 = vrot.lane.b32.xlu0 %v1143, 43
        %v1483 = vpop.permute.xlu0 %1482
        %1484 = vrot.lane.b32.xlu0 %v1144, 43
        %v1485 = vpop.permute.xlu0 %1484
        %1486 = vrot.lane.b32.xlu0 %v1145, 43
        %v1487 = vpop.permute.xlu0 %1486
        %1488 = vrot.lane.b32.xlu0 %v1140, 43
        %v1489 = vpop.permute.xlu0 %1488
        %1490 = vrot.lane.b32.xlu0 %v1163, 43
        %v1491 = vpop.permute.xlu0 %1490
        %1492 = vrot.lane.b32.xlu0 %v1164, 43
        %v1493 = vpop.permute.xlu0 %1492
        %1494 = vrot.lane.b32.xlu0 %v1165, 43
        %v1495 = vpop.permute.xlu0 %1494
        %1496 = vrot.lane.b32.xlu0 %v1166, 43
        %v1497 = vpop.permute.xlu0 %1496
        %1498 = vrot.lane.b32.xlu0 %v1167, 43
        %v1499 = vpop.permute.xlu0 %1498
        %1500 = vrot.lane.b32.xlu0 %v1162, 43
        %v1501 = vpop.permute.xlu0 %1500
        %1502 = vrot.lane.b32.xlu0 %v1449, 43
        %v1503 = vpop.permute.xlu0 %1502
        %1504 = vrot.lane.b32.xlu0 %v1450, 43
        %v1505 = vpop.permute.xlu0 %1504
        %1506 = vrot.lane.b32.xlu0 %v1451, 43
        %v1507 = vpop.permute.xlu0 %1506
        %1508 = vrot.lane.b32.xlu0 %v1452, 43
        %v1509 = vpop.permute.xlu0 %1508
        %1510 = vrot.lane.b32.xlu0 %v1453, 43
        %v1511 = vpop.permute.xlu0 %1510
        %1512 = vrot.lane.b32.xlu0 %v1448, 43
        %v1513 = vpop.permute.xlu0 %1512
        %1514 = vrot.lane.b32.xlu0 %v1207, 43
        %v1515 = vpop.permute.xlu0 %1514
        %1516 = vrot.lane.b32.xlu0 %v1208, 43
        %v1517 = vpop.permute.xlu0 %1516
        %1518 = vrot.lane.b32.xlu0 %v1209, 43
        %v1519 = vpop.permute.xlu0 %1518
        %1520 = vrot.lane.b32.xlu0 %v1210, 43
        %v1521 = vpop.permute.xlu0 %1520
        %1522 = vrot.lane.b32.xlu0 %v1211, 43
        %v1523 = vpop.permute.xlu0 %1522
        %1524 = vrot.lane.b32.xlu0 %v1206, 43
        %v1525 = vpop.permute.xlu0 %1524
        %1526 = vrot.lane.b32.xlu0 %v1229, 43
        %v1527 = vpop.permute.xlu0 %1526
        %1528 = vrot.lane.b32.xlu0 %v1230, 43
        %v1529 = vpop.permute.xlu0 %1528
        %1530 = vrot.lane.b32.xlu0 %v1231, 43
        %v1531 = vpop.permute.xlu0 %1530
        %1532 = vrot.lane.b32.xlu0 %v1232, 43
        %v1533 = vpop.permute.xlu0 %1532
        %1534 = vrot.lane.b32.xlu0 %v1233, 43
        %v1535 = vpop.permute.xlu0 %1534
        %1536 = vrot.lane.b32.xlu0 %v1228, 43
        %v1537 = vpop.permute.xlu0 %1536
        %1538 = vrot.lane.b32.xlu0 %v1251, 43
        %v1539 = vpop.permute.xlu0 %1538
        %1540 = vrot.lane.b32.xlu0 %v1252, 43
        %v1541 = vpop.permute.xlu0 %1540
        %1542 = vrot.lane.b32.xlu0 %v1253, 43
        %v1543 = vpop.permute.xlu0 %1542
        %1544 = vrot.lane.b32.xlu0 %v1254, 43
        %v1545 = vpop.permute.xlu0 %1544
        %1546 = vrot.lane.b32.xlu0 %v1255, 43
        %v1547 = vpop.permute.xlu0 %1546
        %1548 = vrot.lane.b32.xlu0 %v1250, 43
        %v1549 = vpop.permute.xlu0 %1548
        %1550 = vrot.lane.b32.xlu0 %v1273, 43
        %v1551 = vpop.permute.xlu0 %1550
        %1552 = vrot.lane.b32.xlu0 %v1274, 43
        %v1553 = vpop.permute.xlu0 %1552
        %1554 = vrot.lane.b32.xlu0 %v1275, 43
        %v1555 = vpop.permute.xlu0 %1554
        %1556 = vrot.lane.b32.xlu0 %v1276, 43
        %v1557 = vpop.permute.xlu0 %1556
        %1558 = vrot.lane.b32.xlu0 %v1277, 43
        %v1559 = vpop.permute.xlu0 %1558
        %1560 = vrot.lane.b32.xlu0 %v1272, 43
        %v1561 = vpop.permute.xlu0 %1560
        %v1562 = vsel %vm939, %v1455, %v1457
        %v1563 = vsel %vm939, %v1457, %v1459
        %v1564 = vsel %vm939, %v1459, %v1461
        %v1565 = vsel %vm939, %v1461, %v1463
        %v1566 = vsel %vm939, %v1463, %v1465
        %v1567 = vsel %vm939, %v1467, %v1469
        %v1568 = vsel %vm939, %v1469, %v1471
        %v1569 = vsel %vm939, %v1471, %v1473
        %v1570 = vsel %vm939, %v1473, %v1475
        %v1571 = vsel %vm939, %v1475, %v1477
        %v1572 = vsel %vm939, %v1479, %v1481
        %v1573 = vsel %vm939, %v1481, %v1483
        %v1574 = vsel %vm939, %v1483, %v1485
        %v1575 = vsel %vm939, %v1485, %v1487
        %v1576 = vsel %vm939, %v1487, %v1489
        %v1577 = vsel %vm939, %v1491, %v1493
        %v1578 = vsel %vm939, %v1493, %v1495
        %v1579 = vsel %vm939, %v1495, %v1497
        %v1580 = vsel %vm939, %v1497, %v1499
        %v1581 = vsel %vm939, %v1499, %v1501
        %v1582 = vsel %vm939, %v1503, %v1505
        %v1583 = vsel %vm939, %v1505, %v1507
        %v1584 = vsel %vm939, %v1507, %v1509
        %v1585 = vsel %vm939, %v1509, %v1511
        %v1586 = vsel %vm939, %v1511, %v1513
        %v1587 = vsel %vm939, %v1515, %v1517
        %v1588 = vsel %vm939, %v1517, %v1519
        %v1589 = vsel %vm939, %v1519, %v1521
        %v1590 = vsel %vm939, %v1521, %v1523
        %v1591 = vsel %vm939, %v1523, %v1525
        %v1592 = vsel %vm939, %v1527, %v1529
        %v1593 = vsel %vm939, %v1529, %v1531
        %v1594 = vsel %vm939, %v1531, %v1533
        %v1595 = vsel %vm939, %v1533, %v1535
        %v1596 = vsel %vm939, %v1535, %v1537
        %v1597 = vsel %vm939, %v1539, %v1541
        %v1598 = vsel %vm939, %v1541, %v1543
        %v1599 = vsel %vm939, %v1543, %v1545
        %v1600 = vsel %vm939, %v1545, %v1547
        %v1601 = vsel %vm939, %v1547, %v1549
        %v1602 = vsel %vm939, %v1551, %v1553
        %v1603 = vsel %vm939, %v1553, %v1555
        %v1604 = vsel %vm939, %v1555, %v1557
        %v1605 = vsel %vm939, %v1557, %v1559
        %v1606 = vsel %vm939, %v1559, %v1561
        %v1652 = vld [vmem:[%s3] sm:$0xff]
        %v1653 = vld [vmem:[%s3 + $0x8] sm:$0xff]
        %v1654 = vld [vmem:[%s3 + $0x10] sm:$0xff]
        %v1655 = vld [vmem:[%s3 + $0x18] sm:$0xff]
        %v1656 = vld [vmem:[%s4] sm:$0xff]
        %v1657 = vld [vmem:[%s4 + $0x8] sm:$0xff]
        %1659 = vset.pattern.permute.xlu0 0
        %1660 = vperm.xlu0 %1659, %v1656
        %v1661 = vpop.permute.xlu0 %1660
        %1664 = vset.pattern.permute.xlu0 0
        %1665 = vperm.xlu0 %1664, %v1657
        %v1666 = vpop.permute.xlu0 %1665
        %v1669 = vsel %vm599, %v1653, 0
        %v1672 = vsel %vm599, %v1655, 0
        %1674 = vmatpush.msra.mxu0 %v1427
        %1675 = vmatpush.msra.mxu0 %v1405
        %1676 = vmatpush.msra.mxu0 %v1383
        %1677 = vmatpush.msra.mxu0 %v1361
        %1678 = vmatpush.msra.mxu0 %v1339
        %1679 = vmatpush.msra.mxu0 %v1317
        %1680 = vmatpush.msra.mxu0 %v1295
        %1681 = vmatpush.msra.mxu0 %v1273
        %1682 = vmatpush.msra.mxu0 %v1251
        %1683 = vmatpush.msra.mxu0 %v1229
        %1684 = vmatpush.msra.mxu0 %v1207
        %1685 = vmatpush.msra.mxu0 %v1185
        %1686 = vmatpush.msra.mxu0 %v1163
        %1687 = vmatpush.msra.mxu0 %v1141
        %1688 = vmatpush.msra.mxu0 %v1119
        %1689 = vmatpush.msra.mxu0 %v999
        %1690 = vmatmul.f32.gmra.mxu0 %v1652
        %v1691 = vpop.f32.mrf.mxu0
        %v1692 = vadd.f32 %v1661, %v1691
        %1693 = vmatmul.f32.gmra.mxu0 %v1654
        %v1694 = vpop.f32.mrf.mxu0
        %v1695 = vadd.f32 %v1666, %v1694
        %1696 = vdwg.mxu0
        %1697 = vmatpush.msra.mxu0 0.0
        %1698 = vmatpush.msra.mxu0 0.0
        %1699 = vmatpush.msra.mxu0 0.0
        %1700 = vmatpush.msra.mxu0 0.0
        %1701 = vmatpush.msra.mxu0 0.0
        %1702 = vmatpush.msra.mxu0 0.0
        %1703 = vmatpush.msra.mxu0 0.0
        %1704 = vmatpush.msra.mxu0 %v1602
        %1705 = vmatpush.msra.mxu0 %v1597
        %1706 = vmatpush.msra.mxu0 %v1592
        %1707 = vmatpush.msra.mxu0 %v1587
        %1708 = vmatpush.msra.mxu0 %v1582
        %1709 = vmatpush.msra.mxu0 %v1577
        %1710 = vmatpush.msra.mxu0 %v1572
        %1711 = vmatpush.msra.mxu0 %v1567
        %1712 = vmatpush.msra.mxu0 %v1562
        %1713 = vmatmul.f32.gmra.mxu0 %v1669
        %v1714 = vpop.f32.mrf.mxu0
        %v1715 = vadd.f32 %v1692, %v1714
        %1716 = vmatmul.f32.gmra.mxu0 %v1672
        %v1717 = vpop.f32.mrf.mxu0
        %v1718 = vadd.f32 %v1695, %v1717
        %1719 = vdwg.mxu0
        %1720 = vmatpush.msra.mxu0 %v1428
        %1721 = vmatpush.msra.mxu0 %v1406
        %1722 = vmatpush.msra.mxu0 %v1384
        %1723 = vmatpush.msra.mxu0 %v1362
        %1724 = vmatpush.msra.mxu0 %v1340
        %1725 = vmatpush.msra.mxu0 %v1318
        %1726 = vmatpush.msra.mxu0 %v1296
        %1727 = vmatpush.msra.mxu0 %v1274
        %1728 = vmatpush.msra.mxu0 %v1252
        %1729 = vmatpush.msra.mxu0 %v1230
        %1730 = vmatpush.msra.mxu0 %v1208
        %1731 = vmatpush.msra.mxu0 %v1186
        %1732 = vmatpush.msra.mxu0 %v1164
        %1733 = vmatpush.msra.mxu0 %v1142
        %1734 = vmatpush.msra.mxu0 %v1120
        %1735 = vmatpush.msra.mxu0 %v1019
        %1736 = vmatmul.f32.gmra.mxu0 %v1652
        %v1737 = vpop.f32.mrf.mxu0
        %v1738 = vadd.f32 %v1661, %v1737
        %1739 = vmatmul.f32.gmra.mxu0 %v1654
        %v1740 = vpop.f32.mrf.mxu0
        %v1741 = vadd.f32 %v1666, %v1740
        %1742 = vdwg.mxu0
        %1743 = vmatpush.msra.mxu0 0.0
        %1744 = vmatpush.msra.mxu0 0.0
        %1745 = vmatpush.msra.mxu0 0.0
        %1746 = vmatpush.msra.mxu0 0.0
        %1747 = vmatpush.msra.mxu0 0.0
        %1748 = vmatpush.msra.mxu0 0.0
        %1749 = vmatpush.msra.mxu0 0.0
        %1750 = vmatpush.msra.mxu0 %v1603
        %1751 = vmatpush.msra.mxu0 %v1598
        %1752 = vmatpush.msra.mxu0 %v1593
        %1753 = vmatpush.msra.mxu0 %v1588
        %1754 = vmatpush.msra.mxu0 %v1583
        %1755 = vmatpush.msra.mxu0 %v1578
        %1756 = vmatpush.msra.mxu0 %v1573
        %1757 = vmatpush.msra.mxu0 %v1568
        %1758 = vmatpush.msra.mxu0 %v1563
        %1759 = vmatmul.f32.gmra.mxu0 %v1669
        %v1760 = vpop.f32.mrf.mxu0
        %v1761 = vadd.f32 %v1738, %v1760
        %1762 = vmatmul.f32.gmra.mxu0 %v1672
        %v1763 = vpop.f32.mrf.mxu0
        %v1764 = vadd.f32 %v1741, %v1763
        %1765 = vdwg.mxu0
        %1766 = vmatpush.msra.mxu0 %v1429
        %1767 = vmatpush.msra.mxu0 %v1407
        %1768 = vmatpush.msra.mxu0 %v1385
        %1769 = vmatpush.msra.mxu0 %v1363
        %1770 = vmatpush.msra.mxu0 %v1341
        %1771 = vmatpush.msra.mxu0 %v1319
        %1772 = vmatpush.msra.mxu0 %v1297
        %1773 = vmatpush.msra.mxu0 %v1275
        %1774 = vmatpush.msra.mxu0 %v1253
        %1775 = vmatpush.msra.mxu0 %v1231
        %1776 = vmatpush.msra.mxu0 %v1209
        %1777 = vmatpush.msra.mxu0 %v1187
        %1778 = vmatpush.msra.mxu0 %v1165
        %1779 = vmatpush.msra.mxu0 %v1143
        %1780 = vmatpush.msra.mxu0 %v1121
        %1781 = vmatpush.msra.mxu0 %v1039
        %1782 = vmatmul.f32.gmra.mxu0 %v1652
        %v1783 = vpop.f32.mrf.mxu0
        %v1784 = vadd.f32 %v1661, %v1783
        %1785 = vmatmul.f32.gmra.mxu0 %v1654
        %v1786 = vpop.f32.mrf.mxu0
        %v1787 = vadd.f32 %v1666, %v1786
        %1788 = vdwg.mxu0
        %1789 = vmatpush.msra.mxu0 0.0
        %1790 = vmatpush.msra.mxu0 0.0
        %1791 = vmatpush.msra.mxu0 0.0
        %1792 = vmatpush.msra.mxu0 0.0
        %1793 = vmatpush.msra.mxu0 0.0
        %1794 = vmatpush.msra.mxu0 0.0
        %1795 = vmatpush.msra.mxu0 0.0
        %1796 = vmatpush.msra.mxu0 %v1604
        %1797 = vmatpush.msra.mxu0 %v1599
        %1798 = vmatpush.msra.mxu0 %v1594
        %1799 = vmatpush.msra.mxu0 %v1589
        %1800 = vmatpush.msra.mxu0 %v1584
        %1801 = vmatpush.msra.mxu0 %v1579
        %1802 = vmatpush.msra.mxu0 %v1574
        %1803 = vmatpush.msra.mxu0 %v1569
        %1804 = vmatpush.msra.mxu0 %v1564
        %1805 = vmatmul.f32.gmra.mxu0 %v1669
        %v1806 = vpop.f32.mrf.mxu0
        %v1807 = vadd.f32 %v1784, %v1806
        %1808 = vmatmul.f32.gmra.mxu0 %v1672
        %v1809 = vpop.f32.mrf.mxu0
        %v1810 = vadd.f32 %v1787, %v1809
        %1811 = vdwg.mxu0
        %1812 = vmatpush.msra.mxu0 %v1430
        %1813 = vmatpush.msra.mxu0 %v1408
        %1814 = vmatpush.msra.mxu0 %v1386
        %1815 = vmatpush.msra.mxu0 %v1364
        %1816 = vmatpush.msra.mxu0 %v1342
        %1817 = vmatpush.msra.mxu0 %v1320
        %1818 = vmatpush.msra.mxu0 %v1298
        %1819 = vmatpush.msra.mxu0 %v1276
        %1820 = vmatpush.msra.mxu0 %v1254
        %1821 = vmatpush.msra.mxu0 %v1232
        %1822 = vmatpush.msra.mxu0 %v1210
        %1823 = vmatpush.msra.mxu0 %v1188
        %1824 = vmatpush.msra.mxu0 %v1166
        %1825 = vmatpush.msra.mxu0 %v1144
        %1826 = vmatpush.msra.mxu0 %v1122
        %1827 = vmatpush.msra.mxu0 %v1059
        %1828 = vmatmul.f32.gmra.mxu0 %v1652
        %v1829 = vpop.f32.mrf.mxu0
        %v1830 = vadd.f32 %v1661, %v1829
        %1831 = vmatmul.f32.gmra.mxu0 %v1654
        %v1832 = vpop.f32.mrf.mxu0
        %v1833 = vadd.f32 %v1666, %v1832
        %1834 = vdwg.mxu0
        %1835 = vmatpush.msra.mxu0 0.0
        %1836 = vmatpush.msra.mxu0 0.0
        %1837 = vmatpush.msra.mxu0 0.0
        %1838 = vmatpush.msra.mxu0 0.0
        %1839 = vmatpush.msra.mxu0 0.0
        %1840 = vmatpush.msra.mxu0 0.0
        %1841 = vmatpush.msra.mxu0 0.0
        %1842 = vmatpush.msra.mxu0 %v1605
        %1843 = vmatpush.msra.mxu0 %v1600
        %1844 = vmatpush.msra.mxu0 %v1595
        %1845 = vmatpush.msra.mxu0 %v1590
        %1846 = vmatpush.msra.mxu0 %v1585
        %1847 = vmatpush.msra.mxu0 %v1580
        %1848 = vmatpush.msra.mxu0 %v1575
        %1849 = vmatpush.msra.mxu0 %v1570
        %1850 = vmatpush.msra.mxu0 %v1565
        %1851 = vmatmul.f32.gmra.mxu0 %v1669
        %v1852 = vpop.f32.mrf.mxu0
        %v1853 = vadd.f32 %v1830, %v1852
        %1854 = vmatmul.f32.gmra.mxu0 %v1672
        %v1855 = vpop.f32.mrf.mxu0
        %v1856 = vadd.f32 %v1833, %v1855
        %1857 = vdwg.mxu0
        %1858 = vmatpush.msra.mxu0 %v1431
        %1859 = vmatpush.msra.mxu0 %v1409
        %1860 = vmatpush.msra.mxu0 %v1387
        %1861 = vmatpush.msra.mxu0 %v1365
        %1862 = vmatpush.msra.mxu0 %v1343
        %1863 = vmatpush.msra.mxu0 %v1321
        %1864 = vmatpush.msra.mxu0 %v1299
        %1865 = vmatpush.msra.mxu0 %v1277
        %1866 = vmatpush.msra.mxu0 %v1255
        %1867 = vmatpush.msra.mxu0 %v1233
        %1868 = vmatpush.msra.mxu0 %v1211
        %1869 = vmatpush.msra.mxu0 %v1189
        %1870 = vmatpush.msra.mxu0 %v1167
        %1871 = vmatpush.msra.mxu0 %v1145
        %1872 = vmatpush.msra.mxu0 %v1123
        %1873 = vmatpush.msra.mxu0 %v1079
        %1874 = vmatmul.f32.gmra.mxu0 %v1652
        %v1875 = vpop.f32.mrf.mxu0
        %v1876 = vadd.f32 %v1661, %v1875
        %1877 = vmatmul.f32.gmra.mxu0 %v1654
        %v1878 = vpop.f32.mrf.mxu0
        %v1879 = vadd.f32 %v1666, %v1878
        %1880 = vdwg.mxu0
        %1881 = vmatpush.msra.mxu0 0.0
        %1882 = vmatpush.msra.mxu0 0.0
        %1883 = vmatpush.msra.mxu0 0.0
        %1884 = vmatpush.msra.mxu0 0.0
        %1885 = vmatpush.msra.mxu0 0.0
        %1886 = vmatpush.msra.mxu0 0.0
        %1887 = vmatpush.msra.mxu0 0.0
        %1888 = vmatpush.msra.mxu0 %v1606
        %1889 = vmatpush.msra.mxu0 %v1601
        %1890 = vmatpush.msra.mxu0 %v1596
        %1891 = vmatpush.msra.mxu0 %v1591
        %1892 = vmatpush.msra.mxu0 %v1586
        %1893 = vmatpush.msra.mxu0 %v1581
        %1894 = vmatpush.msra.mxu0 %v1576
        %1895 = vmatpush.msra.mxu0 %v1571
        %1896 = vmatpush.msra.mxu0 %v1566
        %1897 = vmatmul.f32.gmra.mxu0 %v1669
        %v1898 = vpop.f32.mrf.mxu0
        %v1899 = vadd.f32 %v1876, %v1898
        %1900 = vmatmul.f32.gmra.mxu0 %v1672
        %v1901 = vpop.f32.mrf.mxu0
        %v1902 = vadd.f32 %v1879, %v1901
        %1903 = vdwg.mxu0
        %v1909 = vrot.slane %v1715, 1
        %v1910 = vrot.slane %v1761, 1
        %v1911 = vrot.slane %v1807, 1
        %v1912 = vrot.slane %v1853, 1
        %v1913 = vrot.slane %v1899, 1
        %v1919 = vrot.slane %v1715, 2
        %v1920 = vrot.slane %v1761, 2
        %v1921 = vrot.slane %v1807, 2
        %v1922 = vrot.slane %v1853, 2
        %v1923 = vrot.slane %v1899, 2
        %v1929 = vrot.slane %v1715, 3
        %v1930 = vrot.slane %v1761, 3
        %v1931 = vrot.slane %v1807, 3
        %v1932 = vrot.slane %v1853, 3
        %v1933 = vrot.slane %v1899, 3
        %v1939 = vrot.slane %v1715, 4
        %v1940 = vrot.slane %v1761, 4
        %v1941 = vrot.slane %v1807, 4
        %v1942 = vrot.slane %v1853, 4
        %v1943 = vrot.slane %v1899, 4
        %v1949 = vrot.slane %v1715, 5
        %v1950 = vrot.slane %v1761, 5
        %v1951 = vrot.slane %v1807, 5
        %v1952 = vrot.slane %v1853, 5
        %v1953 = vrot.slane %v1899, 5
        %v1959 = vrot.slane %v1715, 6
        %v1960 = vrot.slane %v1761, 6
        %v1961 = vrot.slane %v1807, 6
        %v1962 = vrot.slane %v1853, 6
        %v1963 = vrot.slane %v1899, 6
        %v1969 = vrot.slane %v1715, 7
        %v1970 = vrot.slane %v1761, 7
        %v1971 = vrot.slane %v1807, 7
        %v1972 = vrot.slane %v1853, 7
        %v1973 = vrot.slane %v1899, 7
        %v1984 = vrot.slane %v1718, 1
        %v1985 = vrot.slane %v1764, 1
        %v1986 = vrot.slane %v1810, 1
        %v1987 = vrot.slane %v1856, 1
        %v1988 = vrot.slane %v1902, 1
        %v1994 = vrot.slane %v1718, 2
        %v1995 = vrot.slane %v1764, 2
        %v1996 = vrot.slane %v1810, 2
        %v1997 = vrot.slane %v1856, 2
        %v1998 = vrot.slane %v1902, 2
        %v2004 = vrot.slane %v1718, 3
        %v2005 = vrot.slane %v1764, 3
        %v2006 = vrot.slane %v1810, 3
        %v2007 = vrot.slane %v1856, 3
        %v2008 = vrot.slane %v1902, 3
        %v2014 = vrot.slane %v1718, 4
        %v2015 = vrot.slane %v1764, 4
        %v2016 = vrot.slane %v1810, 4
        %v2017 = vrot.slane %v1856, 4
        %v2018 = vrot.slane %v1902, 4
        %v2024 = vrot.slane %v1718, 5
        %v2025 = vrot.slane %v1764, 5
        %v2026 = vrot.slane %v1810, 5
        %v2027 = vrot.slane %v1856, 5
        %v2028 = vrot.slane %v1902, 5
        %v2034 = vrot.slane %v1718, 6
        %v2035 = vrot.slane %v1764, 6
        %v2036 = vrot.slane %v1810, 6
        %v2037 = vrot.slane %v1856, 6
        %v2038 = vrot.slane %v1902, 6
        %v2044 = vrot.slane %v1718, 7
        %v2045 = vrot.slane %v1764, 7
        %v2046 = vrot.slane %v1810, 7
        %v2047 = vrot.slane %v1856, 7
        %v2048 = vrot.slane %v1902, 7
        %v2054 = vld [vmem:[%s5] sm:$0xff]
        %v2055 = vld [vmem:[%s5 + $0x8] sm:$0xff]
        %v2056 = vld [vmem:[%s5 + $0x10] sm:$0xff]
        %v2057 = vld [vmem:[%s5 + $0x18] sm:$0xff]
        %v2058 = vld [vmem:[%s5 + $0x20] sm:$0xff]
        %v2059 = vld [vmem:[%s5 + $0x28] sm:$0xff]
        %v2060 = vld [vmem:[%s5 + $0x30] sm:$0xff]
        %v2061 = vld [vmem:[%s5 + $0x38] sm:$0xff]
        %v2062 = vld [vmem:[%s5 + $0x40] sm:$0xff]
        %v2063 = vld [vmem:[%s5 + $0x48] sm:$0xff]
        %v2064 = vld [vmem:[%s5 + $0x50] sm:$0xff]
        %v2065 = vld [vmem:[%s5 + $0x58] sm:$0xff]
        %v2066 = vld [vmem:[%s5 + $0x60] sm:$0xff]
        %v2067 = vld [vmem:[%s5 + $0x68] sm:$0xff]
        %v2068 = vld [vmem:[%s5 + $0x70] sm:$0xff]
        %v2069 = vld [vmem:[%s5 + $0x78] sm:$0xff]
        %v2070 = vld [vmem:[%s5 + $0x80] sm:$0xff]
        %v2071 = vld [vmem:[%s5 + $0x88] sm:$0xff]
        %v2072 = vld [vmem:[%s5 + $0x90] sm:$0xff]
        %v2073 = vld [vmem:[%s5 + $0x98] sm:$0xff]
        %v2074 = vld [vmem:[%s5 + $0xa0] sm:$0xff]
        %v2075 = vld [vmem:[%s5 + $0xa8] sm:$0xff]
        %v2076 = vld [vmem:[%s5 + $0xb0] sm:$0xff]
        %v2077 = vld [vmem:[%s5 + $0xb8] sm:$0xff]
        %v2078 = vld [vmem:[%s5 + $0xc0] sm:$0xff]
        %v2079 = vld [vmem:[%s5 + $0xc8] sm:$0xff]
        %v2080 = vld [vmem:[%s5 + $0xd0] sm:$0xff]
        %v2081 = vld [vmem:[%s5 + $0xd8] sm:$0xff]
        %v2082 = vld [vmem:[%s5 + $0xe0] sm:$0xff]
        %v2083 = vld [vmem:[%s5 + $0xe8] sm:$0xff]
        %v2084 = vld [vmem:[%s5 + $0xf0] sm:$0xff]
        %v2085 = vld [vmem:[%s5 + $0xf8] sm:$0xff]
        %v2086 = vld [vmem:[%s5 + $0x100] sm:$0xff]
        %v2087 = vld [vmem:[%s5 + $0x108] sm:$0xff]
        %v2088 = vld [vmem:[%s5 + $0x110] sm:$0xff]
        %v2089 = vld [vmem:[%s5 + $0x118] sm:$0xff]
        %v2090 = vld [vmem:[%s5 + $0x120] sm:$0xff]
        %v2091 = vld [vmem:[%s5 + $0x128] sm:$0xff]
        %v2092 = vld [vmem:[%s5 + $0x130] sm:$0xff]
        %v2093 = vld [vmem:[%s5 + $0x138] sm:$0xff]
        %v2094 = vld [vmem:[%s5 + $0x140] sm:$0xff]
        %v2095 = vld [vmem:[%s5 + $0x148] sm:$0xff]
        %v2096 = vld [vmem:[%s5 + $0x150] sm:$0xff]
        %v2097 = vld [vmem:[%s5 + $0x158] sm:$0xff]
        %v2098 = vld [vmem:[%s5 + $0x160] sm:$0xff]
        %v2099 = vld [vmem:[%s5 + $0x168] sm:$0xff]
        %v2100 = vld [vmem:[%s5 + $0x170] sm:$0xff]
        %v2101 = vld [vmem:[%s5 + $0x178] sm:$0xff]
        %v2102 = vld [vmem:[%s5 + $0x180] sm:$0xff]
        %v2103 = vld [vmem:[%s5 + $0x188] sm:$0xff]
        %v2104 = vld [vmem:[%s5 + $0x190] sm:$0xff]
        %v2105 = vld [vmem:[%s5 + $0x198] sm:$0xff]
        %v2106 = vld [vmem:[%s5 + $0x1a0] sm:$0xff]
        %v2107 = vld [vmem:[%s5 + $0x1a8] sm:$0xff]
        %v2108 = vld [vmem:[%s5 + $0x1b0] sm:$0xff]
        %v2109 = vld [vmem:[%s5 + $0x1b8] sm:$0xff]
        %v2110 = vld [vmem:[%s5 + $0x1c0] sm:$0xff]
        %v2111 = vld [vmem:[%s5 + $0x1c8] sm:$0xff]
        %v2112 = vld [vmem:[%s5 + $0x1d0] sm:$0xff]
        %v2113 = vld [vmem:[%s5 + $0x1d8] sm:$0xff]
        %v2114 = vld [vmem:[%s5 + $0x1e0] sm:$0xff]
        %v2115 = vld [vmem:[%s5 + $0x1e8] sm:$0xff]
        %v2116 = vld [vmem:[%s5 + $0x1f0] sm:$0xff]
        %v2117 = vld [vmem:[%s5 + $0x1f8] sm:$0xff]
        %v2118 = vld [vmem:[%s5 + $0x200] sm:$0xff]
        %v2119 = vld [vmem:[%s5 + $0x208] sm:$0xff]
        %v2120 = vld [vmem:[%s5 + $0x210] sm:$0xff]
        %v2121 = vld [vmem:[%s5 + $0x218] sm:$0xff]
        %v2122 = vld [vmem:[%s5 + $0x220] sm:$0xff]
        %v2123 = vld [vmem:[%s5 + $0x228] sm:$0xff]
        %v2124 = vld [vmem:[%s5 + $0x230] sm:$0xff]
        %v2125 = vld [vmem:[%s5 + $0x238] sm:$0xff]
        %v2126 = vld [vmem:[%s5 + $0x240] sm:$0xff]
        %v2127 = vld [vmem:[%s5 + $0x248] sm:$0xff]
        %v2128 = vld [vmem:[%s5 + $0x250] sm:$0xff]
        %v2129 = vld [vmem:[%s5 + $0x258] sm:$0xff]
        %v2130 = vld [vmem:[%s5 + $0x260] sm:$0xff]
        %v2131 = vld [vmem:[%s5 + $0x268] sm:$0xff]
        %v2132 = vld [vmem:[%s5 + $0x270] sm:$0xff]
        %v2133 = vld [vmem:[%s5 + $0x278] sm:$0xff]
        %v2134 = vld [vmem:[%s5 + $0x280] sm:$0x3]
        %v2135 = vld [vmem:[%s5 + $0x288] sm:$0x3]
        %v2136 = vld [vmem:[%s5 + $0x290] sm:$0x3]
        %v2137 = vld [vmem:[%s5 + $0x298] sm:$0x3]
        %v2138 = vld [vmem:[%s5 + $0x2a0] sm:$0x3]
        %v2139 = vld [vmem:[%s5 + $0x2a8] sm:$0x3]
        %v2140 = vld [vmem:[%s5 + $0x2b0] sm:$0x3]
        %v2141 = vld [vmem:[%s5 + $0x2b8] sm:$0x3]
        %v2142 = vld [vmem:[%s5 + $0x2c0] sm:$0x3]
        %v2143 = vld [vmem:[%s5 + $0x2c8] sm:$0x3]
        %v2144 = vld [vmem:[%s5 + $0x2d0] sm:$0x3]
        %v2145 = vld [vmem:[%s5 + $0x2d8] sm:$0x3]
        %v2146 = vld [vmem:[%s5 + $0x2e0] sm:$0x3]
        %v2147 = vld [vmem:[%s5 + $0x2e8] sm:$0x3]
        %v2148 = vld [vmem:[%s5 + $0x2f0] sm:$0x3]
        %v2149 = vld [vmem:[%s5 + $0x2f8] sm:$0x3]
        %v2150 = vld [vmem:[%s5 + $0x300] sm:$0x3]
        %v2151 = vld [vmem:[%s5 + $0x308] sm:$0x3]
        %v2152 = vld [vmem:[%s5 + $0x310] sm:$0x3]
        %v2153 = vld [vmem:[%s5 + $0x318] sm:$0x3]
        %v2154 = vld [vmem:[%s5 + $0x320] sm:$0x3]
        %v2155 = vld [vmem:[%s5 + $0x328] sm:$0x3]
        %v2156 = vld [vmem:[%s5 + $0x330] sm:$0x3]
        %v2157 = vld [vmem:[%s5 + $0x338] sm:$0x3]
        %v2158 = vld [vmem:[%s5 + $0x340] sm:$0x3]
        %v2159 = vld [vmem:[%s5 + $0x348] sm:$0x3]
        %v2160 = vld [vmem:[%s5 + $0x350] sm:$0x3]
        %v2161 = vld [vmem:[%s5 + $0x358] sm:$0x3]
        %v2162 = vld [vmem:[%s5 + $0x360] sm:$0x3]
        %v2163 = vld [vmem:[%s5 + $0x368] sm:$0x3]
        %v2164 = vld [vmem:[%s5 + $0x370] sm:$0x3]
        %v2165 = vld [vmem:[%s5 + $0x378] sm:$0x3]
        %v2166 = vld [vmem:[%s5 + $0x380] sm:$0x3]
        %v2167 = vld [vmem:[%s5 + $0x388] sm:$0x3]
        %v2168 = vld [vmem:[%s5 + $0x390] sm:$0x3]
        %v2169 = vld [vmem:[%s5 + $0x398] sm:$0x3]
        %v2170 = vld [vmem:[%s5 + $0x3a0] sm:$0x3]
        %v2171 = vld [vmem:[%s5 + $0x3a8] sm:$0x3]
        %v2172 = vld [vmem:[%s5 + $0x3b0] sm:$0x3]
        %v2173 = vld [vmem:[%s5 + $0x3b8] sm:$0x3]
        %v2174 = vld [vmem:[%s5 + $0x3c0] sm:$0x3]
        %v2175 = vld [vmem:[%s5 + $0x3c8] sm:$0x3]
        %v2176 = vld [vmem:[%s5 + $0x3d0] sm:$0x3]
        %v2177 = vld [vmem:[%s5 + $0x3d8] sm:$0x3]
        %v2178 = vld [vmem:[%s5 + $0x3e0] sm:$0x3]
        %v2179 = vld [vmem:[%s5 + $0x3e8] sm:$0x3]
        %v2180 = vld [vmem:[%s5 + $0x3f0] sm:$0x3]
        %v2181 = vld [vmem:[%s5 + $0x3f8] sm:$0x3]
        %v2182 = vld [vmem:[%s5 + $0x400] sm:$0x3]
        %v2183 = vld [vmem:[%s5 + $0x408] sm:$0x3]
        %v2184 = vld [vmem:[%s5 + $0x410] sm:$0x3]
        %v2185 = vld [vmem:[%s5 + $0x418] sm:$0x3]
        %v2186 = vld [vmem:[%s5 + $0x420] sm:$0x3]
        %v2187 = vld [vmem:[%s5 + $0x428] sm:$0x3]
        %v2188 = vld [vmem:[%s5 + $0x430] sm:$0x3]
        %v2189 = vld [vmem:[%s5 + $0x438] sm:$0x3]
        %v2190 = vld [vmem:[%s5 + $0x440] sm:$0x3]
        %v2191 = vld [vmem:[%s5 + $0x448] sm:$0x3]
        %v2192 = vld [vmem:[%s5 + $0x450] sm:$0x3]
        %v2193 = vld [vmem:[%s5 + $0x458] sm:$0x3]
        %v2194 = vld [vmem:[%s5 + $0x460] sm:$0x3]
        %v2195 = vld [vmem:[%s5 + $0x468] sm:$0x3]
        %v2196 = vld [vmem:[%s5 + $0x470] sm:$0x3]
        %v2197 = vld [vmem:[%s5 + $0x478] sm:$0x3]
        %v2198 = vld [vmem:[%s5 + $0x480] sm:$0x3]
        %v2199 = vld [vmem:[%s5 + $0x488] sm:$0x3]
        %v2200 = vld [vmem:[%s5 + $0x490] sm:$0x3]
        %v2201 = vld [vmem:[%s5 + $0x498] sm:$0x3]
        %v2202 = vld [vmem:[%s5 + $0x4a0] sm:$0x3]
        %v2203 = vld [vmem:[%s5 + $0x4a8] sm:$0x3]
        %v2204 = vld [vmem:[%s5 + $0x4b0] sm:$0x3]
        %v2205 = vld [vmem:[%s5 + $0x4b8] sm:$0x3]
        %v2206 = vld [vmem:[%s5 + $0x4c0] sm:$0x3]
        %v2207 = vld [vmem:[%s5 + $0x4c8] sm:$0x3]
        %v2208 = vld [vmem:[%s5 + $0x4d0] sm:$0x3]
        %v2209 = vld [vmem:[%s5 + $0x4d8] sm:$0x3]
        %v2210 = vld [vmem:[%s5 + $0x4e0] sm:$0x3]
        %v2211 = vld [vmem:[%s5 + $0x4e8] sm:$0x3]
        %v2212 = vld [vmem:[%s5 + $0x4f0] sm:$0x3]
        %v2213 = vld [vmem:[%s5 + $0x4f8] sm:$0x3]
        %v2214 = vld [vmem:[%s6] sm:$0x1]
        %2215 = vmatpush.xpose.msra.mxu0 0.0
        %2216 = vmatpush.xpose.msra.mxu0 0.0
        %2217 = vmatpush.xpose.msra.mxu0 0.0
        %2218 = vmatpush.xpose.msra.mxu0 0.0
        %2219 = vmatpush.xpose.msra.mxu0 0.0
        %2220 = vmatpush.xpose.msra.mxu0 0.0
        %2221 = vmatpush.xpose.msra.mxu0 0.0
        %2222 = vmatpush.xpose.msra.mxu0 0.0
        %2223 = vmatpush.xpose.msra.mxu0 0.0
        %2224 = vmatpush.xpose.msra.mxu0 0.0
        %2225 = vmatpush.xpose.msra.mxu0 0.0
        %2226 = vmatpush.xpose.msra.mxu0 0.0
        %2227 = vmatpush.xpose.msra.mxu0 0.0
        %2228 = vmatpush.xpose.msra.mxu0 0.0
        %2229 = vmatpush.xpose.msra.mxu0 %v2134
        %2230 = vmatpush.xpose.msra.mxu0 %v2054
        %2231 = vmatmul.f32.gmra.mxu0 %v1715
        %v2232 = vpop.f32.mrf.mxu0
        %v2233 = vadd.f32 %v2214, %v2232
        %2234 = vdwg.mxu0
        %2235 = vmatpush.xpose.msra.mxu0 0.0
        %2236 = vmatpush.xpose.msra.mxu0 0.0
        %2237 = vmatpush.xpose.msra.mxu0 0.0
        %2238 = vmatpush.xpose.msra.mxu0 0.0
        %2239 = vmatpush.xpose.msra.mxu0 0.0
        %2240 = vmatpush.xpose.msra.mxu0 0.0
        %2241 = vmatpush.xpose.msra.mxu0 0.0
        %2242 = vmatpush.xpose.msra.mxu0 0.0
        %2243 = vmatpush.xpose.msra.mxu0 0.0
        %2244 = vmatpush.xpose.msra.mxu0 0.0
        %2245 = vmatpush.xpose.msra.mxu0 0.0
        %2246 = vmatpush.xpose.msra.mxu0 0.0
        %2247 = vmatpush.xpose.msra.mxu0 0.0
        %2248 = vmatpush.xpose.msra.mxu0 0.0
        %2249 = vmatpush.xpose.msra.mxu0 %v2135
        %2250 = vmatpush.xpose.msra.mxu0 %v2055
        %2251 = vmatmul.f32.gmra.mxu0 %v1761
        %v2252 = vpop.f32.mrf.mxu0
        %v2253 = vadd.f32 %v2233, %v2252
        %2254 = vdwg.mxu0
        %2255 = vmatpush.xpose.msra.mxu0 0.0
        %2256 = vmatpush.xpose.msra.mxu0 0.0
        %2257 = vmatpush.xpose.msra.mxu0 0.0
        %2258 = vmatpush.xpose.msra.mxu0 0.0
        %2259 = vmatpush.xpose.msra.mxu0 0.0
        %2260 = vmatpush.xpose.msra.mxu0 0.0
        %2261 = vmatpush.xpose.msra.mxu0 0.0
        %2262 = vmatpush.xpose.msra.mxu0 0.0
        %2263 = vmatpush.xpose.msra.mxu0 0.0
        %2264 = vmatpush.xpose.msra.mxu0 0.0
        %2265 = vmatpush.xpose.msra.mxu0 0.0
        %2266 = vmatpush.xpose.msra.mxu0 0.0
        %2267 = vmatpush.xpose.msra.mxu0 0.0
        %2268 = vmatpush.xpose.msra.mxu0 0.0
        %2269 = vmatpush.xpose.msra.mxu0 %v2136
        %2270 = vmatpush.xpose.msra.mxu0 %v2056
        %2271 = vmatmul.f32.gmra.mxu0 %v1807
        %v2272 = vpop.f32.mrf.mxu0
        %v2273 = vadd.f32 %v2253, %v2272
        %2274 = vdwg.mxu0
        %2275 = vmatpush.xpose.msra.mxu0 0.0
        %2276 = vmatpush.xpose.msra.mxu0 0.0
        %2277 = vmatpush.xpose.msra.mxu0 0.0
        %2278 = vmatpush.xpose.msra.mxu0 0.0
        %2279 = vmatpush.xpose.msra.mxu0 0.0
        %2280 = vmatpush.xpose.msra.mxu0 0.0
        %2281 = vmatpush.xpose.msra.mxu0 0.0
        %2282 = vmatpush.xpose.msra.mxu0 0.0
        %2283 = vmatpush.xpose.msra.mxu0 0.0
        %2284 = vmatpush.xpose.msra.mxu0 0.0
        %2285 = vmatpush.xpose.msra.mxu0 0.0
        %2286 = vmatpush.xpose.msra.mxu0 0.0
        %2287 = vmatpush.xpose.msra.mxu0 0.0
        %2288 = vmatpush.xpose.msra.mxu0 0.0
        %2289 = vmatpush.xpose.msra.mxu0 %v2137
        %2290 = vmatpush.xpose.msra.mxu0 %v2057
        %2291 = vmatmul.f32.gmra.mxu0 %v1853
        %v2292 = vpop.f32.mrf.mxu0
        %v2293 = vadd.f32 %v2273, %v2292
        %2294 = vdwg.mxu0
        %2295 = vmatpush.xpose.msra.mxu0 0.0
        %2296 = vmatpush.xpose.msra.mxu0 0.0
        %2297 = vmatpush.xpose.msra.mxu0 0.0
        %2298 = vmatpush.xpose.msra.mxu0 0.0
        %2299 = vmatpush.xpose.msra.mxu0 0.0
        %2300 = vmatpush.xpose.msra.mxu0 0.0
        %2301 = vmatpush.xpose.msra.mxu0 0.0
        %2302 = vmatpush.xpose.msra.mxu0 0.0
        %2303 = vmatpush.xpose.msra.mxu0 0.0
        %2304 = vmatpush.xpose.msra.mxu0 0.0
        %2305 = vmatpush.xpose.msra.mxu0 0.0
        %2306 = vmatpush.xpose.msra.mxu0 0.0
        %2307 = vmatpush.xpose.msra.mxu0 0.0
        %2308 = vmatpush.xpose.msra.mxu0 0.0
        %2309 = vmatpush.xpose.msra.mxu0 %v2138
        %2310 = vmatpush.xpose.msra.mxu0 %v2058
        %2311 = vmatmul.f32.gmra.mxu0 %v1899
        %v2312 = vpop.f32.mrf.mxu0
        %v2313 = vadd.f32 %v2293, %v2312
        %2314 = vdwg.mxu0
        %2315 = vmatpush.xpose.msra.mxu0 0.0
        %2316 = vmatpush.xpose.msra.mxu0 0.0
        %2317 = vmatpush.xpose.msra.mxu0 0.0
        %2318 = vmatpush.xpose.msra.mxu0 0.0
        %2319 = vmatpush.xpose.msra.mxu0 0.0
        %2320 = vmatpush.xpose.msra.mxu0 0.0
        %2321 = vmatpush.xpose.msra.mxu0 0.0
        %2322 = vmatpush.xpose.msra.mxu0 0.0
        %2323 = vmatpush.xpose.msra.mxu0 0.0
        %2324 = vmatpush.xpose.msra.mxu0 0.0
        %2325 = vmatpush.xpose.msra.mxu0 0.0
        %2326 = vmatpush.xpose.msra.mxu0 0.0
        %2327 = vmatpush.xpose.msra.mxu0 0.0
        %2328 = vmatpush.xpose.msra.mxu0 0.0
        %2329 = vmatpush.xpose.msra.mxu0 %v2139
        %2330 = vmatpush.xpose.msra.mxu0 %v2059
        %2331 = vmatmul.f32.gmra.mxu0 %v1909
        %v2332 = vpop.f32.mrf.mxu0
        %v2333 = vadd.f32 %v2313, %v2332
        %2334 = vdwg.mxu0
        %2335 = vmatpush.xpose.msra.mxu0 0.0
        %2336 = vmatpush.xpose.msra.mxu0 0.0
        %2337 = vmatpush.xpose.msra.mxu0 0.0
        %2338 = vmatpush.xpose.msra.mxu0 0.0
        %2339 = vmatpush.xpose.msra.mxu0 0.0
        %2340 = vmatpush.xpose.msra.mxu0 0.0
        %2341 = vmatpush.xpose.msra.mxu0 0.0
        %2342 = vmatpush.xpose.msra.mxu0 0.0
        %2343 = vmatpush.xpose.msra.mxu0 0.0
        %2344 = vmatpush.xpose.msra.mxu0 0.0
        %2345 = vmatpush.xpose.msra.mxu0 0.0
        %2346 = vmatpush.xpose.msra.mxu0 0.0
        %2347 = vmatpush.xpose.msra.mxu0 0.0
        %2348 = vmatpush.xpose.msra.mxu0 0.0
        %2349 = vmatpush.xpose.msra.mxu0 %v2140
        %2350 = vmatpush.xpose.msra.mxu0 %v2060
        %2351 = vmatmul.f32.gmra.mxu0 %v1910
        %v2352 = vpop.f32.mrf.mxu0
        %v2353 = vadd.f32 %v2333, %v2352
        %2354 = vdwg.mxu0
        %2355 = vmatpush.xpose.msra.mxu0 0.0
        %2356 = vmatpush.xpose.msra.mxu0 0.0
        %2357 = vmatpush.xpose.msra.mxu0 0.0
        %2358 = vmatpush.xpose.msra.mxu0 0.0
        %2359 = vmatpush.xpose.msra.mxu0 0.0
        %2360 = vmatpush.xpose.msra.mxu0 0.0
        %2361 = vmatpush.xpose.msra.mxu0 0.0
        %2362 = vmatpush.xpose.msra.mxu0 0.0
        %2363 = vmatpush.xpose.msra.mxu0 0.0
        %2364 = vmatpush.xpose.msra.mxu0 0.0
        %2365 = vmatpush.xpose.msra.mxu0 0.0
        %2366 = vmatpush.xpose.msra.mxu0 0.0
        %2367 = vmatpush.xpose.msra.mxu0 0.0
        %2368 = vmatpush.xpose.msra.mxu0 0.0
        %2369 = vmatpush.xpose.msra.mxu0 %v2141
        %2370 = vmatpush.xpose.msra.mxu0 %v2061
        %2371 = vmatmul.f32.gmra.mxu0 %v1911
        %v2372 = vpop.f32.mrf.mxu0
        %v2373 = vadd.f32 %v2353, %v2372
        %2374 = vdwg.mxu0
        %2375 = vmatpush.xpose.msra.mxu0 0.0
        %2376 = vmatpush.xpose.msra.mxu0 0.0
        %2377 = vmatpush.xpose.msra.mxu0 0.0
        %2378 = vmatpush.xpose.msra.mxu0 0.0
        %2379 = vmatpush.xpose.msra.mxu0 0.0
        %2380 = vmatpush.xpose.msra.mxu0 0.0
        %2381 = vmatpush.xpose.msra.mxu0 0.0
        %2382 = vmatpush.xpose.msra.mxu0 0.0
        %2383 = vmatpush.xpose.msra.mxu0 0.0
        %2384 = vmatpush.xpose.msra.mxu0 0.0
        %2385 = vmatpush.xpose.msra.mxu0 0.0
        %2386 = vmatpush.xpose.msra.mxu0 0.0
        %2387 = vmatpush.xpose.msra.mxu0 0.0
        %2388 = vmatpush.xpose.msra.mxu0 0.0
        %2389 = vmatpush.xpose.msra.mxu0 %v2142
        %2390 = vmatpush.xpose.msra.mxu0 %v2062
        %2391 = vmatmul.f32.gmra.mxu0 %v1912
        %v2392 = vpop.f32.mrf.mxu0
        %v2393 = vadd.f32 %v2373, %v2392
        %2394 = vdwg.mxu0
        %2395 = vmatpush.xpose.msra.mxu0 0.0
        %2396 = vmatpush.xpose.msra.mxu0 0.0
        %2397 = vmatpush.xpose.msra.mxu0 0.0
        %2398 = vmatpush.xpose.msra.mxu0 0.0
        %2399 = vmatpush.xpose.msra.mxu0 0.0
        %2400 = vmatpush.xpose.msra.mxu0 0.0
        %2401 = vmatpush.xpose.msra.mxu0 0.0
        %2402 = vmatpush.xpose.msra.mxu0 0.0
        %2403 = vmatpush.xpose.msra.mxu0 0.0
        %2404 = vmatpush.xpose.msra.mxu0 0.0
        %2405 = vmatpush.xpose.msra.mxu0 0.0
        %2406 = vmatpush.xpose.msra.mxu0 0.0
        %2407 = vmatpush.xpose.msra.mxu0 0.0
        %2408 = vmatpush.xpose.msra.mxu0 0.0
        %2409 = vmatpush.xpose.msra.mxu0 %v2143
        %2410 = vmatpush.xpose.msra.mxu0 %v2063
        %2411 = vmatmul.f32.gmra.mxu0 %v1913
        %v2412 = vpop.f32.mrf.mxu0
        %v2413 = vadd.f32 %v2393, %v2412
        %2414 = vdwg.mxu0
        %2415 = vmatpush.xpose.msra.mxu0 0.0
        %2416 = vmatpush.xpose.msra.mxu0 0.0
        %2417 = vmatpush.xpose.msra.mxu0 0.0
        %2418 = vmatpush.xpose.msra.mxu0 0.0
        %2419 = vmatpush.xpose.msra.mxu0 0.0
        %2420 = vmatpush.xpose.msra.mxu0 0.0
        %2421 = vmatpush.xpose.msra.mxu0 0.0
        %2422 = vmatpush.xpose.msra.mxu0 0.0
        %2423 = vmatpush.xpose.msra.mxu0 0.0
        %2424 = vmatpush.xpose.msra.mxu0 0.0
        %2425 = vmatpush.xpose.msra.mxu0 0.0
        %2426 = vmatpush.xpose.msra.mxu0 0.0
        %2427 = vmatpush.xpose.msra.mxu0 0.0
        %2428 = vmatpush.xpose.msra.mxu0 0.0
        %2429 = vmatpush.xpose.msra.mxu0 %v2144
        %2430 = vmatpush.xpose.msra.mxu0 %v2064
        %2431 = vmatmul.f32.gmra.mxu0 %v1919
        %v2432 = vpop.f32.mrf.mxu0
        %v2433 = vadd.f32 %v2413, %v2432
        %2434 = vdwg.mxu0
        %2435 = vmatpush.xpose.msra.mxu0 0.0
        %2436 = vmatpush.xpose.msra.mxu0 0.0
        %2437 = vmatpush.xpose.msra.mxu0 0.0
        %2438 = vmatpush.xpose.msra.mxu0 0.0
        %2439 = vmatpush.xpose.msra.mxu0 0.0
        %2440 = vmatpush.xpose.msra.mxu0 0.0
        %2441 = vmatpush.xpose.msra.mxu0 0.0
        %2442 = vmatpush.xpose.msra.mxu0 0.0
        %2443 = vmatpush.xpose.msra.mxu0 0.0
        %2444 = vmatpush.xpose.msra.mxu0 0.0
        %2445 = vmatpush.xpose.msra.mxu0 0.0
        %2446 = vmatpush.xpose.msra.mxu0 0.0
        %2447 = vmatpush.xpose.msra.mxu0 0.0
        %2448 = vmatpush.xpose.msra.mxu0 0.0
        %2449 = vmatpush.xpose.msra.mxu0 %v2145
        %2450 = vmatpush.xpose.msra.mxu0 %v2065
        %2451 = vmatmul.f32.gmra.mxu0 %v1920
        %v2452 = vpop.f32.mrf.mxu0
        %v2453 = vadd.f32 %v2433, %v2452
        %2454 = vdwg.mxu0
        %2455 = vmatpush.xpose.msra.mxu0 0.0
        %2456 = vmatpush.xpose.msra.mxu0 0.0
        %2457 = vmatpush.xpose.msra.mxu0 0.0
        %2458 = vmatpush.xpose.msra.mxu0 0.0
        %2459 = vmatpush.xpose.msra.mxu0 0.0
        %2460 = vmatpush.xpose.msra.mxu0 0.0
        %2461 = vmatpush.xpose.msra.mxu0 0.0
        %2462 = vmatpush.xpose.msra.mxu0 0.0
        %2463 = vmatpush.xpose.msra.mxu0 0.0
        %2464 = vmatpush.xpose.msra.mxu0 0.0
        %2465 = vmatpush.xpose.msra.mxu0 0.0
        %2466 = vmatpush.xpose.msra.mxu0 0.0
        %2467 = vmatpush.xpose.msra.mxu0 0.0
        %2468 = vmatpush.xpose.msra.mxu0 0.0
        %2469 = vmatpush.xpose.msra.mxu0 %v2146
        %2470 = vmatpush.xpose.msra.mxu0 %v2066
        %2471 = vmatmul.f32.gmra.mxu0 %v1921
        %v2472 = vpop.f32.mrf.mxu0
        %v2473 = vadd.f32 %v2453, %v2472
        %2474 = vdwg.mxu0
        %2475 = vmatpush.xpose.msra.mxu0 0.0
        %2476 = vmatpush.xpose.msra.mxu0 0.0
        %2477 = vmatpush.xpose.msra.mxu0 0.0
        %2478 = vmatpush.xpose.msra.mxu0 0.0
        %2479 = vmatpush.xpose.msra.mxu0 0.0
        %2480 = vmatpush.xpose.msra.mxu0 0.0
        %2481 = vmatpush.xpose.msra.mxu0 0.0
        %2482 = vmatpush.xpose.msra.mxu0 0.0
        %2483 = vmatpush.xpose.msra.mxu0 0.0
        %2484 = vmatpush.xpose.msra.mxu0 0.0
        %2485 = vmatpush.xpose.msra.mxu0 0.0
        %2486 = vmatpush.xpose.msra.mxu0 0.0
        %2487 = vmatpush.xpose.msra.mxu0 0.0
        %2488 = vmatpush.xpose.msra.mxu0 0.0
        %2489 = vmatpush.xpose.msra.mxu0 %v2147
        %2490 = vmatpush.xpose.msra.mxu0 %v2067
        %2491 = vmatmul.f32.gmra.mxu0 %v1922
        %v2492 = vpop.f32.mrf.mxu0
        %v2493 = vadd.f32 %v2473, %v2492
        %2494 = vdwg.mxu0
        %2495 = vmatpush.xpose.msra.mxu0 0.0
        %2496 = vmatpush.xpose.msra.mxu0 0.0
        %2497 = vmatpush.xpose.msra.mxu0 0.0
        %2498 = vmatpush.xpose.msra.mxu0 0.0
        %2499 = vmatpush.xpose.msra.mxu0 0.0
        %2500 = vmatpush.xpose.msra.mxu0 0.0
        %2501 = vmatpush.xpose.msra.mxu0 0.0
        %2502 = vmatpush.xpose.msra.mxu0 0.0
        %2503 = vmatpush.xpose.msra.mxu0 0.0
        %2504 = vmatpush.xpose.msra.mxu0 0.0
        %2505 = vmatpush.xpose.msra.mxu0 0.0
        %2506 = vmatpush.xpose.msra.mxu0 0.0
        %2507 = vmatpush.xpose.msra.mxu0 0.0
        %2508 = vmatpush.xpose.msra.mxu0 0.0
        %2509 = vmatpush.xpose.msra.mxu0 %v2148
        %2510 = vmatpush.xpose.msra.mxu0 %v2068
        %2511 = vmatmul.f32.gmra.mxu0 %v1923
        %v2512 = vpop.f32.mrf.mxu0
        %v2513 = vadd.f32 %v2493, %v2512
        %2514 = vdwg.mxu0
        %2515 = vmatpush.xpose.msra.mxu0 0.0
        %2516 = vmatpush.xpose.msra.mxu0 0.0
        %2517 = vmatpush.xpose.msra.mxu0 0.0
        %2518 = vmatpush.xpose.msra.mxu0 0.0
        %2519 = vmatpush.xpose.msra.mxu0 0.0
        %2520 = vmatpush.xpose.msra.mxu0 0.0
        %2521 = vmatpush.xpose.msra.mxu0 0.0
        %2522 = vmatpush.xpose.msra.mxu0 0.0
        %2523 = vmatpush.xpose.msra.mxu0 0.0
        %2524 = vmatpush.xpose.msra.mxu0 0.0
        %2525 = vmatpush.xpose.msra.mxu0 0.0
        %2526 = vmatpush.xpose.msra.mxu0 0.0
        %2527 = vmatpush.xpose.msra.mxu0 0.0
        %2528 = vmatpush.xpose.msra.mxu0 0.0
        %2529 = vmatpush.xpose.msra.mxu0 %v2149
        %2530 = vmatpush.xpose.msra.mxu0 %v2069
        %2531 = vmatmul.f32.gmra.mxu0 %v1929
        %v2532 = vpop.f32.mrf.mxu0
        %v2533 = vadd.f32 %v2513, %v2532
        %2534 = vdwg.mxu0
        %2535 = vmatpush.xpose.msra.mxu0 0.0
        %2536 = vmatpush.xpose.msra.mxu0 0.0
        %2537 = vmatpush.xpose.msra.mxu0 0.0
        %2538 = vmatpush.xpose.msra.mxu0 0.0
        %2539 = vmatpush.xpose.msra.mxu0 0.0
        %2540 = vmatpush.xpose.msra.mxu0 0.0
        %2541 = vmatpush.xpose.msra.mxu0 0.0
        %2542 = vmatpush.xpose.msra.mxu0 0.0
        %2543 = vmatpush.xpose.msra.mxu0 0.0
        %2544 = vmatpush.xpose.msra.mxu0 0.0
        %2545 = vmatpush.xpose.msra.mxu0 0.0
        %2546 = vmatpush.xpose.msra.mxu0 0.0
        %2547 = vmatpush.xpose.msra.mxu0 0.0
        %2548 = vmatpush.xpose.msra.mxu0 0.0
        %2549 = vmatpush.xpose.msra.mxu0 %v2150
        %2550 = vmatpush.xpose.msra.mxu0 %v2070
        %2551 = vmatmul.f32.gmra.mxu0 %v1930
        %v2552 = vpop.f32.mrf.mxu0
        %v2553 = vadd.f32 %v2533, %v2552
        %2554 = vdwg.mxu0
        %2555 = vmatpush.xpose.msra.mxu0 0.0
        %2556 = vmatpush.xpose.msra.mxu0 0.0
        %2557 = vmatpush.xpose.msra.mxu0 0.0
        %2558 = vmatpush.xpose.msra.mxu0 0.0
        %2559 = vmatpush.xpose.msra.mxu0 0.0
        %2560 = vmatpush.xpose.msra.mxu0 0.0
        %2561 = vmatpush.xpose.msra.mxu0 0.0
        %2562 = vmatpush.xpose.msra.mxu0 0.0
        %2563 = vmatpush.xpose.msra.mxu0 0.0
        %2564 = vmatpush.xpose.msra.mxu0 0.0
        %2565 = vmatpush.xpose.msra.mxu0 0.0
        %2566 = vmatpush.xpose.msra.mxu0 0.0
        %2567 = vmatpush.xpose.msra.mxu0 0.0
        %2568 = vmatpush.xpose.msra.mxu0 0.0
        %2569 = vmatpush.xpose.msra.mxu0 %v2151
        %2570 = vmatpush.xpose.msra.mxu0 %v2071
        %2571 = vmatmul.f32.gmra.mxu0 %v1931
        %v2572 = vpop.f32.mrf.mxu0
        %v2573 = vadd.f32 %v2553, %v2572
        %2574 = vdwg.mxu0
        %2575 = vmatpush.xpose.msra.mxu0 0.0
        %2576 = vmatpush.xpose.msra.mxu0 0.0
        %2577 = vmatpush.xpose.msra.mxu0 0.0
        %2578 = vmatpush.xpose.msra.mxu0 0.0
        %2579 = vmatpush.xpose.msra.mxu0 0.0
        %2580 = vmatpush.xpose.msra.mxu0 0.0
        %2581 = vmatpush.xpose.msra.mxu0 0.0
        %2582 = vmatpush.xpose.msra.mxu0 0.0
        %2583 = vmatpush.xpose.msra.mxu0 0.0
        %2584 = vmatpush.xpose.msra.mxu0 0.0
        %2585 = vmatpush.xpose.msra.mxu0 0.0
        %2586 = vmatpush.xpose.msra.mxu0 0.0
        %2587 = vmatpush.xpose.msra.mxu0 0.0
        %2588 = vmatpush.xpose.msra.mxu0 0.0
        %2589 = vmatpush.xpose.msra.mxu0 %v2152
        %2590 = vmatpush.xpose.msra.mxu0 %v2072
        %2591 = vmatmul.f32.gmra.mxu0 %v1932
        %v2592 = vpop.f32.mrf.mxu0
        %v2593 = vadd.f32 %v2573, %v2592
        %2594 = vdwg.mxu0
        %2595 = vmatpush.xpose.msra.mxu0 0.0
        %2596 = vmatpush.xpose.msra.mxu0 0.0
        %2597 = vmatpush.xpose.msra.mxu0 0.0
        %2598 = vmatpush.xpose.msra.mxu0 0.0
        %2599 = vmatpush.xpose.msra.mxu0 0.0
        %2600 = vmatpush.xpose.msra.mxu0 0.0
        %2601 = vmatpush.xpose.msra.mxu0 0.0
        %2602 = vmatpush.xpose.msra.mxu0 0.0
        %2603 = vmatpush.xpose.msra.mxu0 0.0
        %2604 = vmatpush.xpose.msra.mxu0 0.0
        %2605 = vmatpush.xpose.msra.mxu0 0.0
        %2606 = vmatpush.xpose.msra.mxu0 0.0
        %2607 = vmatpush.xpose.msra.mxu0 0.0
        %2608 = vmatpush.xpose.msra.mxu0 0.0
        %2609 = vmatpush.xpose.msra.mxu0 %v2153
        %2610 = vmatpush.xpose.msra.mxu0 %v2073
        %2611 = vmatmul.f32.gmra.mxu0 %v1933
        %v2612 = vpop.f32.mrf.mxu0
        %v2613 = vadd.f32 %v2593, %v2612
        %2614 = vdwg.mxu0
        %2615 = vmatpush.xpose.msra.mxu0 0.0
        %2616 = vmatpush.xpose.msra.mxu0 0.0
        %2617 = vmatpush.xpose.msra.mxu0 0.0
        %2618 = vmatpush.xpose.msra.mxu0 0.0
        %2619 = vmatpush.xpose.msra.mxu0 0.0
        %2620 = vmatpush.xpose.msra.mxu0 0.0
        %2621 = vmatpush.xpose.msra.mxu0 0.0
        %2622 = vmatpush.xpose.msra.mxu0 0.0
        %2623 = vmatpush.xpose.msra.mxu0 0.0
        %2624 = vmatpush.xpose.msra.mxu0 0.0
        %2625 = vmatpush.xpose.msra.mxu0 0.0
        %2626 = vmatpush.xpose.msra.mxu0 0.0
        %2627 = vmatpush.xpose.msra.mxu0 0.0
        %2628 = vmatpush.xpose.msra.mxu0 0.0
        %2629 = vmatpush.xpose.msra.mxu0 %v2154
        %2630 = vmatpush.xpose.msra.mxu0 %v2074
        %2631 = vmatmul.f32.gmra.mxu0 %v1939
        %v2632 = vpop.f32.mrf.mxu0
        %v2633 = vadd.f32 %v2613, %v2632
        %2634 = vdwg.mxu0
        %2635 = vmatpush.xpose.msra.mxu0 0.0
        %2636 = vmatpush.xpose.msra.mxu0 0.0
        %2637 = vmatpush.xpose.msra.mxu0 0.0
        %2638 = vmatpush.xpose.msra.mxu0 0.0
        %2639 = vmatpush.xpose.msra.mxu0 0.0
        %2640 = vmatpush.xpose.msra.mxu0 0.0
        %2641 = vmatpush.xpose.msra.mxu0 0.0
        %2642 = vmatpush.xpose.msra.mxu0 0.0
        %2643 = vmatpush.xpose.msra.mxu0 0.0
        %2644 = vmatpush.xpose.msra.mxu0 0.0
        %2645 = vmatpush.xpose.msra.mxu0 0.0
        %2646 = vmatpush.xpose.msra.mxu0 0.0
        %2647 = vmatpush.xpose.msra.mxu0 0.0
        %2648 = vmatpush.xpose.msra.mxu0 0.0
        %2649 = vmatpush.xpose.msra.mxu0 %v2155
        %2650 = vmatpush.xpose.msra.mxu0 %v2075
        %2651 = vmatmul.f32.gmra.mxu0 %v1940
        %v2652 = vpop.f32.mrf.mxu0
        %v2653 = vadd.f32 %v2633, %v2652
        %2654 = vdwg.mxu0
        %2655 = vmatpush.xpose.msra.mxu0 0.0
        %2656 = vmatpush.xpose.msra.mxu0 0.0
        %2657 = vmatpush.xpose.msra.mxu0 0.0
        %2658 = vmatpush.xpose.msra.mxu0 0.0
        %2659 = vmatpush.xpose.msra.mxu0 0.0
        %2660 = vmatpush.xpose.msra.mxu0 0.0
        %2661 = vmatpush.xpose.msra.mxu0 0.0
        %2662 = vmatpush.xpose.msra.mxu0 0.0
        %2663 = vmatpush.xpose.msra.mxu0 0.0
        %2664 = vmatpush.xpose.msra.mxu0 0.0
        %2665 = vmatpush.xpose.msra.mxu0 0.0
        %2666 = vmatpush.xpose.msra.mxu0 0.0
        %2667 = vmatpush.xpose.msra.mxu0 0.0
        %2668 = vmatpush.xpose.msra.mxu0 0.0
        %2669 = vmatpush.xpose.msra.mxu0 %v2156
        %2670 = vmatpush.xpose.msra.mxu0 %v2076
        %2671 = vmatmul.f32.gmra.mxu0 %v1941
        %v2672 = vpop.f32.mrf.mxu0
        %v2673 = vadd.f32 %v2653, %v2672
        %2674 = vdwg.mxu0
        %2675 = vmatpush.xpose.msra.mxu0 0.0
        %2676 = vmatpush.xpose.msra.mxu0 0.0
        %2677 = vmatpush.xpose.msra.mxu0 0.0
        %2678 = vmatpush.xpose.msra.mxu0 0.0
        %2679 = vmatpush.xpose.msra.mxu0 0.0
        %2680 = vmatpush.xpose.msra.mxu0 0.0
        %2681 = vmatpush.xpose.msra.mxu0 0.0
        %2682 = vmatpush.xpose.msra.mxu0 0.0
        %2683 = vmatpush.xpose.msra.mxu0 0.0
        %2684 = vmatpush.xpose.msra.mxu0 0.0
        %2685 = vmatpush.xpose.msra.mxu0 0.0
        %2686 = vmatpush.xpose.msra.mxu0 0.0
        %2687 = vmatpush.xpose.msra.mxu0 0.0
        %2688 = vmatpush.xpose.msra.mxu0 0.0
        %2689 = vmatpush.xpose.msra.mxu0 %v2157
        %2690 = vmatpush.xpose.msra.mxu0 %v2077
        %2691 = vmatmul.f32.gmra.mxu0 %v1942
        %v2692 = vpop.f32.mrf.mxu0
        %v2693 = vadd.f32 %v2673, %v2692
        %2694 = vdwg.mxu0
        %2695 = vmatpush.xpose.msra.mxu0 0.0
        %2696 = vmatpush.xpose.msra.mxu0 0.0
        %2697 = vmatpush.xpose.msra.mxu0 0.0
        %2698 = vmatpush.xpose.msra.mxu0 0.0
        %2699 = vmatpush.xpose.msra.mxu0 0.0
        %2700 = vmatpush.xpose.msra.mxu0 0.0
        %2701 = vmatpush.xpose.msra.mxu0 0.0
        %2702 = vmatpush.xpose.msra.mxu0 0.0
        %2703 = vmatpush.xpose.msra.mxu0 0.0
        %2704 = vmatpush.xpose.msra.mxu0 0.0
        %2705 = vmatpush.xpose.msra.mxu0 0.0
        %2706 = vmatpush.xpose.msra.mxu0 0.0
        %2707 = vmatpush.xpose.msra.mxu0 0.0
        %2708 = vmatpush.xpose.msra.mxu0 0.0
        %2709 = vmatpush.xpose.msra.mxu0 %v2158
        %2710 = vmatpush.xpose.msra.mxu0 %v2078
        %2711 = vmatmul.f32.gmra.mxu0 %v1943
        %v2712 = vpop.f32.mrf.mxu0
        %v2713 = vadd.f32 %v2693, %v2712
        %2714 = vdwg.mxu0
        %2715 = vmatpush.xpose.msra.mxu0 0.0
        %2716 = vmatpush.xpose.msra.mxu0 0.0
        %2717 = vmatpush.xpose.msra.mxu0 0.0
        %2718 = vmatpush.xpose.msra.mxu0 0.0
        %2719 = vmatpush.xpose.msra.mxu0 0.0
        %2720 = vmatpush.xpose.msra.mxu0 0.0
        %2721 = vmatpush.xpose.msra.mxu0 0.0
        %2722 = vmatpush.xpose.msra.mxu0 0.0
        %2723 = vmatpush.xpose.msra.mxu0 0.0
        %2724 = vmatpush.xpose.msra.mxu0 0.0
        %2725 = vmatpush.xpose.msra.mxu0 0.0
        %2726 = vmatpush.xpose.msra.mxu0 0.0
        %2727 = vmatpush.xpose.msra.mxu0 0.0
        %2728 = vmatpush.xpose.msra.mxu0 0.0
        %2729 = vmatpush.xpose.msra.mxu0 %v2159
        %2730 = vmatpush.xpose.msra.mxu0 %v2079
        %2731 = vmatmul.f32.gmra.mxu0 %v1949
        %v2732 = vpop.f32.mrf.mxu0
        %v2733 = vadd.f32 %v2713, %v2732
        %2734 = vdwg.mxu0
        %2735 = vmatpush.xpose.msra.mxu0 0.0
        %2736 = vmatpush.xpose.msra.mxu0 0.0
        %2737 = vmatpush.xpose.msra.mxu0 0.0
        %2738 = vmatpush.xpose.msra.mxu0 0.0
        %2739 = vmatpush.xpose.msra.mxu0 0.0
        %2740 = vmatpush.xpose.msra.mxu0 0.0
        %2741 = vmatpush.xpose.msra.mxu0 0.0
        %2742 = vmatpush.xpose.msra.mxu0 0.0
        %2743 = vmatpush.xpose.msra.mxu0 0.0
        %2744 = vmatpush.xpose.msra.mxu0 0.0
        %2745 = vmatpush.xpose.msra.mxu0 0.0
        %2746 = vmatpush.xpose.msra.mxu0 0.0
        %2747 = vmatpush.xpose.msra.mxu0 0.0
        %2748 = vmatpush.xpose.msra.mxu0 0.0
        %2749 = vmatpush.xpose.msra.mxu0 %v2160
        %2750 = vmatpush.xpose.msra.mxu0 %v2080
        %2751 = vmatmul.f32.gmra.mxu0 %v1950
        %v2752 = vpop.f32.mrf.mxu0
        %v2753 = vadd.f32 %v2733, %v2752
        %2754 = vdwg.mxu0
        %2755 = vmatpush.xpose.msra.mxu0 0.0
        %2756 = vmatpush.xpose.msra.mxu0 0.0
        %2757 = vmatpush.xpose.msra.mxu0 0.0
        %2758 = vmatpush.xpose.msra.mxu0 0.0
        %2759 = vmatpush.xpose.msra.mxu0 0.0
        %2760 = vmatpush.xpose.msra.mxu0 0.0
        %2761 = vmatpush.xpose.msra.mxu0 0.0
        %2762 = vmatpush.xpose.msra.mxu0 0.0
        %2763 = vmatpush.xpose.msra.mxu0 0.0
        %2764 = vmatpush.xpose.msra.mxu0 0.0
        %2765 = vmatpush.xpose.msra.mxu0 0.0
        %2766 = vmatpush.xpose.msra.mxu0 0.0
        %2767 = vmatpush.xpose.msra.mxu0 0.0
        %2768 = vmatpush.xpose.msra.mxu0 0.0
        %2769 = vmatpush.xpose.msra.mxu0 %v2161
        %2770 = vmatpush.xpose.msra.mxu0 %v2081
        %2771 = vmatmul.f32.gmra.mxu0 %v1951
        %v2772 = vpop.f32.mrf.mxu0
        %v2773 = vadd.f32 %v2753, %v2772
        %2774 = vdwg.mxu0
        %2775 = vmatpush.xpose.msra.mxu0 0.0
        %2776 = vmatpush.xpose.msra.mxu0 0.0
        %2777 = vmatpush.xpose.msra.mxu0 0.0
        %2778 = vmatpush.xpose.msra.mxu0 0.0
        %2779 = vmatpush.xpose.msra.mxu0 0.0
        %2780 = vmatpush.xpose.msra.mxu0 0.0
        %2781 = vmatpush.xpose.msra.mxu0 0.0
        %2782 = vmatpush.xpose.msra.mxu0 0.0
        %2783 = vmatpush.xpose.msra.mxu0 0.0
        %2784 = vmatpush.xpose.msra.mxu0 0.0
        %2785 = vmatpush.xpose.msra.mxu0 0.0
        %2786 = vmatpush.xpose.msra.mxu0 0.0
        %2787 = vmatpush.xpose.msra.mxu0 0.0
        %2788 = vmatpush.xpose.msra.mxu0 0.0
        %2789 = vmatpush.xpose.msra.mxu0 %v2162
        %2790 = vmatpush.xpose.msra.mxu0 %v2082
        %2791 = vmatmul.f32.gmra.mxu0 %v1952
        %v2792 = vpop.f32.mrf.mxu0
        %v2793 = vadd.f32 %v2773, %v2792
        %2794 = vdwg.mxu0
        %2795 = vmatpush.xpose.msra.mxu0 0.0
        %2796 = vmatpush.xpose.msra.mxu0 0.0
        %2797 = vmatpush.xpose.msra.mxu0 0.0
        %2798 = vmatpush.xpose.msra.mxu0 0.0
        %2799 = vmatpush.xpose.msra.mxu0 0.0
        %2800 = vmatpush.xpose.msra.mxu0 0.0
        %2801 = vmatpush.xpose.msra.mxu0 0.0
        %2802 = vmatpush.xpose.msra.mxu0 0.0
        %2803 = vmatpush.xpose.msra.mxu0 0.0
        %2804 = vmatpush.xpose.msra.mxu0 0.0
        %2805 = vmatpush.xpose.msra.mxu0 0.0
        %2806 = vmatpush.xpose.msra.mxu0 0.0
        %2807 = vmatpush.xpose.msra.mxu0 0.0
        %2808 = vmatpush.xpose.msra.mxu0 0.0
        %2809 = vmatpush.xpose.msra.mxu0 %v2163
        %2810 = vmatpush.xpose.msra.mxu0 %v2083
        %2811 = vmatmul.f32.gmra.mxu0 %v1953
        %v2812 = vpop.f32.mrf.mxu0
        %v2813 = vadd.f32 %v2793, %v2812
        %2814 = vdwg.mxu0
        %2815 = vmatpush.xpose.msra.mxu0 0.0
        %2816 = vmatpush.xpose.msra.mxu0 0.0
        %2817 = vmatpush.xpose.msra.mxu0 0.0
        %2818 = vmatpush.xpose.msra.mxu0 0.0
        %2819 = vmatpush.xpose.msra.mxu0 0.0
        %2820 = vmatpush.xpose.msra.mxu0 0.0
        %2821 = vmatpush.xpose.msra.mxu0 0.0
        %2822 = vmatpush.xpose.msra.mxu0 0.0
        %2823 = vmatpush.xpose.msra.mxu0 0.0
        %2824 = vmatpush.xpose.msra.mxu0 0.0
        %2825 = vmatpush.xpose.msra.mxu0 0.0
        %2826 = vmatpush.xpose.msra.mxu0 0.0
        %2827 = vmatpush.xpose.msra.mxu0 0.0
        %2828 = vmatpush.xpose.msra.mxu0 0.0
        %2829 = vmatpush.xpose.msra.mxu0 %v2164
        %2830 = vmatpush.xpose.msra.mxu0 %v2084
        %2831 = vmatmul.f32.gmra.mxu0 %v1959
        %v2832 = vpop.f32.mrf.mxu0
        %v2833 = vadd.f32 %v2813, %v2832
        %2834 = vdwg.mxu0
        %2835 = vmatpush.xpose.msra.mxu0 0.0
        %2836 = vmatpush.xpose.msra.mxu0 0.0
        %2837 = vmatpush.xpose.msra.mxu0 0.0
        %2838 = vmatpush.xpose.msra.mxu0 0.0
        %2839 = vmatpush.xpose.msra.mxu0 0.0
        %2840 = vmatpush.xpose.msra.mxu0 0.0
        %2841 = vmatpush.xpose.msra.mxu0 0.0
        %2842 = vmatpush.xpose.msra.mxu0 0.0
        %2843 = vmatpush.xpose.msra.mxu0 0.0
        %2844 = vmatpush.xpose.msra.mxu0 0.0
        %2845 = vmatpush.xpose.msra.mxu0 0.0
        %2846 = vmatpush.xpose.msra.mxu0 0.0
        %2847 = vmatpush.xpose.msra.mxu0 0.0
        %2848 = vmatpush.xpose.msra.mxu0 0.0
        %2849 = vmatpush.xpose.msra.mxu0 %v2165
        %2850 = vmatpush.xpose.msra.mxu0 %v2085
        %2851 = vmatmul.f32.gmra.mxu0 %v1960
        %v2852 = vpop.f32.mrf.mxu0
        %v2853 = vadd.f32 %v2833, %v2852
        %2854 = vdwg.mxu0
        %2855 = vmatpush.xpose.msra.mxu0 0.0
        %2856 = vmatpush.xpose.msra.mxu0 0.0
        %2857 = vmatpush.xpose.msra.mxu0 0.0
        %2858 = vmatpush.xpose.msra.mxu0 0.0
        %2859 = vmatpush.xpose.msra.mxu0 0.0
        %2860 = vmatpush.xpose.msra.mxu0 0.0
        %2861 = vmatpush.xpose.msra.mxu0 0.0
        %2862 = vmatpush.xpose.msra.mxu0 0.0
        %2863 = vmatpush.xpose.msra.mxu0 0.0
        %2864 = vmatpush.xpose.msra.mxu0 0.0
        %2865 = vmatpush.xpose.msra.mxu0 0.0
        %2866 = vmatpush.xpose.msra.mxu0 0.0
        %2867 = vmatpush.xpose.msra.mxu0 0.0
        %2868 = vmatpush.xpose.msra.mxu0 0.0
        %2869 = vmatpush.xpose.msra.mxu0 %v2166
        %2870 = vmatpush.xpose.msra.mxu0 %v2086
        %2871 = vmatmul.f32.gmra.mxu0 %v1961
        %v2872 = vpop.f32.mrf.mxu0
        %v2873 = vadd.f32 %v2853, %v2872
        %2874 = vdwg.mxu0
        %2875 = vmatpush.xpose.msra.mxu0 0.0
        %2876 = vmatpush.xpose.msra.mxu0 0.0
        %2877 = vmatpush.xpose.msra.mxu0 0.0
        %2878 = vmatpush.xpose.msra.mxu0 0.0
        %2879 = vmatpush.xpose.msra.mxu0 0.0
        %2880 = vmatpush.xpose.msra.mxu0 0.0
        %2881 = vmatpush.xpose.msra.mxu0 0.0
        %2882 = vmatpush.xpose.msra.mxu0 0.0
        %2883 = vmatpush.xpose.msra.mxu0 0.0
        %2884 = vmatpush.xpose.msra.mxu0 0.0
        %2885 = vmatpush.xpose.msra.mxu0 0.0
        %2886 = vmatpush.xpose.msra.mxu0 0.0
        %2887 = vmatpush.xpose.msra.mxu0 0.0
        %2888 = vmatpush.xpose.msra.mxu0 0.0
        %2889 = vmatpush.xpose.msra.mxu0 %v2167
        %2890 = vmatpush.xpose.msra.mxu0 %v2087
        %2891 = vmatmul.f32.gmra.mxu0 %v1962
        %v2892 = vpop.f32.mrf.mxu0
        %v2893 = vadd.f32 %v2873, %v2892
        %2894 = vdwg.mxu0
        %2895 = vmatpush.xpose.msra.mxu0 0.0
        %2896 = vmatpush.xpose.msra.mxu0 0.0
        %2897 = vmatpush.xpose.msra.mxu0 0.0
        %2898 = vmatpush.xpose.msra.mxu0 0.0
        %2899 = vmatpush.xpose.msra.mxu0 0.0
        %2900 = vmatpush.xpose.msra.mxu0 0.0
        %2901 = vmatpush.xpose.msra.mxu0 0.0
        %2902 = vmatpush.xpose.msra.mxu0 0.0
        %2903 = vmatpush.xpose.msra.mxu0 0.0
        %2904 = vmatpush.xpose.msra.mxu0 0.0
        %2905 = vmatpush.xpose.msra.mxu0 0.0
        %2906 = vmatpush.xpose.msra.mxu0 0.0
        %2907 = vmatpush.xpose.msra.mxu0 0.0
        %2908 = vmatpush.xpose.msra.mxu0 0.0
        %2909 = vmatpush.xpose.msra.mxu0 %v2168
        %2910 = vmatpush.xpose.msra.mxu0 %v2088
        %2911 = vmatmul.f32.gmra.mxu0 %v1963
        %v2912 = vpop.f32.mrf.mxu0
        %v2913 = vadd.f32 %v2893, %v2912
        %2914 = vdwg.mxu0
        %2915 = vmatpush.xpose.msra.mxu0 0.0
        %2916 = vmatpush.xpose.msra.mxu0 0.0
        %2917 = vmatpush.xpose.msra.mxu0 0.0
        %2918 = vmatpush.xpose.msra.mxu0 0.0
        %2919 = vmatpush.xpose.msra.mxu0 0.0
        %2920 = vmatpush.xpose.msra.mxu0 0.0
        %2921 = vmatpush.xpose.msra.mxu0 0.0
        %2922 = vmatpush.xpose.msra.mxu0 0.0
        %2923 = vmatpush.xpose.msra.mxu0 0.0
        %2924 = vmatpush.xpose.msra.mxu0 0.0
        %2925 = vmatpush.xpose.msra.mxu0 0.0
        %2926 = vmatpush.xpose.msra.mxu0 0.0
        %2927 = vmatpush.xpose.msra.mxu0 0.0
        %2928 = vmatpush.xpose.msra.mxu0 0.0
        %2929 = vmatpush.xpose.msra.mxu0 %v2169
        %2930 = vmatpush.xpose.msra.mxu0 %v2089
        %2931 = vmatmul.f32.gmra.mxu0 %v1969
        %v2932 = vpop.f32.mrf.mxu0
        %v2933 = vadd.f32 %v2913, %v2932
        %2934 = vdwg.mxu0
        %2935 = vmatpush.xpose.msra.mxu0 0.0
        %2936 = vmatpush.xpose.msra.mxu0 0.0
        %2937 = vmatpush.xpose.msra.mxu0 0.0
        %2938 = vmatpush.xpose.msra.mxu0 0.0
        %2939 = vmatpush.xpose.msra.mxu0 0.0
        %2940 = vmatpush.xpose.msra.mxu0 0.0
        %2941 = vmatpush.xpose.msra.mxu0 0.0
        %2942 = vmatpush.xpose.msra.mxu0 0.0
        %2943 = vmatpush.xpose.msra.mxu0 0.0
        %2944 = vmatpush.xpose.msra.mxu0 0.0
        %2945 = vmatpush.xpose.msra.mxu0 0.0
        %2946 = vmatpush.xpose.msra.mxu0 0.0
        %2947 = vmatpush.xpose.msra.mxu0 0.0
        %2948 = vmatpush.xpose.msra.mxu0 0.0
        %2949 = vmatpush.xpose.msra.mxu0 %v2170
        %2950 = vmatpush.xpose.msra.mxu0 %v2090
        %2951 = vmatmul.f32.gmra.mxu0 %v1970
        %v2952 = vpop.f32.mrf.mxu0
        %v2953 = vadd.f32 %v2933, %v2952
        %2954 = vdwg.mxu0
        %2955 = vmatpush.xpose.msra.mxu0 0.0
        %2956 = vmatpush.xpose.msra.mxu0 0.0
        %2957 = vmatpush.xpose.msra.mxu0 0.0
        %2958 = vmatpush.xpose.msra.mxu0 0.0
        %2959 = vmatpush.xpose.msra.mxu0 0.0
        %2960 = vmatpush.xpose.msra.mxu0 0.0
        %2961 = vmatpush.xpose.msra.mxu0 0.0
        %2962 = vmatpush.xpose.msra.mxu0 0.0
        %2963 = vmatpush.xpose.msra.mxu0 0.0
        %2964 = vmatpush.xpose.msra.mxu0 0.0
        %2965 = vmatpush.xpose.msra.mxu0 0.0
        %2966 = vmatpush.xpose.msra.mxu0 0.0
        %2967 = vmatpush.xpose.msra.mxu0 0.0
        %2968 = vmatpush.xpose.msra.mxu0 0.0
        %2969 = vmatpush.xpose.msra.mxu0 %v2171
        %2970 = vmatpush.xpose.msra.mxu0 %v2091
        %2971 = vmatmul.f32.gmra.mxu0 %v1971
        %v2972 = vpop.f32.mrf.mxu0
        %v2973 = vadd.f32 %v2953, %v2972
        %2974 = vdwg.mxu0
        %2975 = vmatpush.xpose.msra.mxu0 0.0
        %2976 = vmatpush.xpose.msra.mxu0 0.0
        %2977 = vmatpush.xpose.msra.mxu0 0.0
        %2978 = vmatpush.xpose.msra.mxu0 0.0
        %2979 = vmatpush.xpose.msra.mxu0 0.0
        %2980 = vmatpush.xpose.msra.mxu0 0.0
        %2981 = vmatpush.xpose.msra.mxu0 0.0
        %2982 = vmatpush.xpose.msra.mxu0 0.0
        %2983 = vmatpush.xpose.msra.mxu0 0.0
        %2984 = vmatpush.xpose.msra.mxu0 0.0
        %2985 = vmatpush.xpose.msra.mxu0 0.0
        %2986 = vmatpush.xpose.msra.mxu0 0.0
        %2987 = vmatpush.xpose.msra.mxu0 0.0
        %2988 = vmatpush.xpose.msra.mxu0 0.0
        %2989 = vmatpush.xpose.msra.mxu0 %v2172
        %2990 = vmatpush.xpose.msra.mxu0 %v2092
        %2991 = vmatmul.f32.gmra.mxu0 %v1972
        %v2992 = vpop.f32.mrf.mxu0
        %v2993 = vadd.f32 %v2973, %v2992
        %2994 = vdwg.mxu0
        %2995 = vmatpush.xpose.msra.mxu0 0.0
        %2996 = vmatpush.xpose.msra.mxu0 0.0
        %2997 = vmatpush.xpose.msra.mxu0 0.0
        %2998 = vmatpush.xpose.msra.mxu0 0.0
        %2999 = vmatpush.xpose.msra.mxu0 0.0
        %3000 = vmatpush.xpose.msra.mxu0 0.0
        %3001 = vmatpush.xpose.msra.mxu0 0.0
        %3002 = vmatpush.xpose.msra.mxu0 0.0
        %3003 = vmatpush.xpose.msra.mxu0 0.0
        %3004 = vmatpush.xpose.msra.mxu0 0.0
        %3005 = vmatpush.xpose.msra.mxu0 0.0
        %3006 = vmatpush.xpose.msra.mxu0 0.0
        %3007 = vmatpush.xpose.msra.mxu0 0.0
        %3008 = vmatpush.xpose.msra.mxu0 0.0
        %3009 = vmatpush.xpose.msra.mxu0 %v2173
        %3010 = vmatpush.xpose.msra.mxu0 %v2093
        %3011 = vmatmul.f32.gmra.mxu0 %v1973
        %v3012 = vpop.f32.mrf.mxu0
        %v3013 = vadd.f32 %v2993, %v3012
        %3014 = vdwg.mxu0
        %3015 = vmatpush.xpose.msra.mxu0 0.0
        %3016 = vmatpush.xpose.msra.mxu0 0.0
        %3017 = vmatpush.xpose.msra.mxu0 0.0
        %3018 = vmatpush.xpose.msra.mxu0 0.0
        %3019 = vmatpush.xpose.msra.mxu0 0.0
        %3020 = vmatpush.xpose.msra.mxu0 0.0
        %3021 = vmatpush.xpose.msra.mxu0 0.0
        %3022 = vmatpush.xpose.msra.mxu0 0.0
        %3023 = vmatpush.xpose.msra.mxu0 0.0
        %3024 = vmatpush.xpose.msra.mxu0 0.0
        %3025 = vmatpush.xpose.msra.mxu0 0.0
        %3026 = vmatpush.xpose.msra.mxu0 0.0
        %3027 = vmatpush.xpose.msra.mxu0 0.0
        %3028 = vmatpush.xpose.msra.mxu0 0.0
        %3029 = vmatpush.xpose.msra.mxu0 %v2174
        %3030 = vmatpush.xpose.msra.mxu0 %v2094
        %3031 = vmatmul.f32.gmra.mxu0 %v1718
        %v3032 = vpop.f32.mrf.mxu0
        %v3033 = vadd.f32 %v3013, %v3032
        %3034 = vdwg.mxu0
        %3035 = vmatpush.xpose.msra.mxu0 0.0
        %3036 = vmatpush.xpose.msra.mxu0 0.0
        %3037 = vmatpush.xpose.msra.mxu0 0.0
        %3038 = vmatpush.xpose.msra.mxu0 0.0
        %3039 = vmatpush.xpose.msra.mxu0 0.0
        %3040 = vmatpush.xpose.msra.mxu0 0.0
        %3041 = vmatpush.xpose.msra.mxu0 0.0
        %3042 = vmatpush.xpose.msra.mxu0 0.0
        %3043 = vmatpush.xpose.msra.mxu0 0.0
        %3044 = vmatpush.xpose.msra.mxu0 0.0
        %3045 = vmatpush.xpose.msra.mxu0 0.0
        %3046 = vmatpush.xpose.msra.mxu0 0.0
        %3047 = vmatpush.xpose.msra.mxu0 0.0
        %3048 = vmatpush.xpose.msra.mxu0 0.0
        %3049 = vmatpush.xpose.msra.mxu0 %v2175
        %3050 = vmatpush.xpose.msra.mxu0 %v2095
        %3051 = vmatmul.f32.gmra.mxu0 %v1764
        %v3052 = vpop.f32.mrf.mxu0
        %v3053 = vadd.f32 %v3033, %v3052
        %3054 = vdwg.mxu0
        %3055 = vmatpush.xpose.msra.mxu0 0.0
        %3056 = vmatpush.xpose.msra.mxu0 0.0
        %3057 = vmatpush.xpose.msra.mxu0 0.0
        %3058 = vmatpush.xpose.msra.mxu0 0.0
        %3059 = vmatpush.xpose.msra.mxu0 0.0
        %3060 = vmatpush.xpose.msra.mxu0 0.0
        %3061 = vmatpush.xpose.msra.mxu0 0.0
        %3062 = vmatpush.xpose.msra.mxu0 0.0
        %3063 = vmatpush.xpose.msra.mxu0 0.0
        %3064 = vmatpush.xpose.msra.mxu0 0.0
        %3065 = vmatpush.xpose.msra.mxu0 0.0
        %3066 = vmatpush.xpose.msra.mxu0 0.0
        %3067 = vmatpush.xpose.msra.mxu0 0.0
        %3068 = vmatpush.xpose.msra.mxu0 0.0
        %3069 = vmatpush.xpose.msra.mxu0 %v2176
        %3070 = vmatpush.xpose.msra.mxu0 %v2096
        %3071 = vmatmul.f32.gmra.mxu0 %v1810
        %v3072 = vpop.f32.mrf.mxu0
        %v3073 = vadd.f32 %v3053, %v3072
        %3074 = vdwg.mxu0
        %3075 = vmatpush.xpose.msra.mxu0 0.0
        %3076 = vmatpush.xpose.msra.mxu0 0.0
        %3077 = vmatpush.xpose.msra.mxu0 0.0
        %3078 = vmatpush.xpose.msra.mxu0 0.0
        %3079 = vmatpush.xpose.msra.mxu0 0.0
        %3080 = vmatpush.xpose.msra.mxu0 0.0
        %3081 = vmatpush.xpose.msra.mxu0 0.0
        %3082 = vmatpush.xpose.msra.mxu0 0.0
        %3083 = vmatpush.xpose.msra.mxu0 0.0
        %3084 = vmatpush.xpose.msra.mxu0 0.0
        %3085 = vmatpush.xpose.msra.mxu0 0.0
        %3086 = vmatpush.xpose.msra.mxu0 0.0
        %3087 = vmatpush.xpose.msra.mxu0 0.0
        %3088 = vmatpush.xpose.msra.mxu0 0.0
        %3089 = vmatpush.xpose.msra.mxu0 %v2177
        %3090 = vmatpush.xpose.msra.mxu0 %v2097
        %3091 = vmatmul.f32.gmra.mxu0 %v1856
        %v3092 = vpop.f32.mrf.mxu0
        %v3093 = vadd.f32 %v3073, %v3092
        %3094 = vdwg.mxu0
        %3095 = vmatpush.xpose.msra.mxu0 0.0
        %3096 = vmatpush.xpose.msra.mxu0 0.0
        %3097 = vmatpush.xpose.msra.mxu0 0.0
        %3098 = vmatpush.xpose.msra.mxu0 0.0
        %3099 = vmatpush.xpose.msra.mxu0 0.0
        %3100 = vmatpush.xpose.msra.mxu0 0.0
        %3101 = vmatpush.xpose.msra.mxu0 0.0
        %3102 = vmatpush.xpose.msra.mxu0 0.0
        %3103 = vmatpush.xpose.msra.mxu0 0.0
        %3104 = vmatpush.xpose.msra.mxu0 0.0
        %3105 = vmatpush.xpose.msra.mxu0 0.0
        %3106 = vmatpush.xpose.msra.mxu0 0.0
        %3107 = vmatpush.xpose.msra.mxu0 0.0
        %3108 = vmatpush.xpose.msra.mxu0 0.0
        %3109 = vmatpush.xpose.msra.mxu0 %v2178
        %3110 = vmatpush.xpose.msra.mxu0 %v2098
        %3111 = vmatmul.f32.gmra.mxu0 %v1902
        %v3112 = vpop.f32.mrf.mxu0
        %v3113 = vadd.f32 %v3093, %v3112
        %3114 = vdwg.mxu0
        %3115 = vmatpush.xpose.msra.mxu0 0.0
        %3116 = vmatpush.xpose.msra.mxu0 0.0
        %3117 = vmatpush.xpose.msra.mxu0 0.0
        %3118 = vmatpush.xpose.msra.mxu0 0.0
        %3119 = vmatpush.xpose.msra.mxu0 0.0
        %3120 = vmatpush.xpose.msra.mxu0 0.0
        %3121 = vmatpush.xpose.msra.mxu0 0.0
        %3122 = vmatpush.xpose.msra.mxu0 0.0
        %3123 = vmatpush.xpose.msra.mxu0 0.0
        %3124 = vmatpush.xpose.msra.mxu0 0.0
        %3125 = vmatpush.xpose.msra.mxu0 0.0
        %3126 = vmatpush.xpose.msra.mxu0 0.0
        %3127 = vmatpush.xpose.msra.mxu0 0.0
        %3128 = vmatpush.xpose.msra.mxu0 0.0
        %3129 = vmatpush.xpose.msra.mxu0 %v2179
        %3130 = vmatpush.xpose.msra.mxu0 %v2099
        %3131 = vmatmul.f32.gmra.mxu0 %v1984
        %v3132 = vpop.f32.mrf.mxu0
        %v3133 = vadd.f32 %v3113, %v3132
        %3134 = vdwg.mxu0
        %3135 = vmatpush.xpose.msra.mxu0 0.0
        %3136 = vmatpush.xpose.msra.mxu0 0.0
        %3137 = vmatpush.xpose.msra.mxu0 0.0
        %3138 = vmatpush.xpose.msra.mxu0 0.0
        %3139 = vmatpush.xpose.msra.mxu0 0.0
        %3140 = vmatpush.xpose.msra.mxu0 0.0
        %3141 = vmatpush.xpose.msra.mxu0 0.0
        %3142 = vmatpush.xpose.msra.mxu0 0.0
        %3143 = vmatpush.xpose.msra.mxu0 0.0
        %3144 = vmatpush.xpose.msra.mxu0 0.0
        %3145 = vmatpush.xpose.msra.mxu0 0.0
        %3146 = vmatpush.xpose.msra.mxu0 0.0
        %3147 = vmatpush.xpose.msra.mxu0 0.0
        %3148 = vmatpush.xpose.msra.mxu0 0.0
        %3149 = vmatpush.xpose.msra.mxu0 %v2180
        %3150 = vmatpush.xpose.msra.mxu0 %v2100
        %3151 = vmatmul.f32.gmra.mxu0 %v1985
        %v3152 = vpop.f32.mrf.mxu0
        %v3153 = vadd.f32 %v3133, %v3152
        %3154 = vdwg.mxu0
        %3155 = vmatpush.xpose.msra.mxu0 0.0
        %3156 = vmatpush.xpose.msra.mxu0 0.0
        %3157 = vmatpush.xpose.msra.mxu0 0.0
        %3158 = vmatpush.xpose.msra.mxu0 0.0
        %3159 = vmatpush.xpose.msra.mxu0 0.0
        %3160 = vmatpush.xpose.msra.mxu0 0.0
        %3161 = vmatpush.xpose.msra.mxu0 0.0
        %3162 = vmatpush.xpose.msra.mxu0 0.0
        %3163 = vmatpush.xpose.msra.mxu0 0.0
        %3164 = vmatpush.xpose.msra.mxu0 0.0
        %3165 = vmatpush.xpose.msra.mxu0 0.0
        %3166 = vmatpush.xpose.msra.mxu0 0.0
        %3167 = vmatpush.xpose.msra.mxu0 0.0
        %3168 = vmatpush.xpose.msra.mxu0 0.0
        %3169 = vmatpush.xpose.msra.mxu0 %v2181
        %3170 = vmatpush.xpose.msra.mxu0 %v2101
        %3171 = vmatmul.f32.gmra.mxu0 %v1986
        %v3172 = vpop.f32.mrf.mxu0
        %v3173 = vadd.f32 %v3153, %v3172
        %3174 = vdwg.mxu0
        %3175 = vmatpush.xpose.msra.mxu0 0.0
        %3176 = vmatpush.xpose.msra.mxu0 0.0
        %3177 = vmatpush.xpose.msra.mxu0 0.0
        %3178 = vmatpush.xpose.msra.mxu0 0.0
        %3179 = vmatpush.xpose.msra.mxu0 0.0
        %3180 = vmatpush.xpose.msra.mxu0 0.0
        %3181 = vmatpush.xpose.msra.mxu0 0.0
        %3182 = vmatpush.xpose.msra.mxu0 0.0
        %3183 = vmatpush.xpose.msra.mxu0 0.0
        %3184 = vmatpush.xpose.msra.mxu0 0.0
        %3185 = vmatpush.xpose.msra.mxu0 0.0
        %3186 = vmatpush.xpose.msra.mxu0 0.0
        %3187 = vmatpush.xpose.msra.mxu0 0.0
        %3188 = vmatpush.xpose.msra.mxu0 0.0
        %3189 = vmatpush.xpose.msra.mxu0 %v2182
        %3190 = vmatpush.xpose.msra.mxu0 %v2102
        %3191 = vmatmul.f32.gmra.mxu0 %v1987
        %v3192 = vpop.f32.mrf.mxu0
        %v3193 = vadd.f32 %v3173, %v3192
        %3194 = vdwg.mxu0
        %3195 = vmatpush.xpose.msra.mxu0 0.0
        %3196 = vmatpush.xpose.msra.mxu0 0.0
        %3197 = vmatpush.xpose.msra.mxu0 0.0
        %3198 = vmatpush.xpose.msra.mxu0 0.0
        %3199 = vmatpush.xpose.msra.mxu0 0.0
        %3200 = vmatpush.xpose.msra.mxu0 0.0
        %3201 = vmatpush.xpose.msra.mxu0 0.0
        %3202 = vmatpush.xpose.msra.mxu0 0.0
        %3203 = vmatpush.xpose.msra.mxu0 0.0
        %3204 = vmatpush.xpose.msra.mxu0 0.0
        %3205 = vmatpush.xpose.msra.mxu0 0.0
        %3206 = vmatpush.xpose.msra.mxu0 0.0
        %3207 = vmatpush.xpose.msra.mxu0 0.0
        %3208 = vmatpush.xpose.msra.mxu0 0.0
        %3209 = vmatpush.xpose.msra.mxu0 %v2183
        %3210 = vmatpush.xpose.msra.mxu0 %v2103
        %3211 = vmatmul.f32.gmra.mxu0 %v1988
        %v3212 = vpop.f32.mrf.mxu0
        %v3213 = vadd.f32 %v3193, %v3212
        %3214 = vdwg.mxu0
        %3215 = vmatpush.xpose.msra.mxu0 0.0
        %3216 = vmatpush.xpose.msra.mxu0 0.0
        %3217 = vmatpush.xpose.msra.mxu0 0.0
        %3218 = vmatpush.xpose.msra.mxu0 0.0
        %3219 = vmatpush.xpose.msra.mxu0 0.0
        %3220 = vmatpush.xpose.msra.mxu0 0.0
        %3221 = vmatpush.xpose.msra.mxu0 0.0
        %3222 = vmatpush.xpose.msra.mxu0 0.0
        %3223 = vmatpush.xpose.msra.mxu0 0.0
        %3224 = vmatpush.xpose.msra.mxu0 0.0
        %3225 = vmatpush.xpose.msra.mxu0 0.0
        %3226 = vmatpush.xpose.msra.mxu0 0.0
        %3227 = vmatpush.xpose.msra.mxu0 0.0
        %3228 = vmatpush.xpose.msra.mxu0 0.0
        %3229 = vmatpush.xpose.msra.mxu0 %v2184
        %3230 = vmatpush.xpose.msra.mxu0 %v2104
        %3231 = vmatmul.f32.gmra.mxu0 %v1994
        %v3232 = vpop.f32.mrf.mxu0
        %v3233 = vadd.f32 %v3213, %v3232
        %3234 = vdwg.mxu0
        %3235 = vmatpush.xpose.msra.mxu0 0.0
        %3236 = vmatpush.xpose.msra.mxu0 0.0
        %3237 = vmatpush.xpose.msra.mxu0 0.0
        %3238 = vmatpush.xpose.msra.mxu0 0.0
        %3239 = vmatpush.xpose.msra.mxu0 0.0
        %3240 = vmatpush.xpose.msra.mxu0 0.0
        %3241 = vmatpush.xpose.msra.mxu0 0.0
        %3242 = vmatpush.xpose.msra.mxu0 0.0
        %3243 = vmatpush.xpose.msra.mxu0 0.0
        %3244 = vmatpush.xpose.msra.mxu0 0.0
        %3245 = vmatpush.xpose.msra.mxu0 0.0
        %3246 = vmatpush.xpose.msra.mxu0 0.0
        %3247 = vmatpush.xpose.msra.mxu0 0.0
        %3248 = vmatpush.xpose.msra.mxu0 0.0
        %3249 = vmatpush.xpose.msra.mxu0 %v2185
        %3250 = vmatpush.xpose.msra.mxu0 %v2105
        %3251 = vmatmul.f32.gmra.mxu0 %v1995
        %v3252 = vpop.f32.mrf.mxu0
        %v3253 = vadd.f32 %v3233, %v3252
        %3254 = vdwg.mxu0
        %3255 = vmatpush.xpose.msra.mxu0 0.0
        %3256 = vmatpush.xpose.msra.mxu0 0.0
        %3257 = vmatpush.xpose.msra.mxu0 0.0
        %3258 = vmatpush.xpose.msra.mxu0 0.0
        %3259 = vmatpush.xpose.msra.mxu0 0.0
        %3260 = vmatpush.xpose.msra.mxu0 0.0
        %3261 = vmatpush.xpose.msra.mxu0 0.0
        %3262 = vmatpush.xpose.msra.mxu0 0.0
        %3263 = vmatpush.xpose.msra.mxu0 0.0
        %3264 = vmatpush.xpose.msra.mxu0 0.0
        %3265 = vmatpush.xpose.msra.mxu0 0.0
        %3266 = vmatpush.xpose.msra.mxu0 0.0
        %3267 = vmatpush.xpose.msra.mxu0 0.0
        %3268 = vmatpush.xpose.msra.mxu0 0.0
        %3269 = vmatpush.xpose.msra.mxu0 %v2186
        %3270 = vmatpush.xpose.msra.mxu0 %v2106
        %3271 = vmatmul.f32.gmra.mxu0 %v1996
        %v3272 = vpop.f32.mrf.mxu0
        %v3273 = vadd.f32 %v3253, %v3272
        %3274 = vdwg.mxu0
        %3275 = vmatpush.xpose.msra.mxu0 0.0
        %3276 = vmatpush.xpose.msra.mxu0 0.0
        %3277 = vmatpush.xpose.msra.mxu0 0.0
        %3278 = vmatpush.xpose.msra.mxu0 0.0
        %3279 = vmatpush.xpose.msra.mxu0 0.0
        %3280 = vmatpush.xpose.msra.mxu0 0.0
        %3281 = vmatpush.xpose.msra.mxu0 0.0
        %3282 = vmatpush.xpose.msra.mxu0 0.0
        %3283 = vmatpush.xpose.msra.mxu0 0.0
        %3284 = vmatpush.xpose.msra.mxu0 0.0
        %3285 = vmatpush.xpose.msra.mxu0 0.0
        %3286 = vmatpush.xpose.msra.mxu0 0.0
        %3287 = vmatpush.xpose.msra.mxu0 0.0
        %3288 = vmatpush.xpose.msra.mxu0 0.0
        %3289 = vmatpush.xpose.msra.mxu0 %v2187
        %3290 = vmatpush.xpose.msra.mxu0 %v2107
        %3291 = vmatmul.f32.gmra.mxu0 %v1997
        %v3292 = vpop.f32.mrf.mxu0
        %v3293 = vadd.f32 %v3273, %v3292
        %3294 = vdwg.mxu0
        %3295 = vmatpush.xpose.msra.mxu0 0.0
        %3296 = vmatpush.xpose.msra.mxu0 0.0
        %3297 = vmatpush.xpose.msra.mxu0 0.0
        %3298 = vmatpush.xpose.msra.mxu0 0.0
        %3299 = vmatpush.xpose.msra.mxu0 0.0
        %3300 = vmatpush.xpose.msra.mxu0 0.0
        %3301 = vmatpush.xpose.msra.mxu0 0.0
        %3302 = vmatpush.xpose.msra.mxu0 0.0
        %3303 = vmatpush.xpose.msra.mxu0 0.0
        %3304 = vmatpush.xpose.msra.mxu0 0.0
        %3305 = vmatpush.xpose.msra.mxu0 0.0
        %3306 = vmatpush.xpose.msra.mxu0 0.0
        %3307 = vmatpush.xpose.msra.mxu0 0.0
        %3308 = vmatpush.xpose.msra.mxu0 0.0
        %3309 = vmatpush.xpose.msra.mxu0 %v2188
        %3310 = vmatpush.xpose.msra.mxu0 %v2108
        %3311 = vmatmul.f32.gmra.mxu0 %v1998
        %v3312 = vpop.f32.mrf.mxu0
        %v3313 = vadd.f32 %v3293, %v3312
        %3314 = vdwg.mxu0
        %3315 = vmatpush.xpose.msra.mxu0 0.0
        %3316 = vmatpush.xpose.msra.mxu0 0.0
        %3317 = vmatpush.xpose.msra.mxu0 0.0
        %3318 = vmatpush.xpose.msra.mxu0 0.0
        %3319 = vmatpush.xpose.msra.mxu0 0.0
        %3320 = vmatpush.xpose.msra.mxu0 0.0
        %3321 = vmatpush.xpose.msra.mxu0 0.0
        %3322 = vmatpush.xpose.msra.mxu0 0.0
        %3323 = vmatpush.xpose.msra.mxu0 0.0
        %3324 = vmatpush.xpose.msra.mxu0 0.0
        %3325 = vmatpush.xpose.msra.mxu0 0.0
        %3326 = vmatpush.xpose.msra.mxu0 0.0
        %3327 = vmatpush.xpose.msra.mxu0 0.0
        %3328 = vmatpush.xpose.msra.mxu0 0.0
        %3329 = vmatpush.xpose.msra.mxu0 %v2189
        %3330 = vmatpush.xpose.msra.mxu0 %v2109
        %3331 = vmatmul.f32.gmra.mxu0 %v2004
        %v3332 = vpop.f32.mrf.mxu0
        %v3333 = vadd.f32 %v3313, %v3332
        %3334 = vdwg.mxu0
        %3335 = vmatpush.xpose.msra.mxu0 0.0
        %3336 = vmatpush.xpose.msra.mxu0 0.0
        %3337 = vmatpush.xpose.msra.mxu0 0.0
        %3338 = vmatpush.xpose.msra.mxu0 0.0
        %3339 = vmatpush.xpose.msra.mxu0 0.0
        %3340 = vmatpush.xpose.msra.mxu0 0.0
        %3341 = vmatpush.xpose.msra.mxu0 0.0
        %3342 = vmatpush.xpose.msra.mxu0 0.0
        %3343 = vmatpush.xpose.msra.mxu0 0.0
        %3344 = vmatpush.xpose.msra.mxu0 0.0
        %3345 = vmatpush.xpose.msra.mxu0 0.0
        %3346 = vmatpush.xpose.msra.mxu0 0.0
        %3347 = vmatpush.xpose.msra.mxu0 0.0
        %3348 = vmatpush.xpose.msra.mxu0 0.0
        %3349 = vmatpush.xpose.msra.mxu0 %v2190
        %3350 = vmatpush.xpose.msra.mxu0 %v2110
        %3351 = vmatmul.f32.gmra.mxu0 %v2005
        %v3352 = vpop.f32.mrf.mxu0
        %v3353 = vadd.f32 %v3333, %v3352
        %3354 = vdwg.mxu0
        %3355 = vmatpush.xpose.msra.mxu0 0.0
        %3356 = vmatpush.xpose.msra.mxu0 0.0
        %3357 = vmatpush.xpose.msra.mxu0 0.0
        %3358 = vmatpush.xpose.msra.mxu0 0.0
        %3359 = vmatpush.xpose.msra.mxu0 0.0
        %3360 = vmatpush.xpose.msra.mxu0 0.0
        %3361 = vmatpush.xpose.msra.mxu0 0.0
        %3362 = vmatpush.xpose.msra.mxu0 0.0
        %3363 = vmatpush.xpose.msra.mxu0 0.0
        %3364 = vmatpush.xpose.msra.mxu0 0.0
        %3365 = vmatpush.xpose.msra.mxu0 0.0
        %3366 = vmatpush.xpose.msra.mxu0 0.0
        %3367 = vmatpush.xpose.msra.mxu0 0.0
        %3368 = vmatpush.xpose.msra.mxu0 0.0
        %3369 = vmatpush.xpose.msra.mxu0 %v2191
        %3370 = vmatpush.xpose.msra.mxu0 %v2111
        %3371 = vmatmul.f32.gmra.mxu0 %v2006
        %v3372 = vpop.f32.mrf.mxu0
        %v3373 = vadd.f32 %v3353, %v3372
        %3374 = vdwg.mxu0
        %3375 = vmatpush.xpose.msra.mxu0 0.0
        %3376 = vmatpush.xpose.msra.mxu0 0.0
        %3377 = vmatpush.xpose.msra.mxu0 0.0
        %3378 = vmatpush.xpose.msra.mxu0 0.0
        %3379 = vmatpush.xpose.msra.mxu0 0.0
        %3380 = vmatpush.xpose.msra.mxu0 0.0
        %3381 = vmatpush.xpose.msra.mxu0 0.0
        %3382 = vmatpush.xpose.msra.mxu0 0.0
        %3383 = vmatpush.xpose.msra.mxu0 0.0
        %3384 = vmatpush.xpose.msra.mxu0 0.0
        %3385 = vmatpush.xpose.msra.mxu0 0.0
        %3386 = vmatpush.xpose.msra.mxu0 0.0
        %3387 = vmatpush.xpose.msra.mxu0 0.0
        %3388 = vmatpush.xpose.msra.mxu0 0.0
        %3389 = vmatpush.xpose.msra.mxu0 %v2192
        %3390 = vmatpush.xpose.msra.mxu0 %v2112
        %3391 = vmatmul.f32.gmra.mxu0 %v2007
        %v3392 = vpop.f32.mrf.mxu0
        %v3393 = vadd.f32 %v3373, %v3392
        %3394 = vdwg.mxu0
        %3395 = vmatpush.xpose.msra.mxu0 0.0
        %3396 = vmatpush.xpose.msra.mxu0 0.0
        %3397 = vmatpush.xpose.msra.mxu0 0.0
        %3398 = vmatpush.xpose.msra.mxu0 0.0
        %3399 = vmatpush.xpose.msra.mxu0 0.0
        %3400 = vmatpush.xpose.msra.mxu0 0.0
        %3401 = vmatpush.xpose.msra.mxu0 0.0
        %3402 = vmatpush.xpose.msra.mxu0 0.0
        %3403 = vmatpush.xpose.msra.mxu0 0.0
        %3404 = vmatpush.xpose.msra.mxu0 0.0
        %3405 = vmatpush.xpose.msra.mxu0 0.0
        %3406 = vmatpush.xpose.msra.mxu0 0.0
        %3407 = vmatpush.xpose.msra.mxu0 0.0
        %3408 = vmatpush.xpose.msra.mxu0 0.0
        %3409 = vmatpush.xpose.msra.mxu0 %v2193
        %3410 = vmatpush.xpose.msra.mxu0 %v2113
        %3411 = vmatmul.f32.gmra.mxu0 %v2008
        %v3412 = vpop.f32.mrf.mxu0
        %v3413 = vadd.f32 %v3393, %v3412
        %3414 = vdwg.mxu0
        %3415 = vmatpush.xpose.msra.mxu0 0.0
        %3416 = vmatpush.xpose.msra.mxu0 0.0
        %3417 = vmatpush.xpose.msra.mxu0 0.0
        %3418 = vmatpush.xpose.msra.mxu0 0.0
        %3419 = vmatpush.xpose.msra.mxu0 0.0
        %3420 = vmatpush.xpose.msra.mxu0 0.0
        %3421 = vmatpush.xpose.msra.mxu0 0.0
        %3422 = vmatpush.xpose.msra.mxu0 0.0
        %3423 = vmatpush.xpose.msra.mxu0 0.0
        %3424 = vmatpush.xpose.msra.mxu0 0.0
        %3425 = vmatpush.xpose.msra.mxu0 0.0
        %3426 = vmatpush.xpose.msra.mxu0 0.0
        %3427 = vmatpush.xpose.msra.mxu0 0.0
        %3428 = vmatpush.xpose.msra.mxu0 0.0
        %3429 = vmatpush.xpose.msra.mxu0 %v2194
        %3430 = vmatpush.xpose.msra.mxu0 %v2114
        %3431 = vmatmul.f32.gmra.mxu0 %v2014
        %v3432 = vpop.f32.mrf.mxu0
        %v3433 = vadd.f32 %v3413, %v3432
        %3434 = vdwg.mxu0
        %3435 = vmatpush.xpose.msra.mxu0 0.0
        %3436 = vmatpush.xpose.msra.mxu0 0.0
        %3437 = vmatpush.xpose.msra.mxu0 0.0
        %3438 = vmatpush.xpose.msra.mxu0 0.0
        %3439 = vmatpush.xpose.msra.mxu0 0.0
        %3440 = vmatpush.xpose.msra.mxu0 0.0
        %3441 = vmatpush.xpose.msra.mxu0 0.0
        %3442 = vmatpush.xpose.msra.mxu0 0.0
        %3443 = vmatpush.xpose.msra.mxu0 0.0
        %3444 = vmatpush.xpose.msra.mxu0 0.0
        %3445 = vmatpush.xpose.msra.mxu0 0.0
        %3446 = vmatpush.xpose.msra.mxu0 0.0
        %3447 = vmatpush.xpose.msra.mxu0 0.0
        %3448 = vmatpush.xpose.msra.mxu0 0.0
        %3449 = vmatpush.xpose.msra.mxu0 %v2195
        %3450 = vmatpush.xpose.msra.mxu0 %v2115
        %3451 = vmatmul.f32.gmra.mxu0 %v2015
        %v3452 = vpop.f32.mrf.mxu0
        %v3453 = vadd.f32 %v3433, %v3452
        %3454 = vdwg.mxu0
        %3455 = vmatpush.xpose.msra.mxu0 0.0
        %3456 = vmatpush.xpose.msra.mxu0 0.0
        %3457 = vmatpush.xpose.msra.mxu0 0.0
        %3458 = vmatpush.xpose.msra.mxu0 0.0
        %3459 = vmatpush.xpose.msra.mxu0 0.0
        %3460 = vmatpush.xpose.msra.mxu0 0.0
        %3461 = vmatpush.xpose.msra.mxu0 0.0
        %3462 = vmatpush.xpose.msra.mxu0 0.0
        %3463 = vmatpush.xpose.msra.mxu0 0.0
        %3464 = vmatpush.xpose.msra.mxu0 0.0
        %3465 = vmatpush.xpose.msra.mxu0 0.0
        %3466 = vmatpush.xpose.msra.mxu0 0.0
        %3467 = vmatpush.xpose.msra.mxu0 0.0
        %3468 = vmatpush.xpose.msra.mxu0 0.0
        %3469 = vmatpush.xpose.msra.mxu0 %v2196
        %3470 = vmatpush.xpose.msra.mxu0 %v2116
        %3471 = vmatmul.f32.gmra.mxu0 %v2016
        %v3472 = vpop.f32.mrf.mxu0
        %v3473 = vadd.f32 %v3453, %v3472
        %3474 = vdwg.mxu0
        %3475 = vmatpush.xpose.msra.mxu0 0.0
        %3476 = vmatpush.xpose.msra.mxu0 0.0
        %3477 = vmatpush.xpose.msra.mxu0 0.0
        %3478 = vmatpush.xpose.msra.mxu0 0.0
        %3479 = vmatpush.xpose.msra.mxu0 0.0
        %3480 = vmatpush.xpose.msra.mxu0 0.0
        %3481 = vmatpush.xpose.msra.mxu0 0.0
        %3482 = vmatpush.xpose.msra.mxu0 0.0
        %3483 = vmatpush.xpose.msra.mxu0 0.0
        %3484 = vmatpush.xpose.msra.mxu0 0.0
        %3485 = vmatpush.xpose.msra.mxu0 0.0
        %3486 = vmatpush.xpose.msra.mxu0 0.0
        %3487 = vmatpush.xpose.msra.mxu0 0.0
        %3488 = vmatpush.xpose.msra.mxu0 0.0
        %3489 = vmatpush.xpose.msra.mxu0 %v2197
        %3490 = vmatpush.xpose.msra.mxu0 %v2117
        %3491 = vmatmul.f32.gmra.mxu0 %v2017
        %v3492 = vpop.f32.mrf.mxu0
        %v3493 = vadd.f32 %v3473, %v3492
        %3494 = vdwg.mxu0
        %3495 = vmatpush.xpose.msra.mxu0 0.0
        %3496 = vmatpush.xpose.msra.mxu0 0.0
        %3497 = vmatpush.xpose.msra.mxu0 0.0
        %3498 = vmatpush.xpose.msra.mxu0 0.0
        %3499 = vmatpush.xpose.msra.mxu0 0.0
        %3500 = vmatpush.xpose.msra.mxu0 0.0
        %3501 = vmatpush.xpose.msra.mxu0 0.0
        %3502 = vmatpush.xpose.msra.mxu0 0.0
        %3503 = vmatpush.xpose.msra.mxu0 0.0
        %3504 = vmatpush.xpose.msra.mxu0 0.0
        %3505 = vmatpush.xpose.msra.mxu0 0.0
        %3506 = vmatpush.xpose.msra.mxu0 0.0
        %3507 = vmatpush.xpose.msra.mxu0 0.0
        %3508 = vmatpush.xpose.msra.mxu0 0.0
        %3509 = vmatpush.xpose.msra.mxu0 %v2198
        %3510 = vmatpush.xpose.msra.mxu0 %v2118
        %3511 = vmatmul.f32.gmra.mxu0 %v2018
        %v3512 = vpop.f32.mrf.mxu0
        %v3513 = vadd.f32 %v3493, %v3512
        %3514 = vdwg.mxu0
        %3515 = vmatpush.xpose.msra.mxu0 0.0
        %3516 = vmatpush.xpose.msra.mxu0 0.0
        %3517 = vmatpush.xpose.msra.mxu0 0.0
        %3518 = vmatpush.xpose.msra.mxu0 0.0
        %3519 = vmatpush.xpose.msra.mxu0 0.0
        %3520 = vmatpush.xpose.msra.mxu0 0.0
        %3521 = vmatpush.xpose.msra.mxu0 0.0
        %3522 = vmatpush.xpose.msra.mxu0 0.0
        %3523 = vmatpush.xpose.msra.mxu0 0.0
        %3524 = vmatpush.xpose.msra.mxu0 0.0
        %3525 = vmatpush.xpose.msra.mxu0 0.0
        %3526 = vmatpush.xpose.msra.mxu0 0.0
        %3527 = vmatpush.xpose.msra.mxu0 0.0
        %3528 = vmatpush.xpose.msra.mxu0 0.0
        %3529 = vmatpush.xpose.msra.mxu0 %v2199
        %3530 = vmatpush.xpose.msra.mxu0 %v2119
        %3531 = vmatmul.f32.gmra.mxu0 %v2024
        %v3532 = vpop.f32.mrf.mxu0
        %v3533 = vadd.f32 %v3513, %v3532
        %3534 = vdwg.mxu0
        %3535 = vmatpush.xpose.msra.mxu0 0.0
        %3536 = vmatpush.xpose.msra.mxu0 0.0
        %3537 = vmatpush.xpose.msra.mxu0 0.0
        %3538 = vmatpush.xpose.msra.mxu0 0.0
        %3539 = vmatpush.xpose.msra.mxu0 0.0
        %3540 = vmatpush.xpose.msra.mxu0 0.0
        %3541 = vmatpush.xpose.msra.mxu0 0.0
        %3542 = vmatpush.xpose.msra.mxu0 0.0
        %3543 = vmatpush.xpose.msra.mxu0 0.0
        %3544 = vmatpush.xpose.msra.mxu0 0.0
        %3545 = vmatpush.xpose.msra.mxu0 0.0
        %3546 = vmatpush.xpose.msra.mxu0 0.0
        %3547 = vmatpush.xpose.msra.mxu0 0.0
        %3548 = vmatpush.xpose.msra.mxu0 0.0
        %3549 = vmatpush.xpose.msra.mxu0 %v2200
        %3550 = vmatpush.xpose.msra.mxu0 %v2120
        %3551 = vmatmul.f32.gmra.mxu0 %v2025
        %v3552 = vpop.f32.mrf.mxu0
        %v3553 = vadd.f32 %v3533, %v3552
        %3554 = vdwg.mxu0
        %3555 = vmatpush.xpose.msra.mxu0 0.0
        %3556 = vmatpush.xpose.msra.mxu0 0.0
        %3557 = vmatpush.xpose.msra.mxu0 0.0
        %3558 = vmatpush.xpose.msra.mxu0 0.0
        %3559 = vmatpush.xpose.msra.mxu0 0.0
        %3560 = vmatpush.xpose.msra.mxu0 0.0
        %3561 = vmatpush.xpose.msra.mxu0 0.0
        %3562 = vmatpush.xpose.msra.mxu0 0.0
        %3563 = vmatpush.xpose.msra.mxu0 0.0
        %3564 = vmatpush.xpose.msra.mxu0 0.0
        %3565 = vmatpush.xpose.msra.mxu0 0.0
        %3566 = vmatpush.xpose.msra.mxu0 0.0
        %3567 = vmatpush.xpose.msra.mxu0 0.0
        %3568 = vmatpush.xpose.msra.mxu0 0.0
        %3569 = vmatpush.xpose.msra.mxu0 %v2201
        %3570 = vmatpush.xpose.msra.mxu0 %v2121
        %3571 = vmatmul.f32.gmra.mxu0 %v2026
        %v3572 = vpop.f32.mrf.mxu0
        %v3573 = vadd.f32 %v3553, %v3572
        %3574 = vdwg.mxu0
        %3575 = vmatpush.xpose.msra.mxu0 0.0
        %3576 = vmatpush.xpose.msra.mxu0 0.0
        %3577 = vmatpush.xpose.msra.mxu0 0.0
        %3578 = vmatpush.xpose.msra.mxu0 0.0
        %3579 = vmatpush.xpose.msra.mxu0 0.0
        %3580 = vmatpush.xpose.msra.mxu0 0.0
        %3581 = vmatpush.xpose.msra.mxu0 0.0
        %3582 = vmatpush.xpose.msra.mxu0 0.0
        %3583 = vmatpush.xpose.msra.mxu0 0.0
        %3584 = vmatpush.xpose.msra.mxu0 0.0
        %3585 = vmatpush.xpose.msra.mxu0 0.0
        %3586 = vmatpush.xpose.msra.mxu0 0.0
        %3587 = vmatpush.xpose.msra.mxu0 0.0
        %3588 = vmatpush.xpose.msra.mxu0 0.0
        %3589 = vmatpush.xpose.msra.mxu0 %v2202
        %3590 = vmatpush.xpose.msra.mxu0 %v2122
        %3591 = vmatmul.f32.gmra.mxu0 %v2027
        %v3592 = vpop.f32.mrf.mxu0
        %v3593 = vadd.f32 %v3573, %v3592
        %3594 = vdwg.mxu0
        %3595 = vmatpush.xpose.msra.mxu0 0.0
        %3596 = vmatpush.xpose.msra.mxu0 0.0
        %3597 = vmatpush.xpose.msra.mxu0 0.0
        %3598 = vmatpush.xpose.msra.mxu0 0.0
        %3599 = vmatpush.xpose.msra.mxu0 0.0
        %3600 = vmatpush.xpose.msra.mxu0 0.0
        %3601 = vmatpush.xpose.msra.mxu0 0.0
        %3602 = vmatpush.xpose.msra.mxu0 0.0
        %3603 = vmatpush.xpose.msra.mxu0 0.0
        %3604 = vmatpush.xpose.msra.mxu0 0.0
        %3605 = vmatpush.xpose.msra.mxu0 0.0
        %3606 = vmatpush.xpose.msra.mxu0 0.0
        %3607 = vmatpush.xpose.msra.mxu0 0.0
        %3608 = vmatpush.xpose.msra.mxu0 0.0
        %3609 = vmatpush.xpose.msra.mxu0 %v2203
        %3610 = vmatpush.xpose.msra.mxu0 %v2123
        %3611 = vmatmul.f32.gmra.mxu0 %v2028
        %v3612 = vpop.f32.mrf.mxu0
        %v3613 = vadd.f32 %v3593, %v3612
        %3614 = vdwg.mxu0
        %3615 = vmatpush.xpose.msra.mxu0 0.0
        %3616 = vmatpush.xpose.msra.mxu0 0.0
        %3617 = vmatpush.xpose.msra.mxu0 0.0
        %3618 = vmatpush.xpose.msra.mxu0 0.0
        %3619 = vmatpush.xpose.msra.mxu0 0.0
        %3620 = vmatpush.xpose.msra.mxu0 0.0
        %3621 = vmatpush.xpose.msra.mxu0 0.0
        %3622 = vmatpush.xpose.msra.mxu0 0.0
        %3623 = vmatpush.xpose.msra.mxu0 0.0
        %3624 = vmatpush.xpose.msra.mxu0 0.0
        %3625 = vmatpush.xpose.msra.mxu0 0.0
        %3626 = vmatpush.xpose.msra.mxu0 0.0
        %3627 = vmatpush.xpose.msra.mxu0 0.0
        %3628 = vmatpush.xpose.msra.mxu0 0.0
        %3629 = vmatpush.xpose.msra.mxu0 %v2204
        %3630 = vmatpush.xpose.msra.mxu0 %v2124
        %3631 = vmatmul.f32.gmra.mxu0 %v2034
        %v3632 = vpop.f32.mrf.mxu0
        %v3633 = vadd.f32 %v3613, %v3632
        %3634 = vdwg.mxu0
        %3635 = vmatpush.xpose.msra.mxu0 0.0
        %3636 = vmatpush.xpose.msra.mxu0 0.0
        %3637 = vmatpush.xpose.msra.mxu0 0.0
        %3638 = vmatpush.xpose.msra.mxu0 0.0
        %3639 = vmatpush.xpose.msra.mxu0 0.0
        %3640 = vmatpush.xpose.msra.mxu0 0.0
        %3641 = vmatpush.xpose.msra.mxu0 0.0
        %3642 = vmatpush.xpose.msra.mxu0 0.0
        %3643 = vmatpush.xpose.msra.mxu0 0.0
        %3644 = vmatpush.xpose.msra.mxu0 0.0
        %3645 = vmatpush.xpose.msra.mxu0 0.0
        %3646 = vmatpush.xpose.msra.mxu0 0.0
        %3647 = vmatpush.xpose.msra.mxu0 0.0
        %3648 = vmatpush.xpose.msra.mxu0 0.0
        %3649 = vmatpush.xpose.msra.mxu0 %v2205
        %3650 = vmatpush.xpose.msra.mxu0 %v2125
        %3651 = vmatmul.f32.gmra.mxu0 %v2035
        %v3652 = vpop.f32.mrf.mxu0
        %v3653 = vadd.f32 %v3633, %v3652
        %3654 = vdwg.mxu0
        %3655 = vmatpush.xpose.msra.mxu0 0.0
        %3656 = vmatpush.xpose.msra.mxu0 0.0
        %3657 = vmatpush.xpose.msra.mxu0 0.0
        %3658 = vmatpush.xpose.msra.mxu0 0.0
        %3659 = vmatpush.xpose.msra.mxu0 0.0
        %3660 = vmatpush.xpose.msra.mxu0 0.0
        %3661 = vmatpush.xpose.msra.mxu0 0.0
        %3662 = vmatpush.xpose.msra.mxu0 0.0
        %3663 = vmatpush.xpose.msra.mxu0 0.0
        %3664 = vmatpush.xpose.msra.mxu0 0.0
        %3665 = vmatpush.xpose.msra.mxu0 0.0
        %3666 = vmatpush.xpose.msra.mxu0 0.0
        %3667 = vmatpush.xpose.msra.mxu0 0.0
        %3668 = vmatpush.xpose.msra.mxu0 0.0
        %3669 = vmatpush.xpose.msra.mxu0 %v2206
        %3670 = vmatpush.xpose.msra.mxu0 %v2126
        %3671 = vmatmul.f32.gmra.mxu0 %v2036
        %v3672 = vpop.f32.mrf.mxu0
        %v3673 = vadd.f32 %v3653, %v3672
        %3674 = vdwg.mxu0
        %3675 = vmatpush.xpose.msra.mxu0 0.0
        %3676 = vmatpush.xpose.msra.mxu0 0.0
        %3677 = vmatpush.xpose.msra.mxu0 0.0
        %3678 = vmatpush.xpose.msra.mxu0 0.0
        %3679 = vmatpush.xpose.msra.mxu0 0.0
        %3680 = vmatpush.xpose.msra.mxu0 0.0
        %3681 = vmatpush.xpose.msra.mxu0 0.0
        %3682 = vmatpush.xpose.msra.mxu0 0.0
        %3683 = vmatpush.xpose.msra.mxu0 0.0
        %3684 = vmatpush.xpose.msra.mxu0 0.0
        %3685 = vmatpush.xpose.msra.mxu0 0.0
        %3686 = vmatpush.xpose.msra.mxu0 0.0
        %3687 = vmatpush.xpose.msra.mxu0 0.0
        %3688 = vmatpush.xpose.msra.mxu0 0.0
        %3689 = vmatpush.xpose.msra.mxu0 %v2207
        %3690 = vmatpush.xpose.msra.mxu0 %v2127
        %3691 = vmatmul.f32.gmra.mxu0 %v2037
        %v3692 = vpop.f32.mrf.mxu0
        %v3693 = vadd.f32 %v3673, %v3692
        %3694 = vdwg.mxu0
        %3695 = vmatpush.xpose.msra.mxu0 0.0
        %3696 = vmatpush.xpose.msra.mxu0 0.0
        %3697 = vmatpush.xpose.msra.mxu0 0.0
        %3698 = vmatpush.xpose.msra.mxu0 0.0
        %3699 = vmatpush.xpose.msra.mxu0 0.0
        %3700 = vmatpush.xpose.msra.mxu0 0.0
        %3701 = vmatpush.xpose.msra.mxu0 0.0
        %3702 = vmatpush.xpose.msra.mxu0 0.0
        %3703 = vmatpush.xpose.msra.mxu0 0.0
        %3704 = vmatpush.xpose.msra.mxu0 0.0
        %3705 = vmatpush.xpose.msra.mxu0 0.0
        %3706 = vmatpush.xpose.msra.mxu0 0.0
        %3707 = vmatpush.xpose.msra.mxu0 0.0
        %3708 = vmatpush.xpose.msra.mxu0 0.0
        %3709 = vmatpush.xpose.msra.mxu0 %v2208
        %3710 = vmatpush.xpose.msra.mxu0 %v2128
        %3711 = vmatmul.f32.gmra.mxu0 %v2038
        %v3712 = vpop.f32.mrf.mxu0
        %v3713 = vadd.f32 %v3693, %v3712
        %3714 = vdwg.mxu0
        %3715 = vmatpush.xpose.msra.mxu0 0.0
        %3716 = vmatpush.xpose.msra.mxu0 0.0
        %3717 = vmatpush.xpose.msra.mxu0 0.0
        %3718 = vmatpush.xpose.msra.mxu0 0.0
        %3719 = vmatpush.xpose.msra.mxu0 0.0
        %3720 = vmatpush.xpose.msra.mxu0 0.0
        %3721 = vmatpush.xpose.msra.mxu0 0.0
        %3722 = vmatpush.xpose.msra.mxu0 0.0
        %3723 = vmatpush.xpose.msra.mxu0 0.0
        %3724 = vmatpush.xpose.msra.mxu0 0.0
        %3725 = vmatpush.xpose.msra.mxu0 0.0
        %3726 = vmatpush.xpose.msra.mxu0 0.0
        %3727 = vmatpush.xpose.msra.mxu0 0.0
        %3728 = vmatpush.xpose.msra.mxu0 0.0
        %3729 = vmatpush.xpose.msra.mxu0 %v2209
        %3730 = vmatpush.xpose.msra.mxu0 %v2129
        %3731 = vmatmul.f32.gmra.mxu0 %v2044
        %v3732 = vpop.f32.mrf.mxu0
        %v3733 = vadd.f32 %v3713, %v3732
        %3734 = vdwg.mxu0
        %3735 = vmatpush.xpose.msra.mxu0 0.0
        %3736 = vmatpush.xpose.msra.mxu0 0.0
        %3737 = vmatpush.xpose.msra.mxu0 0.0
        %3738 = vmatpush.xpose.msra.mxu0 0.0
        %3739 = vmatpush.xpose.msra.mxu0 0.0
        %3740 = vmatpush.xpose.msra.mxu0 0.0
        %3741 = vmatpush.xpose.msra.mxu0 0.0
        %3742 = vmatpush.xpose.msra.mxu0 0.0
        %3743 = vmatpush.xpose.msra.mxu0 0.0
        %3744 = vmatpush.xpose.msra.mxu0 0.0
        %3745 = vmatpush.xpose.msra.mxu0 0.0
        %3746 = vmatpush.xpose.msra.mxu0 0.0
        %3747 = vmatpush.xpose.msra.mxu0 0.0
        %3748 = vmatpush.xpose.msra.mxu0 0.0
        %3749 = vmatpush.xpose.msra.mxu0 %v2210
        %3750 = vmatpush.xpose.msra.mxu0 %v2130
        %3751 = vmatmul.f32.gmra.mxu0 %v2045
        %v3752 = vpop.f32.mrf.mxu0
        %v3753 = vadd.f32 %v3733, %v3752
        %3754 = vdwg.mxu0
        %3755 = vmatpush.xpose.msra.mxu0 0.0
        %3756 = vmatpush.xpose.msra.mxu0 0.0
        %3757 = vmatpush.xpose.msra.mxu0 0.0
        %3758 = vmatpush.xpose.msra.mxu0 0.0
        %3759 = vmatpush.xpose.msra.mxu0 0.0
        %3760 = vmatpush.xpose.msra.mxu0 0.0
        %3761 = vmatpush.xpose.msra.mxu0 0.0
        %3762 = vmatpush.xpose.msra.mxu0 0.0
        %3763 = vmatpush.xpose.msra.mxu0 0.0
        %3764 = vmatpush.xpose.msra.mxu0 0.0
        %3765 = vmatpush.xpose.msra.mxu0 0.0
        %3766 = vmatpush.xpose.msra.mxu0 0.0
        %3767 = vmatpush.xpose.msra.mxu0 0.0
        %3768 = vmatpush.xpose.msra.mxu0 0.0
        %3769 = vmatpush.xpose.msra.mxu0 %v2211
        %3770 = vmatpush.xpose.msra.mxu0 %v2131
        %3771 = vmatmul.f32.gmra.mxu0 %v2046
        %v3772 = vpop.f32.mrf.mxu0
        %v3773 = vadd.f32 %v3753, %v3772
        %3774 = vdwg.mxu0
        %3775 = vmatpush.xpose.msra.mxu0 0.0
        %3776 = vmatpush.xpose.msra.mxu0 0.0
        %3777 = vmatpush.xpose.msra.mxu0 0.0
        %3778 = vmatpush.xpose.msra.mxu0 0.0
        %3779 = vmatpush.xpose.msra.mxu0 0.0
        %3780 = vmatpush.xpose.msra.mxu0 0.0
        %3781 = vmatpush.xpose.msra.mxu0 0.0
        %3782 = vmatpush.xpose.msra.mxu0 0.0
        %3783 = vmatpush.xpose.msra.mxu0 0.0
        %3784 = vmatpush.xpose.msra.mxu0 0.0
        %3785 = vmatpush.xpose.msra.mxu0 0.0
        %3786 = vmatpush.xpose.msra.mxu0 0.0
        %3787 = vmatpush.xpose.msra.mxu0 0.0
        %3788 = vmatpush.xpose.msra.mxu0 0.0
        %3789 = vmatpush.xpose.msra.mxu0 %v2212
        %3790 = vmatpush.xpose.msra.mxu0 %v2132
        %3791 = vmatmul.f32.gmra.mxu0 %v2047
        %v3792 = vpop.f32.mrf.mxu0
        %v3793 = vadd.f32 %v3773, %v3792
        %3794 = vdwg.mxu0
        %3795 = vmatpush.xpose.msra.mxu0 0.0
        %3796 = vmatpush.xpose.msra.mxu0 0.0
        %3797 = vmatpush.xpose.msra.mxu0 0.0
        %3798 = vmatpush.xpose.msra.mxu0 0.0
        %3799 = vmatpush.xpose.msra.mxu0 0.0
        %3800 = vmatpush.xpose.msra.mxu0 0.0
        %3801 = vmatpush.xpose.msra.mxu0 0.0
        %3802 = vmatpush.xpose.msra.mxu0 0.0
        %3803 = vmatpush.xpose.msra.mxu0 0.0
        %3804 = vmatpush.xpose.msra.mxu0 0.0
        %3805 = vmatpush.xpose.msra.mxu0 0.0
        %3806 = vmatpush.xpose.msra.mxu0 0.0
        %3807 = vmatpush.xpose.msra.mxu0 0.0
        %3808 = vmatpush.xpose.msra.mxu0 0.0
        %3809 = vmatpush.xpose.msra.mxu0 %v2213
        %3810 = vmatpush.xpose.msra.mxu0 %v2133
        %3811 = vmatmul.f32.gmra.mxu0 %v2048
        %v3812 = vpop.f32.mrf.mxu0
        %v3813 = vadd.f32 %v3793, %v3812
        %3814 = vdwg.mxu0
        %v3815 = vmax.f32 %v3813, 0.0
        %v3816 = vld [vmem:[%s7] sm:$0xff]
        %v3817 = vld [vmem:[%s7 + $0x8] sm:$0x3]
        %v3818 = vld [vmem:[%s8] sm:$0x1]
        %vm3819 = vcmask 80896
        %v3821 = vsel %vm3819, %v3815, 0
        %v3824 = vsel %vm754, %v3817, 0
        %3826 = vmatpush.msra.mxu0 0.0
        %3827 = vmatpush.msra.mxu0 0.0
        %3828 = vmatpush.msra.mxu0 0.0
        %3829 = vmatpush.msra.mxu0 0.0
        %3830 = vmatpush.msra.mxu0 0.0
        %3831 = vmatpush.msra.mxu0 0.0
        %3832 = vmatpush.msra.mxu0 0.0
        %3833 = vmatpush.msra.mxu0 0.0
        %3834 = vmatpush.msra.mxu0 0.0
        %3835 = vmatpush.msra.mxu0 0.0
        %3836 = vmatpush.msra.mxu0 0.0
        %3837 = vmatpush.msra.mxu0 0.0
        %3838 = vmatpush.msra.mxu0 0.0
        %3839 = vmatpush.msra.mxu0 0.0
        %3840 = vmatpush.msra.mxu0 %v3824
        %3841 = vmatpush.msra.mxu0 %v3816
        %3842 = vmatmul.f32.gmra.mxu0 %v3821
        %v3843 = vpop.f32.mrf.mxu0
        %v3844 = vadd.f32 %v3818, %v3843
        %3845 = vdwg.mxu0
        %vm3846 = vcmask 8192
        %3847 = vst.msk [vmem:[%s322] sm:$0x1] %vm3846, %v3844
        %s3848 = sand.u32 %s225, 1
        %s3849 = scalar_lea.sflag [#allocation3], %s3848
        %s3850 = sand.u32 %s225, 1
        %s3851 = scalar_lea.vmem [#allocation2], %s3850
        // Predicated region
        $region57: #{tweaked_squafra_forward.1} parent=55 // pred_check
          %p3852 = pneg %p235
        $region58: #{tweaked_squafra_forward.1} parent=55 // pred_check_branch
          %3854 = sbr.rel (%p3852) target = $region60
        $region59: #{tweaked_squafra_forward.1} parent=55 // pred_region
          %3856 = vsyncadd %s3849, 0
          %s3857 = scalar_lea.hbm %s9, %s23
          %s3859 = sshll.u32 %s3851, 4
          %s3860 = int_to_ptr.vmem [resolvable:$true] %s3859
          %s3861 = sshll.u32 %s3857, 4
          %s3862 = int_to_ptr.hbm [resolvable:$true] %s3861
          %3864 = dma.vmem_to_hbm [thread:$0]  %s3860, 16, %s3862, %s3849
        $region60: #{tweaked_squafra_forward.1} parent=55 // pred_fallthru
          _
      $region56: #{tweaked_squafra_forward.1} parent=5 // pred_fallthru
        _
      %p3865 = scmp.le.s32.totalorder 2, %s18
      // Predicated region
      $region61: #{tweaked_squafra_forward.1} parent=5 // pred_check
        %p3866 = pneg %p3865
      $region62: #{tweaked_squafra_forward.1} parent=5 // pred_check_branch
        %3868 = sbr.rel (%p3866) target = $region64
      $region63: #{tweaked_squafra_forward.1} parent=5 // pred_region
        %s3869 = ssub.s32 %s18, 2
        // Predicated region
        $region65: #{tweaked_squafra_forward.1} parent=63 // pred_check
          %p3870 = pneg %p241
        $region66: #{tweaked_squafra_forward.1} parent=63 // pred_check_branch
          %3872 = sbr.rel (%p3870) target = $region68
        $region67: #{tweaked_squafra_forward.1} parent=63 // pred_region
          %s3873 = sand.u32 %s226, 1
          %s3874 = scalar_lea.sflag [#allocation3], %s3873
          %s3875 = sand.u32 %s226, 1
          %s3876 = scalar_lea.vmem [#allocation2], %s3875
          %3878 = dma.done %s3874, 16
        $region68: #{tweaked_squafra_forward.1} parent=63 // pred_fallthru
          _
      $region64: #{tweaked_squafra_forward.1} parent=5 // pred_fallthru
        _
    $region6: #{tweaked_squafra_forward.1} parent=1 // loop_footer
      %s22 = sadd.s32 1, %s18
    $region7: #{tweaked_squafra_forward.1} parent=1 // loop_footer_branch
      %17 = sbr.rel target = $region3
    $region8: #{tweaked_squafra_forward.1} parent=1 // loop_exit
      _
    %3879 = vsyncpa [#allocation3], 1
    %s3880 = scalar_lea.sflag [#allocation3], 1
    %3881 = vsyncpa %s3880, 1

</llo_original>
